<compile_context>
chip_gen: v7x
topology: tpu7x:2x2x1
jax: 0.10.0
libtpu: 0.0.40
codegen_flags: <defaults>
</compile_context>

<pallas_src>
import functools

import jax
import jax.numpy as jnp
from jax.experimental import pallas as pl
from jax.experimental.pallas import tpu as pltpu

SEQ_LENGTH = 210
EPS = 1e-5                       # nn.LayerNorm default eps

_MM_DTYPE = jnp.bfloat16         # matmul operand dtype (accumulate f32); elementwise stays f32
_TM_PREF = 512                   # row tile for M = B*S kernels (multiple of 128, fits 2*210 rows)
_TN_PREF = 512                   # vocab tile for fc_out (multiple of 128)
_BT_PREF = 4                     # batch elements per attention grid step
_VMEM_LIMIT = 32 * 1024 * 1024   # explicit scoped-VMEM limit (safe on v5e/v6e/v7x)

_HAS_EINSHAPE = hasattr(pltpu, "einshape")


# --------------------------------------------------------------------------- helpers
def _rep_spec(shape):
    """Weight/bias spec: same (single) block every grid step -> VMEM-resident, fetched once."""
    n = len(shape)
    return pl.BlockSpec(shape, lambda *_: (0,) * n)


def _tile(dim, pref):
    """Full dim if it fits, otherwise a fixed aligned tile (partial last block is fine)."""
    return dim if dim <= pref else pref


def _heads_major(x):
    """[S, H, Dh] -> [H, S, Dh] (lane-layout-aware relayout)."""
    if _HAS_EINSHAPE:
        return pltpu.einshape("shd->hsd", x)
    return jnp.swapaxes(x, 0, 1)


def _heads_minor(x):
    """[H, S, Dh] -> [S, H, Dh]."""
    if _HAS_EINSHAPE:
        return pltpu.einshape("hsd->shd", x)
    return jnp.swapaxes(x, 0, 1)


def _mm(a, b):
    """MXU matmul: bf16 operands, f32 accumulation."""
    return jnp.dot(a.astype(_MM_DTYPE), b.astype(_MM_DTYPE),
                   preferred_element_type=jnp.float32)


def _layernorm(y, g, b):
    mu = jnp.mean(y, axis=-1, keepdims=True)
    var = jnp.mean(jnp.square(y - mu), axis=-1, keepdims=True)
    return (y - mu) * jax.lax.rsqrt(var + EPS) * g + b


# --------------------------------------------------------------------------- attention core
def _attn_core(xq2, q, k, v, wo, bo, g, bln, Bt, Sq, Sk, num_heads):
    """Head-batched attention + output projection + residual + LayerNorm, all in VMEM.

    xq2 : [Bt*Sq, E] f32 residual input
    q   : [Bt*Sq, E] f32 (1/sqrt(Dh) already folded into the Q weights)
    k,v : [Bt*Sk, E] f32
    """
    E = q.shape[-1]
    Dh = E // num_heads
    outs = []
    for bi in range(Bt):  # small static unroll over the per-step batch tile
        rq = slice(bi * Sq, (bi + 1) * Sq)
        rk = slice(bi * Sk, (bi + 1) * Sk)
        qh = _heads_major(q[rq].reshape(Sq, num_heads, Dh)).astype(_MM_DTYPE)  # [H,Sq,Dh]
        kh = _heads_major(k[rk].reshape(Sk, num_heads, Dh)).astype(_MM_DTYPE)  # [H,Sk,Dh]
        vh = _heads_major(v[rk].reshape(Sk, num_heads, Dh)).astype(_MM_DTYPE)  # [H,Sk,Dh]

        # one batched contraction over heads (contract last dims; no transposes of k)
        s = jnp.einsum("hqd,hkd->hqk", qh, kh,
                       preferred_element_type=jnp.float32)                     # [H,Sq,Sk]
        s = s - jnp.max(s, axis=-1, keepdims=True)
        p = jnp.exp(s)                                                          # f32 (v5e-safe)
        # approx reciprocal runs on the EUP slot; use approx=False for bit-parity tests
        p = p * pl.reciprocal(jnp.sum(p, axis=-1, keepdims=True), approx=True)
        o = jnp.einsum("hqk,hkd->hqd", p.astype(_MM_DTYPE), vh,
                       preferred_element_type=jnp.float32)                      # [H,Sq,Dh]
        outs.append(_heads_minor(o).reshape(Sq, E))

    attn = jnp.concatenate(outs, axis=0)                                        # [Bt*Sq, E]
    proj = _mm(attn, wo) + bo
    return _layernorm(xq2 + proj, g, bln)


# --------------------------------------------------------------------------- kernels
def _self_attn_kernel(x_ref, wqkv_ref, bqkv_ref, wo_ref, bo_ref, g_ref, b_ref, o_ref,
                      *, num_heads):
    Bt, S, E = x_ref.shape
    x2 = x_ref[...].reshape(Bt * S, E).astype(jnp.float32)          # flattened rows
    qkv = _mm(x2, wqkv_ref[...]) + bqkv_ref[...]                     # one fat [Bt*S,E]x[E,3E]
    q, k, v = qkv[:, :E], qkv[:, E:2 * E], qkv[:, 2 * E:]
    y = _attn_core(x2, q, k, v, wo_ref[...], bo_ref[...], g_ref[...], b_ref[...],
                   Bt, S, S, num_heads)
    o_ref[...] = y.reshape(Bt, S, E).astype(o_ref.dtype)


def _cross_attn_kernel(xq_ref, xkv_ref, wq_ref, bq_ref, wkv_ref, bkv_ref,
                       wo_ref, bo_ref, g_ref, b_ref, o_ref, *, num_heads):
    Bt, Sq, E = xq_ref.shape
    Sk = xkv_ref.shape[1]
    xq2 = xq_ref[...].reshape(Bt * Sq, E).astype(jnp.float32)
    xkv2 = xkv_ref[...].reshape(Bt * Sk, E).astype(jnp.float32)
    q = _mm(xq2, wq_ref[...]) + bq_ref[...]
    kv = _mm(xkv2, wkv_ref[...]) + bkv_ref[...]
    k, v = kv[:, :E], kv[:, E:]
    y = _attn_core(xq2, q, k, v, wo_ref[...], bo_ref[...], g_ref[...], b_ref[...],
                   Bt, Sq, Sk, num_heads)
    o_ref[...] = y.reshape(Bt, Sq, E).astype(o_ref.dtype)


def _ffn_ln_kernel(x_ref, w1_ref, b1_ref, w2_ref, b2_ref, g1_ref, bn1_ref,
                   g2_ref, bn2_ref, o_ref, *, fuse_final):
    # Fused: Linear(E->F) + ReLU + Linear(F->E) + residual + LayerNorm (+ optional final LN)
    x = x_ref[...].astype(jnp.float32)
    h = _mm(x, w1_ref[...]) + b1_ref[...]
    h = jnp.maximum(h, 0.0)
    f = _mm(h, w2_ref[...]) + b2_ref[...]
    y = _layernorm(x + f, g1_ref[...], bn1_ref[...])
    if fuse_final:                                   # final enc/dec LayerNorm fused in
        y = _layernorm(y, g2_ref[...], bn2_ref[...])
    o_ref[...] = y.astype(o_ref.dtype)


def _linear_kernel(x_ref, w_ref, b_ref, o_ref):
    o_ref[...] = (_mm(x_ref[...], w_ref[...]) + b_ref[...]).astype(o_ref.dtype)


# --------------------------------------------------------------------------- wrappers
def self_attn_block(x, ap, lnp, num_heads):
    B, S, E = x.shape
    Bt = min(B, _BT_PREF)
    kern = functools.partial(_self_attn_kernel, num_heads=num_heads)
    return pl.pallas_call(
        kern,
        out_shape=jax.ShapeDtypeStruct((B, S, E), jnp.float32),
        grid=(pl.cdiv(B, Bt),),
        in_specs=[
            pl.BlockSpec((Bt, S, E), lambda b: (b, 0, 0)),
            _rep_spec((E, 3 * E)), _rep_spec((1, 3 * E)),
            _rep_spec((E, E)), _rep_spec((1, E)),
            _rep_spec((1, E)), _rep_spec((1, E)),
        ],
        out_specs=pl.BlockSpec((Bt, S, E), lambda b: (b, 0, 0)),
        compiler_params=pltpu.CompilerParams(
            dimension_semantics=("parallel",), vmem_limit_bytes=_VMEM_LIMIT),
    )(x, ap["w_qkv"], ap["b_qkv"], ap["wo"], ap["bo"], lnp["g"], lnp["b"])


def cross_attn_block(x_q, x_kv, ap, lnp, num_heads):
    B, Sq, E = x_q.shape
    Sk = x_kv.shape[1]
    Bt = min(B, _BT_PREF)
    kern = functools.partial(_cross_attn_kernel, num_heads=num_heads)
    return pl.pallas_call(
        kern,
        out_shape=jax.ShapeDtypeStruct((B, Sq, E), jnp.float32),
        grid=(pl.cdiv(B, Bt),),
        in_specs=[
            pl.BlockSpec((Bt, Sq, E), lambda b: (b, 0, 0)),
            pl.BlockSpec((Bt, Sk, E), lambda b: (b, 0, 0)),
            _rep_spec((E, E)), _rep_spec((1, E)),
            _rep_spec((E, 2 * E)), _rep_spec((1, 2 * E)),
            _rep_spec((E, E)), _rep_spec((1, E)),
            _rep_spec((1, E)), _rep_spec((1, E)),
        ],
        out_specs=pl.BlockSpec((Bt, Sq, E), lambda b: (b, 0, 0)),
        compiler_params=pltpu.CompilerParams(
            dimension_semantics=("parallel",), vmem_limit_bytes=_VMEM_LIMIT),
    )(x_q, x_kv, ap["wq"], ap["bq"], ap["w_kv"], ap["b_kv"],
      ap["wo"], ap["bo"], lnp["g"], lnp["b"])


def ffn_block(x, fp, lnp, final_lnp=None):
    """Fused FFN + residual + LayerNorm; optionally fuses the stack's final LayerNorm too."""
    B, S, E = x.shape
    M = B * S
    F = fp["w1"].shape[1]
    tm = _tile(M, _TM_PREF)
    fln = final_lnp if final_lnp is not None else lnp          # dummies when not fused
    kern = functools.partial(_ffn_ln_kernel, fuse_final=final_lnp is not None)
    out = pl.pallas_call(
        kern,
        out_shape=jax.ShapeDtypeStruct((M, E), jnp.float32),
        grid=(pl.cdiv(M, tm),),
        in_specs=[
            pl.BlockSpec((tm, E), lambda i: (i, 0)),
            _rep_spec((E, F)), _rep_spec((1, F)),
            _rep_spec((F, E)), _rep_spec((1, E)),
            _rep_spec((1, E)), _rep_spec((1, E)),
            _rep_spec((1, E)), _rep_spec((1, E)),
        ],
        out_specs=pl.BlockSpec((tm, E), lambda i: (i, 0)),
        compiler_params=pltpu.CompilerParams(
            dimension_semantics=("parallel",), vmem_limit_bytes=_VMEM_LIMIT),
    )(x.reshape(M, E), fp["w1"], fp["b1"], fp["w2"], fp["b2"],
      lnp["g"], lnp["b"], fln["g"], fln["b"])
    return out.reshape(B, S, E)


def pallas_linear(x, w, b):
    """x:[M,K] @ w:[K,N] + b:[1,N].  Grid is (vocab-outer, rows-inner) so w streams once."""
    M, K = x.shape
    N = w.shape[1]
    tm, tn = _tile(M, _TM_PREF), _tile(N, _TN_PREF)
    return pl.pallas_call(
        _linear_kernel,
        out_shape=jax.ShapeDtypeStruct((M, N), jnp.float32),
        grid=(pl.cdiv(N, tn), pl.cdiv(M, tm)),
        in_specs=[
            pl.BlockSpec((tm, K), lambda j, i: (i, 0)),
            pl.BlockSpec((K, tn), lambda j, i: (0, j)),
            pl.BlockSpec((1, tn), lambda j, i: (0, j)),
        ],
        out_specs=pl.BlockSpec((tm, tn), lambda j, i: (i, j)),
        compiler_params=pltpu.CompilerParams(
            dimension_semantics=("parallel", "parallel"), vmem_limit_bytes=_VMEM_LIMIT),
    )(x, w, b)


# --------------------------------------------------------------------------- params
def _lin_init(key, d_in, d_out, scale=0.05):
    kw, kb = jax.random.split(key)
    w = jax.random.normal(kw, (d_in, d_out), jnp.float32) * scale
    b = jax.random.normal(kb, (1, d_out), jnp.float32) * scale
    return w, b


def _ln_init(E):
    return dict(g=jnp.ones((1, E), jnp.float32), b=jnp.zeros((1, E), jnp.float32))


def _mha_self_init(key, E, num_heads):
    ks = jax.random.split(key, 4)
    wq, bq = _lin_init(ks[0], E, E)
    wk, bk = _lin_init(ks[1], E, E)
    wv, bv = _lin_init(ks[2], E, E)
    wo, bo = _lin_init(ks[3], E, E)
    scale = 1.0 / float(E // num_heads) ** 0.5
    wq, bq = wq * scale, bq * scale                       # fold 1/sqrt(Dh) into Q projection
    return dict(
        w_qkv=jnp.concatenate([wq, wk, wv], axis=1).astype(_MM_DTYPE),
        b_qkv=jnp.concatenate([bq, bk, bv], axis=1),
        wo=wo.astype(_MM_DTYPE), bo=bo,
    )


def _mha_cross_init(key, E, num_heads):
    ks = jax.random.split(key, 4)
    wq, bq = _lin_init(ks[0], E, E)
    wk, bk = _lin_init(ks[1], E, E)
    wv, bv = _lin_init(ks[2], E, E)
    wo, bo = _lin_init(ks[3], E, E)
    scale = 1.0 / float(E // num_heads) ** 0.5
    wq, bq = wq * scale, bq * scale
    return dict(
        wq=wq.astype(_MM_DTYPE), bq=bq,
        w_kv=jnp.concatenate([wk, wv], axis=1).astype(_MM_DTYPE),
        b_kv=jnp.concatenate([bk, bv], axis=1),
        wo=wo.astype(_MM_DTYPE), bo=bo,
    )


def _ffn_init(key, E, F):
    k1, k2 = jax.random.split(key)
    w1, b1 = _lin_init(k1, E, F)
    w2, b2 = _lin_init(k2, F, E)
    return dict(w1=w1.astype(_MM_DTYPE), b1=b1, w2=w2.astype(_MM_DTYPE), b2=b2)


def _enc_layer_init(key, E, F, num_heads):
    k1, k2 = jax.random.split(key)
    return dict(self_attn=_mha_self_init(k1, E, num_heads), norm1=_ln_init(E),
                ffn=_ffn_init(k2, E, F), norm2=_ln_init(E))


def _dec_layer_init(key, E, F, num_heads):
    k1, k2, k3 = jax.random.split(key, 3)
    return dict(self_attn=_mha_self_init(k1, E, num_heads), norm1=_ln_init(E),
                cross_attn=_mha_cross_init(k2, E, num_heads), norm2=_ln_init(E),
                ffn=_ffn_init(k3, E, F), norm3=_ln_init(E))


def init_params(key, vocab_size, E, num_layers, num_heads, F):
    keys = jax.random.split(key, 3 + 2 * num_layers)
    embedding = jax.random.normal(keys[0], (vocab_size, E), jnp.float32) * 0.05
    pos_encoding = jax.random.normal(keys[1], (1, SEQ_LENGTH, E), jnp.float32) * 0.05
    enc_layers = [_enc_layer_init(keys[2 + i], E, F, num_heads) for i in range(num_layers)]
    dec_layers = [_dec_layer_init(keys[2 + num_layers + i], E, F, num_heads)
                  for i in range(num_layers)]
    w_out, b_out = _lin_init(keys[2 + 2 * num_layers], E, vocab_size)
    # lane-dense fc_out: pad vocab to a multiple of 128 (padding sliced off after the kernel)
    v_pad = ((vocab_size + 127) // 128) * 128
    w_out = jnp.pad(w_out, ((0, 0), (0, v_pad - vocab_size))).astype(_MM_DTYPE)
    b_out = jnp.pad(b_out, ((0, 0), (0, v_pad - vocab_size)))
    return dict(embedding=embedding, pos_encoding=pos_encoding,
                enc_layers=enc_layers, dec_layers=dec_layers,
                enc_norm=_ln_init(E), dec_norm=_ln_init(E),
                w_out=w_out, b_out=b_out)


# --------------------------------------------------------------------------- forward
def transformer_forward(params, src, tgt=None, *, num_heads):
    B, S = src.shape
    assert S <= SEQ_LENGTH, f"src length {S} exceeds pos_encoding length {SEQ_LENGTH}"
    emb, pos = params["embedding"], params["pos_encoding"]
    vocab_size = emb.shape[0]

    # embedding gather + pos-encoding add left to XLA (no rectangular BlockSpec for a gather)
    src_x = jnp.take(emb, src, axis=0) + pos[:, :S, :]
    if tgt is None:
        tgt = jnp.zeros((B, S), dtype=jnp.int32)
    St = tgt.shape[1]
    assert St <= SEQ_LENGTH, f"tgt length {St} exceeds pos_encoding length {SEQ_LENGTH}"
    tgt_x = jnp.take(emb, tgt, axis=0) + pos[:, :St, :]

    m = min(S, St)                       # mirrors the PyTorch min-length truncation
    src_x, tgt_x = src_x[:, :m, :], tgt_x[:, :m, :]

    # --- encoder (post-norm layers; final enc LayerNorm fused into the last FFN kernel) ---
    n_enc = len(params["enc_layers"])
    x = src_x
    for li, lp in enumerate(params["enc_layers"]):
        x = self_attn_block(x, lp["self_attn"], lp["norm1"], num_heads)
        x = ffn_block(x, lp["ffn"], lp["norm2"],
                      final_lnp=params["enc_norm"] if li == n_enc - 1 else None)
    memory = x

    # --- decoder (no masks, matching the PyTorch call; dropout = identity) ---
    n_dec = len(params["dec_layers"])
    y = tgt_x
    for li, lp in enumerate(params["dec_layers"]):
        y = self_attn_block(y, lp["self_attn"], lp["norm1"], num_heads)
        y = cross_attn_block(y, memory, lp["cross_attn"], lp["norm2"], num_heads)
        y = ffn_block(y, lp["ffn"], lp["norm3"],
                      final_lnp=params["dec_norm"] if li == n_dec - 1 else None)

    # --- fc_out (lane-dense padded vocab; weight streamed from HBM exactly once) ---
    B2, S2, E = y.shape
    logits = pallas_linear(y.reshape(B2 * S2, E), params["w_out"], params["b_out"])
    logits = logits[:, :vocab_size]      # strip vocab padding outside the kernel
    return logits.reshape(B2, S2, vocab_size)


# --------------------------------------------------------------------------- main
if __name__ == "__main__":
    vocab_size, embed_size, num_layers, num_heads, ffn_hidden = 50, 32, 2, 4, 64
    batch, seq = 2, 8

    key = jax.random.PRNGKey(0)
    pkey, skey = jax.random.split(key)
    params = init_params(pkey, vocab_size, embed_size, num_layers, num_heads, ffn_hidden)
    src = jax.random.randint(skey, (batch, seq), 0, vocab_size, dtype=jnp.int32)

    fwd = jax.jit(functools.partial(transformer_forward, num_heads=num_heads))
    out = jax.block_until_ready(fwd(params, src))
    assert out.shape == (batch, seq, vocab_size), out.shape
    assert bool(jnp.all(jnp.isfinite(out)))
    print("KERNEL_OK")
</pallas_src>

<mosaic_0001>
module attributes {stable_mosaic.version = 11 : i64} {
  func.func @_ffn_ln_kernel(%arg0: i32, %arg1: memref<16x32xf32, #tpu.memory_space<vmem>>, %arg2: memref<32x64xbf16, #tpu.memory_space<vmem>>, %arg3: memref<1x64xf32, #tpu.memory_space<vmem>>, %arg4: memref<64x32xbf16, #tpu.memory_space<vmem>>, %arg5: memref<1x32xf32, #tpu.memory_space<vmem>>, %arg6: memref<1x32xf32, #tpu.memory_space<vmem>>, %arg7: memref<1x32xf32, #tpu.memory_space<vmem>>, %arg8: memref<1x32xf32, #tpu.memory_space<vmem>>, %arg9: memref<1x32xf32, #tpu.memory_space<vmem>>, %arg10: memref<16x32xf32, #tpu.memory_space<vmem>>) attributes {dimension_semantics = [#tpu.dimension_semantics<parallel>], iteration_bounds = array<i64: 1>, scalar_prefetch = 0 : i64, scratch_operands = 0 : i64, tpu.core_type = #tpu.core_type<tc>, window_params = [{transform_indices = @transform_0, window_bounds = array<i64: 16, 32>}, {pipeline_mode = #tpu.pipeline_mode<synchronous>, transform_indices = @transform_1, window_bounds = array<i64: 32, 64>}, {pipeline_mode = #tpu.pipeline_mode<synchronous>, transform_indices = @transform_2, window_bounds = array<i64: 1, 64>}, {pipeline_mode = #tpu.pipeline_mode<synchronous>, transform_indices = @transform_3, window_bounds = array<i64: 64, 32>}, {pipeline_mode = #tpu.pipeline_mode<synchronous>, transform_indices = @transform_4, window_bounds = array<i64: 1, 32>}, {pipeline_mode = #tpu.pipeline_mode<synchronous>, transform_indices = @transform_5, window_bounds = array<i64: 1, 32>}, {pipeline_mode = #tpu.pipeline_mode<synchronous>, transform_indices = @transform_6, window_bounds = array<i64: 1, 32>}, {pipeline_mode = #tpu.pipeline_mode<synchronous>, transform_indices = @transform_7, window_bounds = array<i64: 1, 32>}, {pipeline_mode = #tpu.pipeline_mode<synchronous>, transform_indices = @transform_8, window_bounds = array<i64: 1, 32>}, {transform_indices = @transform_9, window_bounds = array<i64: 16, 32>}]} {
    %c0 = arith.constant 0 : index
    %c0_0 = arith.constant 0 : index
    %0 = vector.load %arg1[%c0, %c0_0] : memref<16x32xf32, #tpu.memory_space<vmem>>, vector<16x32xf32>
    %c0_1 = arith.constant 0 : index
    %c0_2 = arith.constant 0 : index
    %1 = vector.load %arg2[%c0_1, %c0_2] : memref<32x64xbf16, #tpu.memory_space<vmem>>, vector<32x64xbf16>
    %2 = arith.truncf %0 : vector<16x32xf32> to vector<16x32xbf16>
    %cst = arith.constant dense<0.000000e+00> : vector<16x64xf32>
    %3 = tpu.matmul %2, %1, %cst {dimension_numbers = #tpu.dot_dimension_numbers<[1], [0], [0], [1], [0, 0, 1, 1], [], []>} : vector<16x32xbf16>, vector<32x64xbf16>, vector<16x64xf32> -> vector<16x64xf32>
    %c0_3 = arith.constant 0 : index
    %c0_4 = arith.constant 0 : index
    %4 = vector.load %arg3[%c0_3, %c0_4] : memref<1x64xf32, #tpu.memory_space<vmem>>, vector<1x64xf32>
    %5 = vector.broadcast %4 : vector<1x64xf32> to vector<16x64xf32>
    %6 = arith.addf %3, %5 : vector<16x64xf32>
    %cst_5 = arith.constant 0.000000e+00 : f32
    %7 = vector.broadcast %cst_5 : f32 to vector<16x64xf32>
    %8 = arith.maximumf %6, %7 : vector<16x64xf32>
    %c0_6 = arith.constant 0 : index
    %c0_7 = arith.constant 0 : index
    %9 = vector.load %arg4[%c0_6, %c0_7] : memref<64x32xbf16, #tpu.memory_space<vmem>>, vector<64x32xbf16>
    %10 = arith.truncf %8 : vector<16x64xf32> to vector<16x64xbf16>
    %cst_8 = arith.constant dense<0.000000e+00> : vector<16x32xf32>
    %11 = tpu.matmul %10, %9, %cst_8 {dimension_numbers = #tpu.dot_dimension_numbers<[1], [0], [0], [1], [0, 0, 1, 1], [], []>} : vector<16x64xbf16>, vector<64x32xbf16>, vector<16x32xf32> -> vector<16x32xf32>
    %c0_9 = arith.constant 0 : index
    %c0_10 = arith.constant 0 : index
    %12 = vector.load %arg5[%c0_9, %c0_10] : memref<1x32xf32, #tpu.memory_space<vmem>>, vector<1x32xf32>
    %13 = vector.broadcast %12 : vector<1x32xf32> to vector<16x32xf32>
    %14 = arith.addf %11, %13 : vector<16x32xf32>
    %15 = arith.addf %0, %14 : vector<16x32xf32>
    %c0_11 = arith.constant 0 : index
    %c0_12 = arith.constant 0 : index
    %16 = vector.load %arg6[%c0_11, %c0_12] : memref<1x32xf32, #tpu.memory_space<vmem>>, vector<1x32xf32>
    %c0_13 = arith.constant 0 : index
    %c0_14 = arith.constant 0 : index
    %17 = vector.load %arg7[%c0_13, %c0_14] : memref<1x32xf32, #tpu.memory_space<vmem>>, vector<1x32xf32>
    %cst_15 = arith.constant dense<0.000000e+00> : vector<16xf32>
    %18 = vector.multi_reduction <add>, %15, %cst_15 [1] : vector<16x32xf32> to vector<16xf32>
    %19 = vector.shape_cast %18 : vector<16xf32> to vector<16x1xf32>
    %cst_16 = arith.constant 3.200000e+01 : f32
    %20 = vector.broadcast %cst_16 : f32 to vector<16x1xf32>
    %21 = arith.divf %19, %20 : vector<16x1xf32>
    %22 = vector.broadcast %21 : vector<16x1xf32> to vector<16x32xf32>
    %23 = arith.subf %15, %22 : vector<16x32xf32>
    %24 = arith.mulf %23, %23 : vector<16x32xf32>
    %cst_17 = arith.constant dense<0.000000e+00> : vector<16xf32>
    %25 = vector.multi_reduction <add>, %24, %cst_17 [1] : vector<16x32xf32> to vector<16xf32>
    %26 = vector.shape_cast %25 : vector<16xf32> to vector<16x1xf32>
    %cst_18 = arith.constant 3.200000e+01 : f32
    %27 = vector.broadcast %cst_18 : f32 to vector<16x1xf32>
    %28 = arith.divf %26, %27 : vector<16x1xf32>
    %29 = vector.broadcast %21 : vector<16x1xf32> to vector<16x32xf32>
    %30 = arith.subf %15, %29 : vector<16x32xf32>
    %cst_19 = arith.constant 9.99999974E-6 : f32
    %31 = vector.broadcast %cst_19 : f32 to vector<16x1xf32>
    %32 = arith.addf %28, %31 : vector<16x1xf32>
    %33 = math.rsqrt %32 : vector<16x1xf32>
    %34 = vector.broadcast %33 : vector<16x1xf32> to vector<16x32xf32>
    %35 = arith.mulf %30, %34 : vector<16x32xf32>
    %36 = vector.broadcast %16 : vector<1x32xf32> to vector<16x32xf32>
    %37 = arith.mulf %35, %36 : vector<16x32xf32>
    %38 = vector.broadcast %17 : vector<1x32xf32> to vector<16x32xf32>
    %39 = arith.addf %37, %38 : vector<16x32xf32>
    %c0_20 = arith.constant 0 : index
    %c0_21 = arith.constant 0 : index
    %40 = vector.load %arg10[%c0_20, %c0_21] : memref<16x32xf32, #tpu.memory_space<vmem>>, vector<16x32xf32>
    tpu.vector_store %arg10[%c0_20, %c0_21], %39 {strides = array<i32>} : memref<16x32xf32, #tpu.memory_space<vmem>>, vector<16x32xf32>,
    return
  }
  func.func @transform_0(%arg0: i32) -> (i32, i32) {
    %c0_i32 = arith.constant 0 : i32
    %c0_i32_0 = arith.constant 0 : i32
    return %arg0, %c0_i32 : i32, i32
  }
  func.func @transform_1(%arg0: i32) -> (i32, i32) {
    %c0_i32 = arith.constant 0 : i32
    %c0_i32_0 = arith.constant 0 : i32
    %c0_i32_1 = arith.constant 0 : i32
    return %c0_i32, %c0_i32_0 : i32, i32
  }
  func.func @transform_2(%arg0: i32) -> (i32, i32) {
    %c0_i32 = arith.constant 0 : i32
    %c0_i32_0 = arith.constant 0 : i32
    %c0_i32_1 = arith.constant 0 : i32
    return %c0_i32, %c0_i32_0 : i32, i32
  }
  func.func @transform_3(%arg0: i32) -> (i32, i32) {
    %c0_i32 = arith.constant 0 : i32
    %c0_i32_0 = arith.constant 0 : i32
    %c0_i32_1 = arith.constant 0 : i32
    return %c0_i32, %c0_i32_0 : i32, i32
  }
  func.func @transform_4(%arg0: i32) -> (i32, i32) {
    %c0_i32 = arith.constant 0 : i32
    %c0_i32_0 = arith.constant 0 : i32
    %c0_i32_1 = arith.constant 0 : i32
    return %c0_i32, %c0_i32_0 : i32, i32
  }
  func.func @transform_5(%arg0: i32) -> (i32, i32) {
    %c0_i32 = arith.constant 0 : i32
    %c0_i32_0 = arith.constant 0 : i32
    %c0_i32_1 = arith.constant 0 : i32
    return %c0_i32, %c0_i32_0 : i32, i32
  }
  func.func @transform_6(%arg0: i32) -> (i32, i32) {
    %c0_i32 = arith.constant 0 : i32
    %c0_i32_0 = arith.constant 0 : i32
    %c0_i32_1 = arith.constant 0 : i32
    return %c0_i32, %c0_i32_0 : i32, i32
  }
  func.func @transform_7(%arg0: i32) -> (i32, i32) {
    %c0_i32 = arith.constant 0 : i32
    %c0_i32_0 = arith.constant 0 : i32
    %c0_i32_1 = arith.constant 0 : i32
    return %c0_i32, %c0_i32_0 : i32, i32
  }
  func.func @transform_8(%arg0: i32) -> (i32, i32) {
    %c0_i32 = arith.constant 0 : i32
    %c0_i32_0 = arith.constant 0 : i32
    %c0_i32_1 = arith.constant 0 : i32
    return %c0_i32, %c0_i32_0 : i32, i32
  }
  func.func @transform_9(%arg0: i32) -> (i32, i32) {
    %c0_i32 = arith.constant 0 : i32
    %c0_i32_0 = arith.constant 0 : i32
    return %arg0, %c0_i32 : i32, i32
  }
}

module attributes {stable_mosaic.version = 11 : i64} {
  func.func @_ffn_ln_kernel(%arg0: i32, %arg1: memref<16x32xf32, #tpu.memory_space<vmem>>, %arg2: memref<32x64xbf16, #tpu.memory_space<vmem>>, %arg3: memref<1x64xf32, #tpu.memory_space<vmem>>, %arg4: memref<64x32xbf16, #tpu.memory_space<vmem>>, %arg5: memref<1x32xf32, #tpu.memory_space<vmem>>, %arg6: memref<1x32xf32, #tpu.memory_space<vmem>>, %arg7: memref<1x32xf32, #tpu.memory_space<vmem>>, %arg8: memref<1x32xf32, #tpu.memory_space<vmem>>, %arg9: memref<1x32xf32, #tpu.memory_space<vmem>>, %arg10: memref<16x32xf32, #tpu.memory_space<vmem>>) attributes {dimension_semantics = [#tpu.dimension_semantics<parallel>], iteration_bounds = array<i64: 1>, scalar_prefetch = 0 : i64, scratch_operands = 0 : i64, tpu.core_type = #tpu.core_type<tc>, window_params = [{transform_indices = @transform_0, window_bounds = array<i64: 16, 32>}, {pipeline_mode = #tpu.pipeline_mode<synchronous>, transform_indices = @transform_1, window_bounds = array<i64: 32, 64>}, {pipeline_mode = #tpu.pipeline_mode<synchronous>, transform_indices = @transform_2, window_bounds = array<i64: 1, 64>}, {pipeline_mode = #tpu.pipeline_mode<synchronous>, transform_indices = @transform_3, window_bounds = array<i64: 64, 32>}, {pipeline_mode = #tpu.pipeline_mode<synchronous>, transform_indices = @transform_4, window_bounds = array<i64: 1, 32>}, {pipeline_mode = #tpu.pipeline_mode<synchronous>, transform_indices = @transform_5, window_bounds = array<i64: 1, 32>}, {pipeline_mode = #tpu.pipeline_mode<synchronous>, transform_indices = @transform_6, window_bounds = array<i64: 1, 32>}, {pipeline_mode = #tpu.pipeline_mode<synchronous>, transform_indices = @transform_7, window_bounds = array<i64: 1, 32>}, {pipeline_mode = #tpu.pipeline_mode<synchronous>, transform_indices = @transform_8, window_bounds = array<i64: 1, 32>}, {transform_indices = @transform_9, window_bounds = array<i64: 16, 32>}]} {
    %c0 = arith.constant 0 : index
    %c0_0 = arith.constant 0 : index
    %0 = vector.load %arg1[%c0, %c0_0] : memref<16x32xf32, #tpu.memory_space<vmem>>, vector<16x32xf32>
    %c0_1 = arith.constant 0 : index
    %c0_2 = arith.constant 0 : index
    %1 = vector.load %arg2[%c0_1, %c0_2] : memref<32x64xbf16, #tpu.memory_space<vmem>>, vector<32x64xbf16>
    %2 = arith.truncf %0 : vector<16x32xf32> to vector<16x32xbf16>
    %cst = arith.constant dense<0.000000e+00> : vector<16x64xf32>
    %3 = tpu.matmul %2, %1, %cst {dimension_numbers = #tpu.dot_dimension_numbers<[1], [0], [0], [1], [0, 0, 1, 1], [], []>} : vector<16x32xbf16>, vector<32x64xbf16>, vector<16x64xf32> -> vector<16x64xf32>
    %c0_3 = arith.constant 0 : index
    %c0_4 = arith.constant 0 : index
    %4 = vector.load %arg3[%c0_3, %c0_4] : memref<1x64xf32, #tpu.memory_space<vmem>>, vector<1x64xf32>
    %5 = vector.broadcast %4 : vector<1x64xf32> to vector<16x64xf32>
    %6 = arith.addf %3, %5 : vector<16x64xf32>
    %cst_5 = arith.constant 0.000000e+00 : f32
    %7 = vector.broadcast %cst_5 : f32 to vector<16x64xf32>
    %8 = arith.maximumf %6, %7 : vector<16x64xf32>
    %c0_6 = arith.constant 0 : index
    %c0_7 = arith.constant 0 : index
    %9 = vector.load %arg4[%c0_6, %c0_7] : memref<64x32xbf16, #tpu.memory_space<vmem>>, vector<64x32xbf16>
    %10 = arith.truncf %8 : vector<16x64xf32> to vector<16x64xbf16>
    %cst_8 = arith.constant dense<0.000000e+00> : vector<16x32xf32>
    %11 = tpu.matmul %10, %9, %cst_8 {dimension_numbers = #tpu.dot_dimension_numbers<[1], [0], [0], [1], [0, 0, 1, 1], [], []>} : vector<16x64xbf16>, vector<64x32xbf16>, vector<16x32xf32> -> vector<16x32xf32>
    %c0_9 = arith.constant 0 : index
    %c0_10 = arith.constant 0 : index
    %12 = vector.load %arg5[%c0_9, %c0_10] : memref<1x32xf32, #tpu.memory_space<vmem>>, vector<1x32xf32>
    %13 = vector.broadcast %12 : vector<1x32xf32> to vector<16x32xf32>
    %14 = arith.addf %11, %13 : vector<16x32xf32>
    %15 = arith.addf %0, %14 : vector<16x32xf32>
    %c0_11 = arith.constant 0 : index
    %c0_12 = arith.constant 0 : index
    %16 = vector.load %arg6[%c0_11, %c0_12] : memref<1x32xf32, #tpu.memory_space<vmem>>, vector<1x32xf32>
    %c0_13 = arith.constant 0 : index
    %c0_14 = arith.constant 0 : index
    %17 = vector.load %arg7[%c0_13, %c0_14] : memref<1x32xf32, #tpu.memory_space<vmem>>, vector<1x32xf32>
    %cst_15 = arith.constant dense<0.000000e+00> : vector<16xf32>
    %18 = vector.multi_reduction <add>, %15, %cst_15 [1] : vector<16x32xf32> to vector<16xf32>
    %19 = vector.shape_cast %18 : vector<16xf32> to vector<16x1xf32>
    %cst_16 = arith.constant 3.200000e+01 : f32
    %20 = vector.broadcast %cst_16 : f32 to vector<16x1xf32>
    %21 = arith.divf %19, %20 : vector<16x1xf32>
    %22 = vector.broadcast %21 : vector<16x1xf32> to vector<16x32xf32>
    %23 = arith.subf %15, %22 : vector<16x32xf32>
    %24 = arith.mulf %23, %23 : vector<16x32xf32>
    %cst_17 = arith.constant dense<0.000000e+00> : vector<16xf32>
    %25 = vector.multi_reduction <add>, %24, %cst_17 [1] : vector<16x32xf32> to vector<16xf32>
    %26 = vector.shape_cast %25 : vector<16xf32> to vector<16x1xf32>
    %cst_18 = arith.constant 3.200000e+01 : f32
    %27 = vector.broadcast %cst_18 : f32 to vector<16x1xf32>
    %28 = arith.divf %26, %27 : vector<16x1xf32>
    %29 = vector.broadcast %21 : vector<16x1xf32> to vector<16x32xf32>
    %30 = arith.subf %15, %29 : vector<16x32xf32>
    %cst_19 = arith.constant 9.99999974E-6 : f32
    %31 = vector.broadcast %cst_19 : f32 to vector<16x1xf32>
    %32 = arith.addf %28, %31 : vector<16x1xf32>
    %33 = math.rsqrt %32 : vector<16x1xf32>
    %34 = vector.broadcast %33 : vector<16x1xf32> to vector<16x32xf32>
    %35 = arith.mulf %30, %34 : vector<16x32xf32>
    %36 = vector.broadcast %16 : vector<1x32xf32> to vector<16x32xf32>
    %37 = arith.mulf %35, %36 : vector<16x32xf32>
    %38 = vector.broadcast %17 : vector<1x32xf32> to vector<16x32xf32>
    %39 = arith.addf %37, %38 : vector<16x32xf32>
    %c0_20 = arith.constant 0 : index
    %c0_21 = arith.constant 0 : index
    %40 = vector.load %arg8[%c0_20, %c0_21] : memref<1x32xf32, #tpu.memory_space<vmem>>, vector<1x32xf32>
    %c0_22 = arith.constant 0 : index
    %c0_23 = arith.constant 0 : index
    %41 = vector.load %arg9[%c0_22, %c0_23] : memref<1x32xf32, #tpu.memory_space<vmem>>, vector<1x32xf32>
    %cst_24 = arith.constant dense<0.000000e+00> : vector<16xf32>
    %42 = vector.multi_reduction <add>, %39, %cst_24 [1] : vector<16x32xf32> to vector<16xf32>
    %43 = vector.shape_cast %42 : vector<16xf32> to vector<16x1xf32>
    %cst_25 = arith.constant 3.200000e+01 : f32
    %44 = vector.broadcast %cst_25 : f32 to vector<16x1xf32>
    %45 = arith.divf %43, %44 : vector<16x1xf32>
    %46 = vector.broadcast %45 : vector<16x1xf32> to vector<16x32xf32>
    %47 = arith.subf %39, %46 : vector<16x32xf32>
    %48 = arith.mulf %47, %47 : vector<16x32xf32>
    %cst_26 = arith.constant dense<0.000000e+00> : vector<16xf32>
    %49 = vector.multi_reduction <add>, %48, %cst_26 [1] : vector<16x32xf32> to vector<16xf32>
    %50 = vector.shape_cast %49 : vector<16xf32> to vector<16x1xf32>
    %cst_27 = arith.constant 3.200000e+01 : f32
    %51 = vector.broadcast %cst_27 : f32 to vector<16x1xf32>
    %52 = arith.divf %50, %51 : vector<16x1xf32>
    %53 = vector.broadcast %45 : vector<16x1xf32> to vector<16x32xf32>
    %54 = arith.subf %39, %53 : vector<16x32xf32>
    %cst_28 = arith.constant 9.99999974E-6 : f32
    %55 = vector.broadcast %cst_28 : f32 to vector<16x1xf32>
    %56 = arith.addf %52, %55 : vector<16x1xf32>
    %57 = math.rsqrt %56 : vector<16x1xf32>
    %58 = vector.broadcast %57 : vector<16x1xf32> to vector<16x32xf32>
    %59 = arith.mulf %54, %58 : vector<16x32xf32>
    %60 = vector.broadcast %40 : vector<1x32xf32> to vector<16x32xf32>
    %61 = arith.mulf %59, %60 : vector<16x32xf32>
    %62 = vector.broadcast %41 : vector<1x32xf32> to vector<16x32xf32>
    %63 = arith.addf %61, %62 : vector<16x32xf32>
    %c0_29 = arith.constant 0 : index
    %c0_30 = arith.constant 0 : index
    %64 = vector.load %arg10[%c0_29, %c0_30] : memref<16x32xf32, #tpu.memory_space<vmem>>, vector<16x32xf32>
    tpu.vector_store %arg10[%c0_29, %c0_30], %63 {strides = array<i32>} : memref<16x32xf32, #tpu.memory_space<vmem>>, vector<16x32xf32>,
    return
  }
  func.func @transform_0(%arg0: i32) -> (i32, i32) {
    %c0_i32 = arith.constant 0 : i32
    %c0_i32_0 = arith.constant 0 : i32
    return %arg0, %c0_i32 : i32, i32
  }
  func.func @transform_1(%arg0: i32) -> (i32, i32) {
    %c0_i32 = arith.constant 0 : i32
    %c0_i32_0 = arith.constant 0 : i32
    %c0_i32_1 = arith.constant 0 : i32
    return %c0_i32, %c0_i32_0 : i32, i32
  }
  func.func @transform_2(%arg0: i32) -> (i32, i32) {
    %c0_i32 = arith.constant 0 : i32
    %c0_i32_0 = arith.constant 0 : i32
    %c0_i32_1 = arith.constant 0 : i32
    return %c0_i32, %c0_i32_0 : i32, i32
  }
  func.func @transform_3(%arg0: i32) -> (i32, i32) {
    %c0_i32 = arith.constant 0 : i32
    %c0_i32_0 = arith.constant 0 : i32
    %c0_i32_1 = arith.constant 0 : i32
    return %c0_i32, %c0_i32_0 : i32, i32
  }
  func.func @transform_4(%arg0: i32) -> (i32, i32) {
    %c0_i32 = arith.constant 0 : i32
    %c0_i32_0 = arith.constant 0 : i32
    %c0_i32_1 = arith.constant 0 : i32
    return %c0_i32, %c0_i32_0 : i32, i32
  }
  func.func @transform_5(%arg0: i32) -> (i32, i32) {
    %c0_i32 = arith.constant 0 : i32
    %c0_i32_0 = arith.constant 0 : i32
    %c0_i32_1 = arith.constant 0 : i32
    return %c0_i32, %c0_i32_0 : i32, i32
  }
  func.func @transform_6(%arg0: i32) -> (i32, i32) {
    %c0_i32 = arith.constant 0 : i32
    %c0_i32_0 = arith.constant 0 : i32
    %c0_i32_1 = arith.constant 0 : i32
    return %c0_i32, %c0_i32_0 : i32, i32
  }
  func.func @transform_7(%arg0: i32) -> (i32, i32) {
    %c0_i32 = arith.constant 0 : i32
    %c0_i32_0 = arith.constant 0 : i32
    %c0_i32_1 = arith.constant 0 : i32
    return %c0_i32, %c0_i32_0 : i32, i32
  }
  func.func @transform_8(%arg0: i32) -> (i32, i32) {
    %c0_i32 = arith.constant 0 : i32
    %c0_i32_0 = arith.constant 0 : i32
    %c0_i32_1 = arith.constant 0 : i32
    return %c0_i32, %c0_i32_0 : i32, i32
  }
  func.func @transform_9(%arg0: i32) -> (i32, i32) {
    %c0_i32 = arith.constant 0 : i32
    %c0_i32_0 = arith.constant 0 : i32
    return %arg0, %c0_i32 : i32, i32
  }
}

module attributes {stable_mosaic.version = 11 : i64} {
  func.func @_self_attn_kernel(%arg0: i32, %arg1: memref<2x8x32xf32, #tpu.memory_space<vmem>>, %arg2: memref<32x96xbf16, #tpu.memory_space<vmem>>, %arg3: memref<1x96xf32, #tpu.memory_space<vmem>>, %arg4: memref<32x32xbf16, #tpu.memory_space<vmem>>, %arg5: memref<1x32xf32, #tpu.memory_space<vmem>>, %arg6: memref<1x32xf32, #tpu.memory_space<vmem>>, %arg7: memref<1x32xf32, #tpu.memory_space<vmem>>, %arg8: memref<2x8x32xf32, #tpu.memory_space<vmem>>) attributes {dimension_semantics = [#tpu.dimension_semantics<parallel>], iteration_bounds = array<i64: 1>, scalar_prefetch = 0 : i64, scratch_operands = 0 : i64, tpu.core_type = #tpu.core_type<tc>, window_params = [{transform_indices = @transform_0, window_bounds = array<i64: 2, 8, 32>}, {pipeline_mode = #tpu.pipeline_mode<synchronous>, transform_indices = @transform_1, window_bounds = array<i64: 32, 96>}, {pipeline_mode = #tpu.pipeline_mode<synchronous>, transform_indices = @transform_2, window_bounds = array<i64: 1, 96>}, {pipeline_mode = #tpu.pipeline_mode<synchronous>, transform_indices = @transform_3, window_bounds = array<i64: 32, 32>}, {pipeline_mode = #tpu.pipeline_mode<synchronous>, transform_indices = @transform_4, window_bounds = array<i64: 1, 32>}, {pipeline_mode = #tpu.pipeline_mode<synchronous>, transform_indices = @transform_5, window_bounds = array<i64: 1, 32>}, {pipeline_mode = #tpu.pipeline_mode<synchronous>, transform_indices = @transform_6, window_bounds = array<i64: 1, 32>}, {transform_indices = @transform_7, window_bounds = array<i64: 2, 8, 32>}]} {
    %c0 = arith.constant 0 : index
    %c0_0 = arith.constant 0 : index
    %c0_1 = arith.constant 0 : index
    %0 = vector.load %arg1[%c0, %c0_0, %c0_1] : memref<2x8x32xf32, #tpu.memory_space<vmem>>, vector<2x8x32xf32>
    %1 = vector.shape_cast %0 : vector<2x8x32xf32> to vector<16x32xf32>
    %c0_2 = arith.constant 0 : index
    %c0_3 = arith.constant 0 : index
    %2 = vector.load %arg2[%c0_2, %c0_3] : memref<32x96xbf16, #tpu.memory_space<vmem>>, vector<32x96xbf16>
    %3 = arith.truncf %1 : vector<16x32xf32> to vector<16x32xbf16>
    %cst = arith.constant dense<0.000000e+00> : vector<16x96xf32>
    %4 = tpu.matmul %3, %2, %cst {dimension_numbers = #tpu.dot_dimension_numbers<[1], [0], [0], [1], [0, 0, 1, 1], [], []>} : vector<16x32xbf16>, vector<32x96xbf16>, vector<16x96xf32> -> vector<16x96xf32>
    %c0_4 = arith.constant 0 : index
    %c0_5 = arith.constant 0 : index
    %5 = vector.load %arg3[%c0_4, %c0_5] : memref<1x96xf32, #tpu.memory_space<vmem>>, vector<1x96xf32>
    %6 = vector.broadcast %5 : vector<1x96xf32> to vector<16x96xf32>
    %7 = arith.addf %4, %6 : vector<16x96xf32>
    %8 = vector.extract_strided_slice %7 {offsets = [0, 0], sizes = [16, 32], strides = [1, 1]} : vector<16x96xf32> to vector<16x32xf32>
    %9 = vector.extract_strided_slice %7 {offsets = [0, 32], sizes = [16, 32], strides = [1, 1]} : vector<16x96xf32> to vector<16x32xf32>
    %10 = vector.extract_strided_slice %7 {offsets = [0, 64], sizes = [16, 32], strides = [1, 1]} : vector<16x96xf32> to vector<16x32xf32>
    %c0_6 = arith.constant 0 : index
    %c0_7 = arith.constant 0 : index
    %11 = vector.load %arg4[%c0_6, %c0_7] : memref<32x32xbf16, #tpu.memory_space<vmem>>, vector<32x32xbf16>
    %c0_8 = arith.constant 0 : index
    %c0_9 = arith.constant 0 : index
    %12 = vector.load %arg5[%c0_8, %c0_9] : memref<1x32xf32, #tpu.memory_space<vmem>>, vector<1x32xf32>
    %c0_10 = arith.constant 0 : index
    %c0_11 = arith.constant 0 : index
    %13 = vector.load %arg6[%c0_10, %c0_11] : memref<1x32xf32, #tpu.memory_space<vmem>>, vector<1x32xf32>
    %c0_12 = arith.constant 0 : index
    %c0_13 = arith.constant 0 : index
    %14 = vector.load %arg7[%c0_12, %c0_13] : memref<1x32xf32, #tpu.memory_space<vmem>>, vector<1x32xf32>
    %15 = vector.extract_strided_slice %8 {offsets = [0, 0], sizes = [8, 32], strides = [1, 1]} : vector<16x32xf32> to vector<8x32xf32>
    %16 = vector.shape_cast %15 : vector<8x32xf32> to vector<8x4x8xf32>
    %17 = tpu.transpose %16, [1, 0, 2] : vector<8x4x8xf32> -> vector<4x8x8xf32>
    %18 = arith.truncf %17 : vector<4x8x8xf32> to vector<4x8x8xbf16>
    %19 = vector.extract_strided_slice %9 {offsets = [0, 0], sizes = [8, 32], strides = [1, 1]} : vector<16x32xf32> to vector<8x32xf32>
    %20 = vector.shape_cast %19 : vector<8x32xf32> to vector<8x4x8xf32>
    %21 = tpu.transpose %20, [1, 0, 2] : vector<8x4x8xf32> -> vector<4x8x8xf32>
    %22 = arith.truncf %21 : vector<4x8x8xf32> to vector<4x8x8xbf16>
    %23 = vector.extract_strided_slice %10 {offsets = [0, 0], sizes = [8, 32], strides = [1, 1]} : vector<16x32xf32> to vector<8x32xf32>
    %24 = vector.shape_cast %23 : vector<8x32xf32> to vector<8x4x8xf32>
    %25 = tpu.transpose %24, [1, 0, 2] : vector<8x4x8xf32> -> vector<4x8x8xf32>
    %26 = arith.truncf %25 : vector<4x8x8xf32> to vector<4x8x8xbf16>
    "tpu.trace_start"() <{level = 10 : i32, message = "hqd,hkd->hqk"}> : () -> ()
    %cst_14 = arith.constant dense<0.000000e+00> : vector<4x8x8xf32>
    %27 = tpu.matmul %18, %22, %cst_14 {dimension_numbers = #tpu.dot_dimension_numbers<[2], [2], [1], [1], [0, 0, 0, 1, 1, 1], [0], [0]>} : vector<4x8x8xbf16>, vector<4x8x8xbf16>, vector<4x8x8xf32> -> vector<4x8x8xf32>
    "tpu.trace_stop"() : () -> ()
    %cst_15 = arith.constant dense<0xFF800000> : vector<4x8xf32>
    %28 = vector.multi_reduction <maximumf>, %27, %cst_15 [2] : vector<4x8x8xf32> to vector<4x8xf32>
    %29 = vector.shape_cast %28 : vector<4x8xf32> to vector<4x8x1xf32>
    %30 = vector.broadcast %29 : vector<4x8x1xf32> to vector<4x8x8xf32>
    %31 = arith.subf %27, %30 : vector<4x8x8xf32>
    %32 = math.exp %31 : vector<4x8x8xf32>
    %cst_16 = arith.constant dense<0.000000e+00> : vector<4x8xf32>
    %33 = vector.multi_reduction <add>, %32, %cst_16 [2] : vector<4x8x8xf32> to vector<4x8xf32>
    %34 = vector.shape_cast %33 : vector<4x8xf32> to vector<4x8x1xf32>
    %35 = tpu.reciprocal %34 {approx = true} : vector<4x8x1xf32> -> vector<4x8x1xf32>
    %36 = vector.broadcast %35 : vector<4x8x1xf32> to vector<4x8x8xf32>
    %37 = arith.mulf %32, %36 : vector<4x8x8xf32>
    %38 = arith.truncf %37 : vector<4x8x8xf32> to vector<4x8x8xbf16>
    "tpu.trace_start"() <{level = 10 : i32, message = "hqk,hkd->hqd"}> : () -> ()
    %cst_17 = arith.constant dense<0.000000e+00> : vector<4x8x8xf32>
    %39 = tpu.matmul %38, %26, %cst_17 {dimension_numbers = #tpu.dot_dimension_numbers<[2], [1], [1], [2], [0, 0, 0, 1, 1, 2], [0], [0]>} : vector<4x8x8xbf16>, vector<4x8x8xbf16>, vector<4x8x8xf32> -> vector<4x8x8xf32>
    "tpu.trace_stop"() : () -> ()
    %40 = tpu.transpose %39, [1, 0, 2] : vector<4x8x8xf32> -> vector<8x4x8xf32>
    %41 = vector.shape_cast %40 : vector<8x4x8xf32> to vector<8x32xf32>
    %42 = vector.extract_strided_slice %8 {offsets = [8, 0], sizes = [8, 32], strides = [1, 1]} : vector<16x32xf32> to vector<8x32xf32>
    %43 = vector.shape_cast %42 : vector<8x32xf32> to vector<8x4x8xf32>
    %44 = tpu.transpose %43, [1, 0, 2] : vector<8x4x8xf32> -> vector<4x8x8xf32>
    %45 = arith.truncf %44 : vector<4x8x8xf32> to vector<4x8x8xbf16>
    %46 = vector.extract_strided_slice %9 {offsets = [8, 0], sizes = [8, 32], strides = [1, 1]} : vector<16x32xf32> to vector<8x32xf32>
    %47 = vector.shape_cast %46 : vector<8x32xf32> to vector<8x4x8xf32>
    %48 = tpu.transpose %47, [1, 0, 2] : vector<8x4x8xf32> -> vector<4x8x8xf32>
    %49 = arith.truncf %48 : vector<4x8x8xf32> to vector<4x8x8xbf16>
    %50 = vector.extract_strided_slice %10 {offsets = [8, 0], sizes = [8, 32], strides = [1, 1]} : vector<16x32xf32> to vector<8x32xf32>
    %51 = vector.shape_cast %50 : vector<8x32xf32> to vector<8x4x8xf32>
    %52 = tpu.transpose %51, [1, 0, 2] : vector<8x4x8xf32> -> vector<4x8x8xf32>
    %53 = arith.truncf %52 : vector<4x8x8xf32> to vector<4x8x8xbf16>
    "tpu.trace_start"() <{level = 10 : i32, message = "hqd,hkd->hqk"}> : () -> ()
    %cst_18 = arith.constant dense<0.000000e+00> : vector<4x8x8xf32>
    %54 = tpu.matmul %45, %49, %cst_18 {dimension_numbers = #tpu.dot_dimension_numbers<[2], [2], [1], [1], [0, 0, 0, 1, 1, 1], [0], [0]>} : vector<4x8x8xbf16>, vector<4x8x8xbf16>, vector<4x8x8xf32> -> vector<4x8x8xf32>
    "tpu.trace_stop"() : () -> ()
    %cst_19 = arith.constant dense<0xFF800000> : vector<4x8xf32>
    %55 = vector.multi_reduction <maximumf>, %54, %cst_19 [2] : vector<4x8x8xf32> to vector<4x8xf32>
    %56 = vector.shape_cast %55 : vector<4x8xf32> to vector<4x8x1xf32>
    %57 = vector.broadcast %56 : vector<4x8x1xf32> to vector<4x8x8xf32>
    %58 = arith.subf %54, %57 : vector<4x8x8xf32>
    %59 = math.exp %58 : vector<4x8x8xf32>
    %cst_20 = arith.constant dense<0.000000e+00> : vector<4x8xf32>
    %60 = vector.multi_reduction <add>, %59, %cst_20 [2] : vector<4x8x8xf32> to vector<4x8xf32>
    %61 = vector.shape_cast %60 : vector<4x8xf32> to vector<4x8x1xf32>
    %62 = tpu.reciprocal %61 {approx = true} : vector<4x8x1xf32> -> vector<4x8x1xf32>
    %63 = vector.broadcast %62 : vector<4x8x1xf32> to vector<4x8x8xf32>
    %64 = arith.mulf %59, %63 : vector<4x8x8xf32>
    %65 = arith.truncf %64 : vector<4x8x8xf32> to vector<4x8x8xbf16>
    "tpu.trace_start"() <{level = 10 : i32, message = "hqk,hkd->hqd"}> : () -> ()
    %cst_21 = arith.constant dense<0.000000e+00> : vector<4x8x8xf32>
    %66 = tpu.matmul %65, %53, %cst_21 {dimension_numbers = #tpu.dot_dimension_numbers<[2], [1], [1], [2], [0, 0, 0, 1, 1, 2], [0], [0]>} : vector<4x8x8xbf16>, vector<4x8x8xbf16>, vector<4x8x8xf32> -> vector<4x8x8xf32>
    "tpu.trace_stop"() : () -> ()
    %67 = tpu.transpose %66, [1, 0, 2] : vector<4x8x8xf32> -> vector<8x4x8xf32>
    %68 = vector.shape_cast %67 : vector<8x4x8xf32> to vector<8x32xf32>
    %69 = tpu.concatenate %41, %68 in 0 : vector<8x32xf32>, vector<8x32xf32> -> vector<16x32xf32>
    %70 = arith.truncf %69 : vector<16x32xf32> to vector<16x32xbf16>
    %cst_22 = arith.constant dense<0.000000e+00> : vector<16x32xf32>
    %71 = tpu.matmul %70, %11, %cst_22 {dimension_numbers = #tpu.dot_dimension_numbers<[1], [0], [0], [1], [0, 0, 1, 1], [], []>} : vector<16x32xbf16>, vector<32x32xbf16>, vector<16x32xf32> -> vector<16x32xf32>
    %72 = vector.broadcast %12 : vector<1x32xf32> to vector<16x32xf32>
    %73 = arith.addf %71, %72 : vector<16x32xf32>
    %74 = arith.addf %1, %73 : vector<16x32xf32>
    %cst_23 = arith.constant dense<0.000000e+00> : vector<16xf32>
    %75 = vector.multi_reduction <add>, %74, %cst_23 [1] : vector<16x32xf32> to vector<16xf32>
    %76 = vector.shape_cast %75 : vector<16xf32> to vector<16x1xf32>
    %cst_24 = arith.constant 3.200000e+01 : f32
    %77 = vector.broadcast %cst_24 : f32 to vector<16x1xf32>
    %78 = arith.divf %76, %77 : vector<16x1xf32>
    %79 = vector.broadcast %78 : vector<16x1xf32> to vector<16x32xf32>
    %80 = arith.subf %74, %79 : vector<16x32xf32>
    %81 = arith.mulf %80, %80 : vector<16x32xf32>
    %cst_25 = arith.constant dense<0.000000e+00> : vector<16xf32>
    %82 = vector.multi_reduction <add>, %81, %cst_25 [1] : vector<16x32xf32> to vector<16xf32>
    %83 = vector.shape_cast %82 : vector<16xf32> to vector<16x1xf32>
    %cst_26 = arith.constant 3.200000e+01 : f32
    %84 = vector.broadcast %cst_26 : f32 to vector<16x1xf32>
    %85 = arith.divf %83, %84 : vector<16x1xf32>
    %86 = vector.broadcast %78 : vector<16x1xf32> to vector<16x32xf32>
    %87 = arith.subf %74, %86 : vector<16x32xf32>
    %cst_27 = arith.constant 9.99999974E-6 : f32
    %88 = vector.broadcast %cst_27 : f32 to vector<16x1xf32>
    %89 = arith.addf %85, %88 : vector<16x1xf32>
    %90 = math.rsqrt %89 : vector<16x1xf32>
    %91 = vector.broadcast %90 : vector<16x1xf32> to vector<16x32xf32>
    %92 = arith.mulf %87, %91 : vector<16x32xf32>
    %93 = vector.broadcast %13 : vector<1x32xf32> to vector<16x32xf32>
    %94 = arith.mulf %92, %93 : vector<16x32xf32>
    %95 = vector.broadcast %14 : vector<1x32xf32> to vector<16x32xf32>
    %96 = arith.addf %94, %95 : vector<16x32xf32>
    %97 = vector.shape_cast %96 : vector<16x32xf32> to vector<2x8x32xf32>
    %c0_28 = arith.constant 0 : index
    %c0_29 = arith.constant 0 : index
    %c0_30 = arith.constant 0 : index
    %98 = vector.load %arg8[%c0_28, %c0_29, %c0_30] : memref<2x8x32xf32, #tpu.memory_space<vmem>>, vector<2x8x32xf32>
    tpu.vector_store %arg8[%c0_28, %c0_29, %c0_30], %97 {strides = array<i32>} : memref<2x8x32xf32, #tpu.memory_space<vmem>>, vector<2x8x32xf32>,
    return
  }
  func.func @transform_0(%arg0: i32) -> (i32, i32, i32) {
    %c0_i32 = arith.constant 0 : i32
    %c0_i32_0 = arith.constant 0 : i32
    %c0_i32_1 = arith.constant 0 : i32
    return %arg0, %c0_i32, %c0_i32_0 : i32, i32, i32
  }
  func.func @transform_1(%arg0: i32) -> (i32, i32) {
    %c0_i32 = arith.constant 0 : i32
    %c0_i32_0 = arith.constant 0 : i32
    %c0_i32_1 = arith.constant 0 : i32
    return %c0_i32, %c0_i32_0 : i32, i32
  }
  func.func @transform_2(%arg0: i32) -> (i32, i32) {
    %c0_i32 = arith.constant 0 : i32
    %c0_i32_0 = arith.constant 0 : i32
    %c0_i32_1 = arith.constant 0 : i32
    return %c0_i32, %c0_i32_0 : i32, i32
  }
  func.func @transform_3(%arg0: i32) -> (i32, i32) {
    %c0_i32 = arith.constant 0 : i32
    %c0_i32_0 = arith.constant 0 : i32
    %c0_i32_1 = arith.constant 0 : i32
    return %c0_i32, %c0_i32_0 : i32, i32
  }
  func.func @transform_4(%arg0: i32) -> (i32, i32) {
    %c0_i32 = arith.constant 0 : i32
    %c0_i32_0 = arith.constant 0 : i32
    %c0_i32_1 = arith.constant 0 : i32
    return %c0_i32, %c0_i32_0 : i32, i32
  }
  func.func @transform_5(%arg0: i32) -> (i32, i32) {
    %c0_i32 = arith.constant 0 : i32
    %c0_i32_0 = arith.constant 0 : i32
    %c0_i32_1 = arith.constant 0 : i32
    return %c0_i32, %c0_i32_0 : i32, i32
  }
  func.func @transform_6(%arg0: i32) -> (i32, i32) {
    %c0_i32 = arith.constant 0 : i32
    %c0_i32_0 = arith.constant 0 : i32
    %c0_i32_1 = arith.constant 0 : i32
    return %c0_i32, %c0_i32_0 : i32, i32
  }
  func.func @transform_7(%arg0: i32) -> (i32, i32, i32) {
    %c0_i32 = arith.constant 0 : i32
    %c0_i32_0 = arith.constant 0 : i32
    %c0_i32_1 = arith.constant 0 : i32
    return %arg0, %c0_i32, %c0_i32_0 : i32, i32, i32
  }
}

module attributes {stable_mosaic.version = 11 : i64} {
  func.func @_cross_attn_kernel(%arg0: i32, %arg1: memref<2x8x32xf32, #tpu.memory_space<vmem>>, %arg2: memref<2x8x32xf32, #tpu.memory_space<vmem>>, %arg3: memref<32x32xbf16, #tpu.memory_space<vmem>>, %arg4: memref<1x32xf32, #tpu.memory_space<vmem>>, %arg5: memref<32x64xbf16, #tpu.memory_space<vmem>>, %arg6: memref<1x64xf32, #tpu.memory_space<vmem>>, %arg7: memref<32x32xbf16, #tpu.memory_space<vmem>>, %arg8: memref<1x32xf32, #tpu.memory_space<vmem>>, %arg9: memref<1x32xf32, #tpu.memory_space<vmem>>, %arg10: memref<1x32xf32, #tpu.memory_space<vmem>>, %arg11: memref<2x8x32xf32, #tpu.memory_space<vmem>>) attributes {dimension_semantics = [#tpu.dimension_semantics<parallel>], iteration_bounds = array<i64: 1>, scalar_prefetch = 0 : i64, scratch_operands = 0 : i64, tpu.core_type = #tpu.core_type<tc>, window_params = [{transform_indices = @transform_0, window_bounds = array<i64: 2, 8, 32>}, {transform_indices = @transform_1, window_bounds = array<i64: 2, 8, 32>}, {pipeline_mode = #tpu.pipeline_mode<synchronous>, transform_indices = @transform_2, window_bounds = array<i64: 32, 32>}, {pipeline_mode = #tpu.pipeline_mode<synchronous>, transform_indices = @transform_3, window_bounds = array<i64: 1, 32>}, {pipeline_mode = #tpu.pipeline_mode<synchronous>, transform_indices = @transform_4, window_bounds = array<i64: 32, 64>}, {pipeline_mode = #tpu.pipeline_mode<synchronous>, transform_indices = @transform_5, window_bounds = array<i64: 1, 64>}, {pipeline_mode = #tpu.pipeline_mode<synchronous>, transform_indices = @transform_6, window_bounds = array<i64: 32, 32>}, {pipeline_mode = #tpu.pipeline_mode<synchronous>, transform_indices = @transform_7, window_bounds = array<i64: 1, 32>}, {pipeline_mode = #tpu.pipeline_mode<synchronous>, transform_indices = @transform_8, window_bounds = array<i64: 1, 32>}, {pipeline_mode = #tpu.pipeline_mode<synchronous>, transform_indices = @transform_9, window_bounds = array<i64: 1, 32>}, {transform_indices = @transform_10, window_bounds = array<i64: 2, 8, 32>}]} {
    %c0 = arith.constant 0 : index
    %c0_0 = arith.constant 0 : index
    %c0_1 = arith.constant 0 : index
    %0 = vector.load %arg1[%c0, %c0_0, %c0_1] : memref<2x8x32xf32, #tpu.memory_space<vmem>>, vector<2x8x32xf32>
    %1 = vector.shape_cast %0 : vector<2x8x32xf32> to vector<16x32xf32>
    %c0_2 = arith.constant 0 : index
    %c0_3 = arith.constant 0 : index
    %c0_4 = arith.constant 0 : index
    %2 = vector.load %arg2[%c0_2, %c0_3, %c0_4] : memref<2x8x32xf32, #tpu.memory_space<vmem>>, vector<2x8x32xf32>
    %3 = vector.shape_cast %2 : vector<2x8x32xf32> to vector<16x32xf32>
    %c0_5 = arith.constant 0 : index
    %c0_6 = arith.constant 0 : index
    %4 = vector.load %arg3[%c0_5, %c0_6] : memref<32x32xbf16, #tpu.memory_space<vmem>>, vector<32x32xbf16>
    %5 = arith.truncf %1 : vector<16x32xf32> to vector<16x32xbf16>
    %cst = arith.constant dense<0.000000e+00> : vector<16x32xf32>
    %6 = tpu.matmul %5, %4, %cst {dimension_numbers = #tpu.dot_dimension_numbers<[1], [0], [0], [1], [0, 0, 1, 1], [], []>} : vector<16x32xbf16>, vector<32x32xbf16>, vector<16x32xf32> -> vector<16x32xf32>
    %c0_7 = arith.constant 0 : index
    %c0_8 = arith.constant 0 : index
    %7 = vector.load %arg4[%c0_7, %c0_8] : memref<1x32xf32, #tpu.memory_space<vmem>>, vector<1x32xf32>
    %8 = vector.broadcast %7 : vector<1x32xf32> to vector<16x32xf32>
    %9 = arith.addf %6, %8 : vector<16x32xf32>
    %c0_9 = arith.constant 0 : index
    %c0_10 = arith.constant 0 : index
    %10 = vector.load %arg5[%c0_9, %c0_10] : memref<32x64xbf16, #tpu.memory_space<vmem>>, vector<32x64xbf16>
    %11 = arith.truncf %3 : vector<16x32xf32> to vector<16x32xbf16>
    %cst_11 = arith.constant dense<0.000000e+00> : vector<16x64xf32>
    %12 = tpu.matmul %11, %10, %cst_11 {dimension_numbers = #tpu.dot_dimension_numbers<[1], [0], [0], [1], [0, 0, 1, 1], [], []>} : vector<16x32xbf16>, vector<32x64xbf16>, vector<16x64xf32> -> vector<16x64xf32>
    %c0_12 = arith.constant 0 : index
    %c0_13 = arith.constant 0 : index
    %13 = vector.load %arg6[%c0_12, %c0_13] : memref<1x64xf32, #tpu.memory_space<vmem>>, vector<1x64xf32>
    %14 = vector.broadcast %13 : vector<1x64xf32> to vector<16x64xf32>
    %15 = arith.addf %12, %14 : vector<16x64xf32>
    %16 = vector.extract_strided_slice %15 {offsets = [0, 0], sizes = [16, 32], strides = [1, 1]} : vector<16x64xf32> to vector<16x32xf32>
    %17 = vector.extract_strided_slice %15 {offsets = [0, 32], sizes = [16, 32], strides = [1, 1]} : vector<16x64xf32> to vector<16x32xf32>
    %c0_14 = arith.constant 0 : index
    %c0_15 = arith.constant 0 : index
    %18 = vector.load %arg7[%c0_14, %c0_15] : memref<32x32xbf16, #tpu.memory_space<vmem>>, vector<32x32xbf16>
    %c0_16 = arith.constant 0 : index
    %c0_17 = arith.constant 0 : index
    %19 = vector.load %arg8[%c0_16, %c0_17] : memref<1x32xf32, #tpu.memory_space<vmem>>, vector<1x32xf32>
    %c0_18 = arith.constant 0 : index
    %c0_19 = arith.constant 0 : index
    %20 = vector.load %arg9[%c0_18, %c0_19] : memref<1x32xf32, #tpu.memory_space<vmem>>, vector<1x32xf32>
    %c0_20 = arith.constant 0 : index
    %c0_21 = arith.constant 0 : index
    %21 = vector.load %arg10[%c0_20, %c0_21] : memref<1x32xf32, #tpu.memory_space<vmem>>, vector<1x32xf32>
    %22 = vector.extract_strided_slice %9 {offsets = [0, 0], sizes = [8, 32], strides = [1, 1]} : vector<16x32xf32> to vector<8x32xf32>
    %23 = vector.shape_cast %22 : vector<8x32xf32> to vector<8x4x8xf32>
    %24 = tpu.transpose %23, [1, 0, 2] : vector<8x4x8xf32> -> vector<4x8x8xf32>
    %25 = arith.truncf %24 : vector<4x8x8xf32> to vector<4x8x8xbf16>
    %26 = vector.extract_strided_slice %16 {offsets = [0, 0], sizes = [8, 32], strides = [1, 1]} : vector<16x32xf32> to vector<8x32xf32>
    %27 = vector.shape_cast %26 : vector<8x32xf32> to vector<8x4x8xf32>
    %28 = tpu.transpose %27, [1, 0, 2] : vector<8x4x8xf32> -> vector<4x8x8xf32>
    %29 = arith.truncf %28 : vector<4x8x8xf32> to vector<4x8x8xbf16>
    %30 = vector.extract_strided_slice %17 {offsets = [0, 0], sizes = [8, 32], strides = [1, 1]} : vector<16x32xf32> to vector<8x32xf32>
    %31 = vector.shape_cast %30 : vector<8x32xf32> to vector<8x4x8xf32>
    %32 = tpu.transpose %31, [1, 0, 2] : vector<8x4x8xf32> -> vector<4x8x8xf32>
    %33 = arith.truncf %32 : vector<4x8x8xf32> to vector<4x8x8xbf16>
    "tpu.trace_start"() <{level = 10 : i32, message = "hqd,hkd->hqk"}> : () -> ()
    %cst_22 = arith.constant dense<0.000000e+00> : vector<4x8x8xf32>
    %34 = tpu.matmul %25, %29, %cst_22 {dimension_numbers = #tpu.dot_dimension_numbers<[2], [2], [1], [1], [0, 0, 0, 1, 1, 1], [0], [0]>} : vector<4x8x8xbf16>, vector<4x8x8xbf16>, vector<4x8x8xf32> -> vector<4x8x8xf32>
    "tpu.trace_stop"() : () -> ()
    %cst_23 = arith.constant dense<0xFF800000> : vector<4x8xf32>
    %35 = vector.multi_reduction <maximumf>, %34, %cst_23 [2] : vector<4x8x8xf32> to vector<4x8xf32>
    %36 = vector.shape_cast %35 : vector<4x8xf32> to vector<4x8x1xf32>
    %37 = vector.broadcast %36 : vector<4x8x1xf32> to vector<4x8x8xf32>
    %38 = arith.subf %34, %37 : vector<4x8x8xf32>
    %39 = math.exp %38 : vector<4x8x8xf32>
    %cst_24 = arith.constant dense<0.000000e+00> : vector<4x8xf32>
    %40 = vector.multi_reduction <add>, %39, %cst_24 [2] : vector<4x8x8xf32> to vector<4x8xf32>
    %41 = vector.shape_cast %40 : vector<4x8xf32> to vector<4x8x1xf32>
    %42 = tpu.reciprocal %41 {approx = true} : vector<4x8x1xf32> -> vector<4x8x1xf32>
    %43 = vector.broadcast %42 : vector<4x8x1xf32> to vector<4x8x8xf32>
    %44 = arith.mulf %39, %43 : vector<4x8x8xf32>
    %45 = arith.truncf %44 : vector<4x8x8xf32> to vector<4x8x8xbf16>
    "tpu.trace_start"() <{level = 10 : i32, message = "hqk,hkd->hqd"}> : () -> ()
    %cst_25 = arith.constant dense<0.000000e+00> : vector<4x8x8xf32>
    %46 = tpu.matmul %45, %33, %cst_25 {dimension_numbers = #tpu.dot_dimension_numbers<[2], [1], [1], [2], [0, 0, 0, 1, 1, 2], [0], [0]>} : vector<4x8x8xbf16>, vector<4x8x8xbf16>, vector<4x8x8xf32> -> vector<4x8x8xf32>
    "tpu.trace_stop"() : () -> ()
    %47 = tpu.transpose %46, [1, 0, 2] : vector<4x8x8xf32> -> vector<8x4x8xf32>
    %48 = vector.shape_cast %47 : vector<8x4x8xf32> to vector<8x32xf32>
    %49 = vector.extract_strided_slice %9 {offsets = [8, 0], sizes = [8, 32], strides = [1, 1]} : vector<16x32xf32> to vector<8x32xf32>
    %50 = vector.shape_cast %49 : vector<8x32xf32> to vector<8x4x8xf32>
    %51 = tpu.transpose %50, [1, 0, 2] : vector<8x4x8xf32> -> vector<4x8x8xf32>
    %52 = arith.truncf %51 : vector<4x8x8xf32> to vector<4x8x8xbf16>
    %53 = vector.extract_strided_slice %16 {offsets = [8, 0], sizes = [8, 32], strides = [1, 1]} : vector<16x32xf32> to vector<8x32xf32>
    %54 = vector.shape_cast %53 : vector<8x32xf32> to vector<8x4x8xf32>
    %55 = tpu.transpose %54, [1, 0, 2] : vector<8x4x8xf32> -> vector<4x8x8xf32>
    %56 = arith.truncf %55 : vector<4x8x8xf32> to vector<4x8x8xbf16>
    %57 = vector.extract_strided_slice %17 {offsets = [8, 0], sizes = [8, 32], strides = [1, 1]} : vector<16x32xf32> to vector<8x32xf32>
    %58 = vector.shape_cast %57 : vector<8x32xf32> to vector<8x4x8xf32>
    %59 = tpu.transpose %58, [1, 0, 2] : vector<8x4x8xf32> -> vector<4x8x8xf32>
    %60 = arith.truncf %59 : vector<4x8x8xf32> to vector<4x8x8xbf16>
    "tpu.trace_start"() <{level = 10 : i32, message = "hqd,hkd->hqk"}> : () -> ()
    %cst_26 = arith.constant dense<0.000000e+00> : vector<4x8x8xf32>
    %61 = tpu.matmul %52, %56, %cst_26 {dimension_numbers = #tpu.dot_dimension_numbers<[2], [2], [1], [1], [0, 0, 0, 1, 1, 1], [0], [0]>} : vector<4x8x8xbf16>, vector<4x8x8xbf16>, vector<4x8x8xf32> -> vector<4x8x8xf32>
    "tpu.trace_stop"() : () -> ()
    %cst_27 = arith.constant dense<0xFF800000> : vector<4x8xf32>
    %62 = vector.multi_reduction <maximumf>, %61, %cst_27 [2] : vector<4x8x8xf32> to vector<4x8xf32>
    %63 = vector.shape_cast %62 : vector<4x8xf32> to vector<4x8x1xf32>
    %64 = vector.broadcast %63 : vector<4x8x1xf32> to vector<4x8x8xf32>
    %65 = arith.subf %61, %64 : vector<4x8x8xf32>
    %66 = math.exp %65 : vector<4x8x8xf32>
    %cst_28 = arith.constant dense<0.000000e+00> : vector<4x8xf32>
    %67 = vector.multi_reduction <add>, %66, %cst_28 [2] : vector<4x8x8xf32> to vector<4x8xf32>
    %68 = vector.shape_cast %67 : vector<4x8xf32> to vector<4x8x1xf32>
    %69 = tpu.reciprocal %68 {approx = true} : vector<4x8x1xf32> -> vector<4x8x1xf32>
    %70 = vector.broadcast %69 : vector<4x8x1xf32> to vector<4x8x8xf32>
    %71 = arith.mulf %66, %70 : vector<4x8x8xf32>
    %72 = arith.truncf %71 : vector<4x8x8xf32> to vector<4x8x8xbf16>
    "tpu.trace_start"() <{level = 10 : i32, message = "hqk,hkd->hqd"}> : () -> ()
    %cst_29 = arith.constant dense<0.000000e+00> : vector<4x8x8xf32>
    %73 = tpu.matmul %72, %60, %cst_29 {dimension_numbers = #tpu.dot_dimension_numbers<[2], [1], [1], [2], [0, 0, 0, 1, 1, 2], [0], [0]>} : vector<4x8x8xbf16>, vector<4x8x8xbf16>, vector<4x8x8xf32> -> vector<4x8x8xf32>
    "tpu.trace_stop"() : () -> ()
    %74 = tpu.transpose %73, [1, 0, 2] : vector<4x8x8xf32> -> vector<8x4x8xf32>
    %75 = vector.shape_cast %74 : vector<8x4x8xf32> to vector<8x32xf32>
    %76 = tpu.concatenate %48, %75 in 0 : vector<8x32xf32>, vector<8x32xf32> -> vector<16x32xf32>
    %77 = arith.truncf %76 : vector<16x32xf32> to vector<16x32xbf16>
    %cst_30 = arith.constant dense<0.000000e+00> : vector<16x32xf32>
    %78 = tpu.matmul %77, %18, %cst_30 {dimension_numbers = #tpu.dot_dimension_numbers<[1], [0], [0], [1], [0, 0, 1, 1], [], []>} : vector<16x32xbf16>, vector<32x32xbf16>, vector<16x32xf32> -> vector<16x32xf32>
    %79 = vector.broadcast %19 : vector<1x32xf32> to vector<16x32xf32>
    %80 = arith.addf %78, %79 : vector<16x32xf32>
    %81 = arith.addf %1, %80 : vector<16x32xf32>
    %cst_31 = arith.constant dense<0.000000e+00> : vector<16xf32>
    %82 = vector.multi_reduction <add>, %81, %cst_31 [1] : vector<16x32xf32> to vector<16xf32>
    %83 = vector.shape_cast %82 : vector<16xf32> to vector<16x1xf32>
    %cst_32 = arith.constant 3.200000e+01 : f32
    %84 = vector.broadcast %cst_32 : f32 to vector<16x1xf32>
    %85 = arith.divf %83, %84 : vector<16x1xf32>
    %86 = vector.broadcast %85 : vector<16x1xf32> to vector<16x32xf32>
    %87 = arith.subf %81, %86 : vector<16x32xf32>
    %88 = arith.mulf %87, %87 : vector<16x32xf32>
    %cst_33 = arith.constant dense<0.000000e+00> : vector<16xf32>
    %89 = vector.multi_reduction <add>, %88, %cst_33 [1] : vector<16x32xf32> to vector<16xf32>
    %90 = vector.shape_cast %89 : vector<16xf32> to vector<16x1xf32>
    %cst_34 = arith.constant 3.200000e+01 : f32
    %91 = vector.broadcast %cst_34 : f32 to vector<16x1xf32>
    %92 = arith.divf %90, %91 : vector<16x1xf32>
    %93 = vector.broadcast %85 : vector<16x1xf32> to vector<16x32xf32>
    %94 = arith.subf %81, %93 : vector<16x32xf32>
    %cst_35 = arith.constant 9.99999974E-6 : f32
    %95 = vector.broadcast %cst_35 : f32 to vector<16x1xf32>
    %96 = arith.addf %92, %95 : vector<16x1xf32>
    %97 = math.rsqrt %96 : vector<16x1xf32>
    %98 = vector.broadcast %97 : vector<16x1xf32> to vector<16x32xf32>
    %99 = arith.mulf %94, %98 : vector<16x32xf32>
    %100 = vector.broadcast %20 : vector<1x32xf32> to vector<16x32xf32>
    %101 = arith.mulf %99, %100 : vector<16x32xf32>
    %102 = vector.broadcast %21 : vector<1x32xf32> to vector<16x32xf32>
    %103 = arith.addf %101, %102 : vector<16x32xf32>
    %104 = vector.shape_cast %103 : vector<16x32xf32> to vector<2x8x32xf32>
    %c0_36 = arith.constant 0 : index
    %c0_37 = arith.constant 0 : index
    %c0_38 = arith.constant 0 : index
    %105 = vector.load %arg11[%c0_36, %c0_37, %c0_38] : memref<2x8x32xf32, #tpu.memory_space<vmem>>, vector<2x8x32xf32>
    tpu.vector_store %arg11[%c0_36, %c0_37, %c0_38], %104 {strides = array<i32>} : memref<2x8x32xf32, #tpu.memory_space<vmem>>, vector<2x8x32xf32>,
    return
  }
  func.func @transform_0(%arg0: i32) -> (i32, i32, i32) {
    %c0_i32 = arith.constant 0 : i32
    %c0_i32_0 = arith.constant 0 : i32
    %c0_i32_1 = arith.constant 0 : i32
    return %arg0, %c0_i32, %c0_i32_0 : i32, i32, i32
  }
  func.func @transform_1(%arg0: i32) -> (i32, i32, i32) {
    %c0_i32 = arith.constant 0 : i32
    %c0_i32_0 = arith.constant 0 : i32
    %c0_i32_1 = arith.constant 0 : i32
    return %arg0, %c0_i32, %c0_i32_0 : i32, i32, i32
  }
  func.func @transform_2(%arg0: i32) -> (i32, i32) {
    %c0_i32 = arith.constant 0 : i32
    %c0_i32_0 = arith.constant 0 : i32
    %c0_i32_1 = arith.constant 0 : i32
    return %c0_i32, %c0_i32_0 : i32, i32
  }
  func.func @transform_3(%arg0: i32) -> (i32, i32) {
    %c0_i32 = arith.constant 0 : i32
    %c0_i32_0 = arith.constant 0 : i32
    %c0_i32_1 = arith.constant 0 : i32
    return %c0_i32, %c0_i32_0 : i32, i32
  }
  func.func @transform_4(%arg0: i32) -> (i32, i32) {
    %c0_i32 = arith.constant 0 : i32
    %c0_i32_0 = arith.constant 0 : i32
    %c0_i32_1 = arith.constant 0 : i32
    return %c0_i32, %c0_i32_0 : i32, i32
  }
  func.func @transform_5(%arg0: i32) -> (i32, i32) {
    %c0_i32 = arith.constant 0 : i32
    %c0_i32_0 = arith.constant 0 : i32
    %c0_i32_1 = arith.constant 0 : i32
    return %c0_i32, %c0_i32_0 : i32, i32
  }
  func.func @transform_6(%arg0: i32) -> (i32, i32) {
    %c0_i32 = arith.constant 0 : i32
    %c0_i32_0 = arith.constant 0 : i32
    %c0_i32_1 = arith.constant 0 : i32
    return %c0_i32, %c0_i32_0 : i32, i32
  }
  func.func @transform_7(%arg0: i32) -> (i32, i32) {
    %c0_i32 = arith.constant 0 : i32
    %c0_i32_0 = arith.constant 0 : i32
    %c0_i32_1 = arith.constant 0 : i32
    return %c0_i32, %c0_i32_0 : i32, i32
  }
  func.func @transform_8(%arg0: i32) -> (i32, i32) {
    %c0_i32 = arith.constant 0 : i32
    %c0_i32_0 = arith.constant 0 : i32
    %c0_i32_1 = arith.constant 0 : i32
    return %c0_i32, %c0_i32_0 : i32, i32
  }
  func.func @transform_9(%arg0: i32) -> (i32, i32) {
    %c0_i32 = arith.constant 0 : i32
    %c0_i32_0 = arith.constant 0 : i32
    %c0_i32_1 = arith.constant 0 : i32
    return %c0_i32, %c0_i32_0 : i32, i32
  }
  func.func @transform_10(%arg0: i32) -> (i32, i32, i32) {
    %c0_i32 = arith.constant 0 : i32
    %c0_i32_0 = arith.constant 0 : i32
    %c0_i32_1 = arith.constant 0 : i32
    return %arg0, %c0_i32, %c0_i32_0 : i32, i32, i32
  }
}

module attributes {stable_mosaic.version = 11 : i64} {
  func.func @_linear_kernel(%arg0: i32, %arg1: i32, %arg2: memref<16x32xf32, #tpu.memory_space<vmem>>, %arg3: memref<32x128xbf16, #tpu.memory_space<vmem>>, %arg4: memref<1x128xf32, #tpu.memory_space<vmem>>, %arg5: memref<16x128xf32, #tpu.memory_space<vmem>>) attributes {dimension_semantics = [#tpu.dimension_semantics<parallel>, #tpu.dimension_semantics<parallel>], iteration_bounds = array<i64: 1, 1>, scalar_prefetch = 0 : i64, scratch_operands = 0 : i64, tpu.core_type = #tpu.core_type<tc>, window_params = [{transform_indices = @transform_0, window_bounds = array<i64: 16, 32>}, {transform_indices = @transform_1, window_bounds = array<i64: 32, 128>}, {transform_indices = @transform_2, window_bounds = array<i64: 1, 128>}, {transform_indices = @transform_3, window_bounds = array<i64: 16, 128>}]} {
    %c0 = arith.constant 0 : index
    %c0_0 = arith.constant 0 : index
    %0 = vector.load %arg2[%c0, %c0_0] : memref<16x32xf32, #tpu.memory_space<vmem>>, vector<16x32xf32>
    %c0_1 = arith.constant 0 : index
    %c0_2 = arith.constant 0 : index
    %1 = vector.load %arg3[%c0_1, %c0_2] : memref<32x128xbf16, #tpu.memory_space<vmem>>, vector<32x128xbf16>
    %2 = arith.truncf %0 : vector<16x32xf32> to vector<16x32xbf16>
    %cst = arith.constant dense<0.000000e+00> : vector<16x128xf32>
    %3 = tpu.matmul %2, %1, %cst {dimension_numbers = #tpu.dot_dimension_numbers<[1], [0], [0], [1], [0, 0, 1, 1], [], []>} : vector<16x32xbf16>, vector<32x128xbf16>, vector<16x128xf32> -> vector<16x128xf32>
    %c0_3 = arith.constant 0 : index
    %c0_4 = arith.constant 0 : index
    %4 = vector.load %arg4[%c0_3, %c0_4] : memref<1x128xf32, #tpu.memory_space<vmem>>, vector<1x128xf32>
    %5 = vector.broadcast %4 : vector<1x128xf32> to vector<16x128xf32>
    %6 = arith.addf %3, %5 : vector<16x128xf32>
    %c0_5 = arith.constant 0 : index
    %c0_6 = arith.constant 0 : index
    %7 = vector.load %arg5[%c0_5, %c0_6] : memref<16x128xf32, #tpu.memory_space<vmem>>, vector<16x128xf32>
    tpu.vector_store %arg5[%c0_5, %c0_6], %6 {strides = array<i32>} : memref<16x128xf32, #tpu.memory_space<vmem>>, vector<16x128xf32>,
    return
  }
  func.func @transform_0(%arg0: i32, %arg1: i32) -> (i32, i32) {
    %c0_i32 = arith.constant 0 : i32
    %c0_i32_0 = arith.constant 0 : i32
    return %arg1, %c0_i32 : i32, i32
  }
  func.func @transform_1(%arg0: i32, %arg1: i32) -> (i32, i32) {
    %c0_i32 = arith.constant 0 : i32
    %c0_i32_0 = arith.constant 0 : i32
    return %c0_i32, %arg0 : i32, i32
  }
  func.func @transform_2(%arg0: i32, %arg1: i32) -> (i32, i32) {
    %c0_i32 = arith.constant 0 : i32
    %c0_i32_0 = arith.constant 0 : i32
    return %c0_i32, %arg0 : i32, i32
  }
  func.func @transform_3(%arg0: i32, %arg1: i32) -> (i32, i32) {
    %c0_i32 = arith.constant 0 : i32
    return %arg1, %arg0 : i32, i32
  }
}

</mosaic_0001>

<llo_original>
// kernel: transformer_forward.14
$region0: #{transformer_forward.14}
  #allocation0 [shape = 'u32[]', space=smem, size = 0x4, offset = 0x4, fixed_abs, tag = 'smem constant byte address 0x4 - core index']
  #allocation1 [shape = 'u32[144,128]{1,0:T(1,128)}', space=vmem, size = 0x12000, scoped, tag = 'internal scratch']
  %s0 = inlined_call_operand.vmem [shape: f32[16,32], index: 0, kind: input, shape index: {}]
  %s1 = inlined_call_operand.vmem [shape: bf16[32,64], index: 1, kind: input, shape index: {}]
  %s2 = inlined_call_operand.vmem [shape: f32[1,64], index: 2, kind: input, shape index: {}]
  %s3 = inlined_call_operand.vmem [shape: bf16[64,32], index: 3, kind: input, shape index: {}]
  %s4 = inlined_call_operand.vmem [shape: f32[1,32], index: 4, kind: input, shape index: {}]
  %s5 = inlined_call_operand.vmem [shape: f32[1,32], index: 5, kind: input, shape index: {}]
  %s6 = inlined_call_operand.vmem [shape: f32[1,32], index: 6, kind: input, shape index: {}]
  %s7 = inlined_call_operand.vmem [shape: f32[1,32], index: 7, kind: input, shape index: {}]
  %s8 = inlined_call_operand.vmem [shape: f32[1,32], index: 8, kind: input, shape index: {}]
  %s9 = inlined_call_operand.vmem [shape: f32[16,32], index: 9, kind: output, shape index: {}]
  %s10 = sld [smem:[#allocation0]]
  $region46: #{transformer_forward.14} parent=0
    _
  %s12 = ssub.s32 1, %s10
  %s13 = scalar_select 0, %s12, %s10
  // Predicated region
  $region2: #{transformer_forward.14} parent=0 // pred_check
    _
  $region3: #{transformer_forward.14} parent=0 // pred_check_branch
    %15 = sbr.rel (0) target = $region5
  $region4: #{transformer_forward.14} parent=0 // pred_region
    _
  $region5: #{transformer_forward.14} parent=0 // pred_fallthru
    _
  // Predicated region
  $region6: #{transformer_forward.14} parent=0 // pred_check
    _
  $region7: #{transformer_forward.14} parent=0 // pred_check_branch
    %17 = sbr.rel (0) target = $region9
  $region8: #{transformer_forward.14} parent=0 // pred_region
    _
  $region9: #{transformer_forward.14} parent=0 // pred_fallthru
    _
  // Predicated region
  $region10: #{transformer_forward.14} parent=0 // pred_check
    _
  $region11: #{transformer_forward.14} parent=0 // pred_check_branch
    %19 = sbr.rel (0) target = $region13
  $region12: #{transformer_forward.14} parent=0 // pred_region
    _
  $region13: #{transformer_forward.14} parent=0 // pred_fallthru
    _
  // Predicated region
  $region14: #{transformer_forward.14} parent=0 // pred_check
    _
  $region15: #{transformer_forward.14} parent=0 // pred_check_branch
    %21 = sbr.rel (0) target = $region17
  $region16: #{transformer_forward.14} parent=0 // pred_region
    _
  $region17: #{transformer_forward.14} parent=0 // pred_fallthru
    _
  // Predicated region
  $region18: #{transformer_forward.14} parent=0 // pred_check
    _
  $region19: #{transformer_forward.14} parent=0 // pred_check_branch
    %23 = sbr.rel (0) target = $region21
  $region20: #{transformer_forward.14} parent=0 // pred_region
    _
  $region21: #{transformer_forward.14} parent=0 // pred_fallthru
    _
  // Predicated region
  $region22: #{transformer_forward.14} parent=0 // pred_check
    _
  $region23: #{transformer_forward.14} parent=0 // pred_check_branch
    %25 = sbr.rel (0) target = $region25
  $region24: #{transformer_forward.14} parent=0 // pred_region
    _
  $region25: #{transformer_forward.14} parent=0 // pred_fallthru
    _
  // Predicated region
  $region26: #{transformer_forward.14} parent=0 // pred_check
    _
  $region27: #{transformer_forward.14} parent=0 // pred_check_branch
    %27 = sbr.rel (0) target = $region29
  $region28: #{transformer_forward.14} parent=0 // pred_region
    _
  $region29: #{transformer_forward.14} parent=0 // pred_fallthru
    _
  // Predicated region
  $region30: #{transformer_forward.14} parent=0 // pred_check
    _
  $region31: #{transformer_forward.14} parent=0 // pred_check_branch
    %29 = sbr.rel (0) target = $region33
  $region32: #{transformer_forward.14} parent=0 // pred_region
    _
  $region33: #{transformer_forward.14} parent=0 // pred_fallthru
    _
  // Predicated region
  $region34: #{transformer_forward.14} parent=0 // pred_check
    _
  $region35: #{transformer_forward.14} parent=0 // pred_check_branch
    %31 = sbr.rel (0) target = $region37
  $region36: #{transformer_forward.14} parent=0 // pred_region
    _
  $region37: #{transformer_forward.14} parent=0 // pred_fallthru
    _
  %v33 = vld [vmem:[%s0] sm:$0xff]
  %v34 = vld [vmem:[%s0 + $0x8] sm:$0xff]
  %v35 = vld [vmem:[%s1] sm:$0xf]
  %v36 = vld [vmem:[%s1 + $0x4] sm:$0xf]
  %v37 = vld [vmem:[%s1 + $0x8] sm:$0xf]
  %v38 = vld [vmem:[%s1 + $0xc] sm:$0xf]
  %v39 = vpack.c.bf16 %v34, %v33
  %v40 = vld [vmem:[%s2] sm:$0x1]
  %v42 = vlaneseq
  %v43 = vshrl.u32 %v42, 7
  %v44 = vsub.s32 0, %v43
  %v45 = vrot.slane %v40, %v44
  %v51 = vunpack.c.l.b16 %v35
  %v52 = vunpack.c.l.b16 %v36
  %v53 = vunpack.c.l.b16 %v37
  %v54 = vunpack.c.l.b16 %v38
  %v55 = vpack.c.b16 %v52, %v51
  %v56 = vpack.c.b16 %v54, %v53
  %vm59 = vcmask 261120
  %v61 = vsel %vm59, %v39, 0
  %63 = vmatprep.subr.bf16.mxu0 0
  %64 = vmatpush1.bf16.msra.mxu0 %v55
  %65 = vmatprep.subr.bf16.mxu0 0
  %66 = vmatpush1.bf16.msra.mxu0 %v56
  %67 = vmatprep.subr.bf16.mxu0 0
  %68 = vmatpush1.bf16.msra.mxu0 0
  %69 = vmatprep.subr.bf16.mxu0 0
  %70 = vmatpush1.bf16.msra.mxu0 0
  %71 = vmatprep.subr.bf16.mxu0 0
  %72 = vmatpush1.bf16.msra.mxu0 0
  %73 = vmatprep.subr.bf16.mxu0 0
  %74 = vmatpush1.bf16.msra.mxu0 0
  %75 = vmatprep.subr.bf16.mxu0 0
  %76 = vmatpush1.bf16.msra.mxu0 0
  %77 = vmatprep.subr.bf16.mxu0 0
  %78 = vmatpush1.bf16.msra.mxu0 0
  %79 = vmatprep.subr.bf16.mxu0 0
  %80 = vmatpush1.bf16.msra.mxu0 0
  %81 = vmatprep.subr.bf16.mxu0 0
  %82 = vmatpush1.bf16.msra.mxu0 0
  %83 = vmatprep.subr.bf16.mxu0 0
  %84 = vmatpush1.bf16.msra.mxu0 0
  %85 = vmatprep.subr.bf16.mxu0 0
  %86 = vmatpush1.bf16.msra.mxu0 0
  %87 = vmatprep.subr.bf16.mxu0 0
  %88 = vmatpush1.bf16.msra.mxu0 0
  %89 = vmatprep.subr.bf16.mxu0 0
  %90 = vmatpush1.bf16.msra.mxu0 0
  %91 = vmatprep.subr.bf16.mxu0 0
  %92 = vmatpush1.bf16.msra.mxu0 0
  %93 = vmatprep.subr.bf16.mxu0 0
  %94 = vmatpush1.bf16.msra.mxu0 0
  %95 = vmatprep.mubr.bf16.mxu0 0
  %96 = vmatmul.mubr.bf16.gmra.mrb[0].mxu0 %v61
  %v97 = vpop.f32.mrb[0].mxu0
  %v98 = vadd.f32 %v45, %v97
  %v99 = vpop.f32.mrb[0].mxu0
  %v100 = vpop.f32.mrb[0].mxu0
  %v101 = vadd.f32 %v45, %v100
  %v102 = vpop.f32.mrb[0].mxu0
  %103 = vdwg.mxu0
  %v104 = vmax.f32 %v98, 0.0
  %v105 = vmax.f32 %v101, 0.0
  %v106 = vld [vmem:[%s3] sm:$0xf]
  %v107 = vld [vmem:[%s3 + $0x4] sm:$0xf]
  %v108 = vld [vmem:[%s3 + $0x8] sm:$0xf]
  %v109 = vld [vmem:[%s3 + $0xc] sm:$0xf]
  %v110 = vld [vmem:[%s3 + $0x10] sm:$0xf]
  %v111 = vld [vmem:[%s3 + $0x14] sm:$0xf]
  %v112 = vld [vmem:[%s3 + $0x18] sm:$0xf]
  %v113 = vld [vmem:[%s3 + $0x1c] sm:$0xf]
  %v114 = vpack.c.bf16 %v105, %v104
  %v115 = vld [vmem:[%s4] sm:$0x1]
  %v117 = vlaneseq
  %v118 = vshrl.u32 %v117, 7
  %v119 = vsub.s32 0, %v118
  %v120 = vrot.slane %v115, %v119
  %v130 = vunpack.c.l.b16 %v106
  %v131 = vunpack.c.l.b16 %v107
  %v132 = vunpack.c.l.b16 %v108
  %v133 = vunpack.c.l.b16 %v109
  %v134 = vunpack.c.l.b16 %v110
  %v135 = vunpack.c.l.b16 %v111
  %v136 = vunpack.c.l.b16 %v112
  %v137 = vunpack.c.l.b16 %v113
  %v138 = vpack.c.b16 %v131, %v130
  %v139 = vpack.c.b16 %v133, %v132
  %v140 = vpack.c.b16 %v135, %v134
  %v141 = vpack.c.b16 %v137, %v136
  %vm146 = vcmask 523264
  %v148 = vsel %vm146, %v114, 0
  %150 = vmatprep.subr.bf16.mxu0 0
  %151 = vmatpush1.bf16.msra.mxu0 %v138
  %152 = vmatprep.subr.bf16.mxu0 0
  %153 = vmatpush1.bf16.msra.mxu0 %v139
  %154 = vmatprep.subr.bf16.mxu0 0
  %155 = vmatpush1.bf16.msra.mxu0 %v140
  %156 = vmatprep.subr.bf16.mxu0 0
  %157 = vmatpush1.bf16.msra.mxu0 %v141
  %158 = vmatprep.subr.bf16.mxu0 0
  %159 = vmatpush1.bf16.msra.mxu0 0
  %160 = vmatprep.subr.bf16.mxu0 0
  %161 = vmatpush1.bf16.msra.mxu0 0
  %162 = vmatprep.subr.bf16.mxu0 0
  %163 = vmatpush1.bf16.msra.mxu0 0
  %164 = vmatprep.subr.bf16.mxu0 0
  %165 = vmatpush1.bf16.msra.mxu0 0
  %166 = vmatprep.subr.bf16.mxu0 0
  %167 = vmatpush1.bf16.msra.mxu0 0
  %168 = vmatprep.subr.bf16.mxu0 0
  %169 = vmatpush1.bf16.msra.mxu0 0
  %170 = vmatprep.subr.bf16.mxu0 0
  %171 = vmatpush1.bf16.msra.mxu0 0
  %172 = vmatprep.subr.bf16.mxu0 0
  %173 = vmatpush1.bf16.msra.mxu0 0
  %174 = vmatprep.subr.bf16.mxu0 0
  %175 = vmatpush1.bf16.msra.mxu0 0
  %176 = vmatprep.subr.bf16.mxu0 0
  %177 = vmatpush1.bf16.msra.mxu0 0
  %178 = vmatprep.subr.bf16.mxu0 0
  %179 = vmatpush1.bf16.msra.mxu0 0
  %180 = vmatprep.subr.bf16.mxu0 0
  %181 = vmatpush1.bf16.msra.mxu0 0
  %182 = vmatprep.mubr.bf16.mxu0 0
  %183 = vmatmul.mubr.bf16.gmra.mrb[0].mxu0 %v148
  %v184 = vpop.f32.mrb[0].mxu0
  %v185 = vadd.f32 %v120, %v184
  %v186 = vpop.f32.mrb[0].mxu0
  %v187 = vpop.f32.mrb[0].mxu0
  %v188 = vadd.f32 %v120, %v187
  %v189 = vpop.f32.mrb[0].mxu0
  %190 = vdwg.mxu0
  %v191 = vadd.f32 %v33, %v185
  %v192 = vadd.f32 %v34, %v188
  %v193 = vld [vmem:[%s5] sm:$0x1]
  %v194 = vld [vmem:[%s6] sm:$0x1]
  %v195 = vsel %vm59, %v191, 0.0
  %196 = vadd.xlane.f32.xlu0 %v195
  %v197 = vpop.xlane.xlu0 %196
  %v198 = vsel %vm59, %v192, 0.0
  %199 = vadd.xlane.f32.xlu0 %v198
  %v200 = vpop.xlane.xlu0 %199
  %v201 = vrcp.pop 32.0
  %v202 = vmul.f32 %v197, %v201
  %v203 = vmul.f32 %v200, %v201
  %v204 = vsub.f32 %v191, %v202
  %v205 = vsub.f32 %v192, %v203
  %v206 = vmul.f32 %v204, %v204
  %v207 = vmul.f32 %v205, %v205
  %v208 = vsel %vm59, %v206, 0.0
  %209 = vadd.xlane.f32.xlu0 %v208
  %v210 = vpop.xlane.xlu0 %209
  %v211 = vsel %vm59, %v207, 0.0
  %212 = vadd.xlane.f32.xlu0 %v211
  %v213 = vpop.xlane.xlu0 %212
  %v214 = vmul.f32 %v210, %v201
  %v215 = vmul.f32 %v213, %v201
  %v216 = vadd.f32 %v214, 1e-05
  %v217 = vadd.f32 %v215, 1e-05
  %v218 = vrsqrt.pop %v216
  %v219 = vrsqrt.pop %v217
  %v220 = vmul.f32 %v204, %v218
  %v221 = vmul.f32 %v205, %v219
  %v223 = vlaneseq
  %v224 = vshrl.u32 %v223, 7
  %v225 = vsub.s32 0, %v224
  %v226 = vrot.slane %v193, %v225
  %v228 = vmul.f32 %v220, %v226
  %v229 = vmul.f32 %v221, %v226
  %v231 = vlaneseq
  %v232 = vshrl.u32 %v231, 7
  %v233 = vsub.s32 0, %v232
  %v234 = vrot.slane %v194, %v233
  %v236 = vadd.f32 %v228, %v234
  %v237 = vadd.f32 %v229, %v234
  %v238 = vld [vmem:[%s7] sm:$0x1]
  %v239 = vld [vmem:[%s8] sm:$0x1]
  %v240 = vsel %vm59, %v236, 0.0
  %241 = vadd.xlane.f32.xlu0 %v240
  %v242 = vpop.xlane.xlu0 %241
  %v243 = vsel %vm59, %v237, 0.0
  %244 = vadd.xlane.f32.xlu0 %v243
  %v245 = vpop.xlane.xlu0 %244
  %v246 = vmul.f32 %v242, %v201
  %v247 = vmul.f32 %v245, %v201
  %v248 = vsub.f32 %v236, %v246
  %v249 = vsub.f32 %v237, %v247
  %v250 = vmul.f32 %v248, %v248
  %v251 = vmul.f32 %v249, %v249
  %v252 = vsel %vm59, %v250, 0.0
  %253 = vadd.xlane.f32.xlu0 %v252
  %v254 = vpop.xlane.xlu0 %253
  %v255 = vsel %vm59, %v251, 0.0
  %256 = vadd.xlane.f32.xlu0 %v255
  %v257 = vpop.xlane.xlu0 %256
  %v258 = vmul.f32 %v254, %v201
  %v259 = vmul.f32 %v257, %v201
  %v260 = vadd.f32 %v258, 1e-05
  %v261 = vadd.f32 %v259, 1e-05
  %v262 = vrsqrt.pop %v260
  %v263 = vrsqrt.pop %v261
  %v264 = vmul.f32 %v248, %v262
  %v265 = vmul.f32 %v249, %v263
  %v267 = vlaneseq
  %v268 = vshrl.u32 %v267, 7
  %v269 = vsub.s32 0, %v268
  %v270 = vrot.slane %v238, %v269
  %v272 = vmul.f32 %v264, %v270
  %v273 = vmul.f32 %v265, %v270
  %v275 = vlaneseq
  %v276 = vshrl.u32 %v275, 7
  %v277 = vsub.s32 0, %v276
  %v278 = vrot.slane %v239, %v277
  %v280 = vadd.f32 %v272, %v278
  %v281 = vadd.f32 %v273, %v278
  %282 = vst.msk [vmem:[%s9] sm:$0xff] %vm59, %v280
  %283 = vst.msk [vmem:[%s9 + $0x8] sm:$0xff] %vm59, %v281
  // Predicated region
  $region38: #{transformer_forward.14} parent=0 // pred_check
    _
  $region39: #{transformer_forward.14} parent=0 // pred_check_branch
    %285 = sbr.rel (0) target = $region41
  $region40: #{transformer_forward.14} parent=0 // pred_region
    _
  $region41: #{transformer_forward.14} parent=0 // pred_fallthru
    _
  // Predicated region
  $region42: #{transformer_forward.14} parent=0 // pred_check
    _
  $region43: #{transformer_forward.14} parent=0 // pred_check_branch
    %287 = sbr.rel (0) target = $region45
  $region44: #{transformer_forward.14} parent=0 // pred_region
    _
  $region45: #{transformer_forward.14} parent=0 // pred_fallthru
    _

// kernel: transformer_forward.12
$region0: #{transformer_forward.12}
  #allocation0 [shape = 'u32[]', space=smem, size = 0x4, offset = 0x4, fixed_abs, tag = 'smem constant byte address 0x4 - core index']
  #allocation1 [shape = 'u32[144,128]{1,0:T(1,128)}', space=vmem, size = 0x12000, scoped, tag = 'internal scratch']
  %s0 = inlined_call_operand.vmem [shape: f32[16,32], index: 0, kind: input, shape index: {}]
  %s1 = inlined_call_operand.vmem [shape: bf16[32,64], index: 1, kind: input, shape index: {}]
  %s2 = inlined_call_operand.vmem [shape: f32[1,64], index: 2, kind: input, shape index: {}]
  %s3 = inlined_call_operand.vmem [shape: bf16[64,32], index: 3, kind: input, shape index: {}]
  %s4 = inlined_call_operand.vmem [shape: f32[1,32], index: 4, kind: input, shape index: {}]
  %s5 = inlined_call_operand.vmem [shape: f32[1,32], index: 5, kind: input, shape index: {}, may-alias: {5,7}]
  %s6 = inlined_call_operand.vmem [shape: f32[1,32], index: 6, kind: input, shape index: {}, may-alias: {6,8}]
  %s7 = inlined_call_operand.vmem [shape: f32[1,32], index: 7, kind: input, shape index: {}, may-alias: {5,7}]
  %s8 = inlined_call_operand.vmem [shape: f32[1,32], index: 8, kind: input, shape index: {}, may-alias: {6,8}]
  %s9 = inlined_call_operand.vmem [shape: f32[16,32], index: 9, kind: output, shape index: {}]
  %s10 = sld [smem:[#allocation0]]
  $region46: #{transformer_forward.12} parent=0
    _
  %s12 = ssub.s32 1, %s10
  %s13 = scalar_select 0, %s12, %s10
  // Predicated region
  $region2: #{transformer_forward.12} parent=0 // pred_check
    _
  $region3: #{transformer_forward.12} parent=0 // pred_check_branch
    %15 = sbr.rel (0) target = $region5
  $region4: #{transformer_forward.12} parent=0 // pred_region
    _
  $region5: #{transformer_forward.12} parent=0 // pred_fallthru
    _
  // Predicated region
  $region6: #{transformer_forward.12} parent=0 // pred_check
    _
  $region7: #{transformer_forward.12} parent=0 // pred_check_branch
    %17 = sbr.rel (0) target = $region9
  $region8: #{transformer_forward.12} parent=0 // pred_region
    _
  $region9: #{transformer_forward.12} parent=0 // pred_fallthru
    _
  // Predicated region
  $region10: #{transformer_forward.12} parent=0 // pred_check
    _
  $region11: #{transformer_forward.12} parent=0 // pred_check_branch
    %19 = sbr.rel (0) target = $region13
  $region12: #{transformer_forward.12} parent=0 // pred_region
    _
  $region13: #{transformer_forward.12} parent=0 // pred_fallthru
    _
  // Predicated region
  $region14: #{transformer_forward.12} parent=0 // pred_check
    _
  $region15: #{transformer_forward.12} parent=0 // pred_check_branch
    %21 = sbr.rel (0) target = $region17
  $region16: #{transformer_forward.12} parent=0 // pred_region
    _
  $region17: #{transformer_forward.12} parent=0 // pred_fallthru
    _
  // Predicated region
  $region18: #{transformer_forward.12} parent=0 // pred_check
    _
  $region19: #{transformer_forward.12} parent=0 // pred_check_branch
    %23 = sbr.rel (0) target = $region21
  $region20: #{transformer_forward.12} parent=0 // pred_region
    _
  $region21: #{transformer_forward.12} parent=0 // pred_fallthru
    _
  // Predicated region
  $region22: #{transformer_forward.12} parent=0 // pred_check
    _
  $region23: #{transformer_forward.12} parent=0 // pred_check_branch
    %25 = sbr.rel (0) target = $region25
  $region24: #{transformer_forward.12} parent=0 // pred_region
    _
  $region25: #{transformer_forward.12} parent=0 // pred_fallthru
    _
  // Predicated region
  $region26: #{transformer_forward.12} parent=0 // pred_check
    _
  $region27: #{transformer_forward.12} parent=0 // pred_check_branch
    %27 = sbr.rel (0) target = $region29
  $region28: #{transformer_forward.12} parent=0 // pred_region
    _
  $region29: #{transformer_forward.12} parent=0 // pred_fallthru
    _
  // Predicated region
  $region30: #{transformer_forward.12} parent=0 // pred_check
    _
  $region31: #{transformer_forward.12} parent=0 // pred_check_branch
    %29 = sbr.rel (0) target = $region33
  $region32: #{transformer_forward.12} parent=0 // pred_region
    _
  $region33: #{transformer_forward.12} parent=0 // pred_fallthru
    _
  // Predicated region
  $region34: #{transformer_forward.12} parent=0 // pred_check
    _
  $region35: #{transformer_forward.12} parent=0 // pred_check_branch
    %31 = sbr.rel (0) target = $region37
  $region36: #{transformer_forward.12} parent=0 // pred_region
    _
  $region37: #{transformer_forward.12} parent=0 // pred_fallthru
    _
  %v33 = vld [vmem:[%s0] sm:$0xff]
  %v34 = vld [vmem:[%s0 + $0x8] sm:$0xff]
  %v35 = vld [vmem:[%s1] sm:$0xf]
  %v36 = vld [vmem:[%s1 + $0x4] sm:$0xf]
  %v37 = vld [vmem:[%s1 + $0x8] sm:$0xf]
  %v38 = vld [vmem:[%s1 + $0xc] sm:$0xf]
  %v39 = vpack.c.bf16 %v34, %v33
  %v40 = vld [vmem:[%s2] sm:$0x1]
  %v42 = vlaneseq
  %v43 = vshrl.u32 %v42, 7
  %v44 = vsub.s32 0, %v43
  %v45 = vrot.slane %v40, %v44
  %v51 = vunpack.c.l.b16 %v35
  %v52 = vunpack.c.l.b16 %v36
  %v53 = vunpack.c.l.b16 %v37
  %v54 = vunpack.c.l.b16 %v38
  %v55 = vpack.c.b16 %v52, %v51
  %v56 = vpack.c.b16 %v54, %v53
  %vm59 = vcmask 261120
  %v61 = vsel %vm59, %v39, 0
  %63 = vmatprep.subr.bf16.mxu0 0
  %64 = vmatpush1.bf16.msra.mxu0 %v55
  %65 = vmatprep.subr.bf16.mxu0 0
  %66 = vmatpush1.bf16.msra.mxu0 %v56
  %67 = vmatprep.subr.bf16.mxu0 0
  %68 = vmatpush1.bf16.msra.mxu0 0
  %69 = vmatprep.subr.bf16.mxu0 0
  %70 = vmatpush1.bf16.msra.mxu0 0
  %71 = vmatprep.subr.bf16.mxu0 0
  %72 = vmatpush1.bf16.msra.mxu0 0
  %73 = vmatprep.subr.bf16.mxu0 0
  %74 = vmatpush1.bf16.msra.mxu0 0
  %75 = vmatprep.subr.bf16.mxu0 0
  %76 = vmatpush1.bf16.msra.mxu0 0
  %77 = vmatprep.subr.bf16.mxu0 0
  %78 = vmatpush1.bf16.msra.mxu0 0
  %79 = vmatprep.subr.bf16.mxu0 0
  %80 = vmatpush1.bf16.msra.mxu0 0
  %81 = vmatprep.subr.bf16.mxu0 0
  %82 = vmatpush1.bf16.msra.mxu0 0
  %83 = vmatprep.subr.bf16.mxu0 0
  %84 = vmatpush1.bf16.msra.mxu0 0
  %85 = vmatprep.subr.bf16.mxu0 0
  %86 = vmatpush1.bf16.msra.mxu0 0
  %87 = vmatprep.subr.bf16.mxu0 0
  %88 = vmatpush1.bf16.msra.mxu0 0
  %89 = vmatprep.subr.bf16.mxu0 0
  %90 = vmatpush1.bf16.msra.mxu0 0
  %91 = vmatprep.subr.bf16.mxu0 0
  %92 = vmatpush1.bf16.msra.mxu0 0
  %93 = vmatprep.subr.bf16.mxu0 0
  %94 = vmatpush1.bf16.msra.mxu0 0
  %95 = vmatprep.mubr.bf16.mxu0 0
  %96 = vmatmul.mubr.bf16.gmra.mrb[0].mxu0 %v61
  %v97 = vpop.f32.mrb[0].mxu0
  %v98 = vadd.f32 %v45, %v97
  %v99 = vpop.f32.mrb[0].mxu0
  %v100 = vpop.f32.mrb[0].mxu0
  %v101 = vadd.f32 %v45, %v100
  %v102 = vpop.f32.mrb[0].mxu0
  %103 = vdwg.mxu0
  %v104 = vmax.f32 %v98, 0.0
  %v105 = vmax.f32 %v101, 0.0
  %v106 = vld [vmem:[%s3] sm:$0xf]
  %v107 = vld [vmem:[%s3 + $0x4] sm:$0xf]
  %v108 = vld [vmem:[%s3 + $0x8] sm:$0xf]
  %v109 = vld [vmem:[%s3 + $0xc] sm:$0xf]
  %v110 = vld [vmem:[%s3 + $0x10] sm:$0xf]
  %v111 = vld [vmem:[%s3 + $0x14] sm:$0xf]
  %v112 = vld [vmem:[%s3 + $0x18] sm:$0xf]
  %v113 = vld [vmem:[%s3 + $0x1c] sm:$0xf]
  %v114 = vpack.c.bf16 %v105, %v104
  %v115 = vld [vmem:[%s4] sm:$0x1]
  %v117 = vlaneseq
  %v118 = vshrl.u32 %v117, 7
  %v119 = vsub.s32 0, %v118
  %v120 = vrot.slane %v115, %v119
  %v130 = vunpack.c.l.b16 %v106
  %v131 = vunpack.c.l.b16 %v107
  %v132 = vunpack.c.l.b16 %v108
  %v133 = vunpack.c.l.b16 %v109
  %v134 = vunpack.c.l.b16 %v110
  %v135 = vunpack.c.l.b16 %v111
  %v136 = vunpack.c.l.b16 %v112
  %v137 = vunpack.c.l.b16 %v113
  %v138 = vpack.c.b16 %v131, %v130
  %v139 = vpack.c.b16 %v133, %v132
  %v140 = vpack.c.b16 %v135, %v134
  %v141 = vpack.c.b16 %v137, %v136
  %vm146 = vcmask 523264
  %v148 = vsel %vm146, %v114, 0
  %150 = vmatprep.subr.bf16.mxu0 0
  %151 = vmatpush1.bf16.msra.mxu0 %v138
  %152 = vmatprep.subr.bf16.mxu0 0
  %153 = vmatpush1.bf16.msra.mxu0 %v139
  %154 = vmatprep.subr.bf16.mxu0 0
  %155 = vmatpush1.bf16.msra.mxu0 %v140
  %156 = vmatprep.subr.bf16.mxu0 0
  %157 = vmatpush1.bf16.msra.mxu0 %v141
  %158 = vmatprep.subr.bf16.mxu0 0
  %159 = vmatpush1.bf16.msra.mxu0 0
  %160 = vmatprep.subr.bf16.mxu0 0
  %161 = vmatpush1.bf16.msra.mxu0 0
  %162 = vmatprep.subr.bf16.mxu0 0
  %163 = vmatpush1.bf16.msra.mxu0 0
  %164 = vmatprep.subr.bf16.mxu0 0
  %165 = vmatpush1.bf16.msra.mxu0 0
  %166 = vmatprep.subr.bf16.mxu0 0
  %167 = vmatpush1.bf16.msra.mxu0 0
  %168 = vmatprep.subr.bf16.mxu0 0
  %169 = vmatpush1.bf16.msra.mxu0 0
  %170 = vmatprep.subr.bf16.mxu0 0
  %171 = vmatpush1.bf16.msra.mxu0 0
  %172 = vmatprep.subr.bf16.mxu0 0
  %173 = vmatpush1.bf16.msra.mxu0 0
  %174 = vmatprep.subr.bf16.mxu0 0
  %175 = vmatpush1.bf16.msra.mxu0 0
  %176 = vmatprep.subr.bf16.mxu0 0
  %177 = vmatpush1.bf16.msra.mxu0 0
  %178 = vmatprep.subr.bf16.mxu0 0
  %179 = vmatpush1.bf16.msra.mxu0 0
  %180 = vmatprep.subr.bf16.mxu0 0
  %181 = vmatpush1.bf16.msra.mxu0 0
  %182 = vmatprep.mubr.bf16.mxu0 0
  %183 = vmatmul.mubr.bf16.gmra.mrb[0].mxu0 %v148
  %v184 = vpop.f32.mrb[0].mxu0
  %v185 = vadd.f32 %v120, %v184
  %v186 = vpop.f32.mrb[0].mxu0
  %v187 = vpop.f32.mrb[0].mxu0
  %v188 = vadd.f32 %v120, %v187
  %v189 = vpop.f32.mrb[0].mxu0
  %190 = vdwg.mxu0
  %v191 = vadd.f32 %v33, %v185
  %v192 = vadd.f32 %v34, %v188
  %v193 = vld [vmem:[%s5] sm:$0x1]
  %v194 = vld [vmem:[%s6] sm:$0x1]
  %v195 = vsel %vm59, %v191, 0.0
  %196 = vadd.xlane.f32.xlu0 %v195
  %v197 = vpop.xlane.xlu0 %196
  %v198 = vsel %vm59, %v192, 0.0
  %199 = vadd.xlane.f32.xlu0 %v198
  %v200 = vpop.xlane.xlu0 %199
  %v201 = vrcp.pop 32.0
  %v202 = vmul.f32 %v197, %v201
  %v203 = vmul.f32 %v200, %v201
  %v204 = vsub.f32 %v191, %v202
  %v205 = vsub.f32 %v192, %v203
  %v206 = vmul.f32 %v204, %v204
  %v207 = vmul.f32 %v205, %v205
  %v208 = vsel %vm59, %v206, 0.0
  %209 = vadd.xlane.f32.xlu0 %v208
  %v210 = vpop.xlane.xlu0 %209
  %v211 = vsel %vm59, %v207, 0.0
  %212 = vadd.xlane.f32.xlu0 %v211
  %v213 = vpop.xlane.xlu0 %212
  %v214 = vmul.f32 %v210, %v201
  %v215 = vmul.f32 %v213, %v201
  %v216 = vadd.f32 %v214, 1e-05
  %v217 = vadd.f32 %v215, 1e-05
  %v218 = vrsqrt.pop %v216
  %v219 = vrsqrt.pop %v217
  %v220 = vmul.f32 %v204, %v218
  %v221 = vmul.f32 %v205, %v219
  %v223 = vlaneseq
  %v224 = vshrl.u32 %v223, 7
  %v225 = vsub.s32 0, %v224
  %v226 = vrot.slane %v193, %v225
  %v228 = vmul.f32 %v220, %v226
  %v229 = vmul.f32 %v221, %v226
  %v231 = vlaneseq
  %v232 = vshrl.u32 %v231, 7
  %v233 = vsub.s32 0, %v232
  %v234 = vrot.slane %v194, %v233
  %v236 = vadd.f32 %v228, %v234
  %v237 = vadd.f32 %v229, %v234
  %238 = vst.msk [vmem:[%s9] sm:$0xff] %vm59, %v236
  %239 = vst.msk [vmem:[%s9 + $0x8] sm:$0xff] %vm59, %v237
  // Predicated region
  $region38: #{transformer_forward.12} parent=0 // pred_check
    _
  $region39: #{transformer_forward.12} parent=0 // pred_check_branch
    %241 = sbr.rel (0) target = $region41
  $region40: #{transformer_forward.12} parent=0 // pred_region
    _
  $region41: #{transformer_forward.12} parent=0 // pred_fallthru
    _
  // Predicated region
  $region42: #{transformer_forward.12} parent=0 // pred_check
    _
  $region43: #{transformer_forward.12} parent=0 // pred_check_branch
    %243 = sbr.rel (0) target = $region45
  $region44: #{transformer_forward.12} parent=0 // pred_region
    _
  $region45: #{transformer_forward.12} parent=0 // pred_fallthru
    _

// kernel: transformer_forward.11
$region0: #{transformer_forward.11}
  #allocation0 [shape = 'u32[]', space=smem, size = 0x4, offset = 0x4, fixed_abs, tag = 'smem constant byte address 0x4 - core index']
  #allocation1 [shape = 'u32[144,128]{1,0:T(1,128)}', space=vmem, size = 0x12000, scoped, tag = 'internal scratch']
  %s0 = inlined_call_operand.vmem [shape: f32[2,8,32], index: 0, kind: input, shape index: {}]
  %s1 = inlined_call_operand.vmem [shape: bf16[32,96], index: 1, kind: input, shape index: {}]
  %s2 = inlined_call_operand.vmem [shape: f32[1,96], index: 2, kind: input, shape index: {}]
  %s3 = inlined_call_operand.vmem [shape: bf16[32,32], index: 3, kind: input, shape index: {}]
  %s4 = inlined_call_operand.vmem [shape: f32[1,32], index: 4, kind: input, shape index: {}]
  %s5 = inlined_call_operand.vmem [shape: f32[1,32], index: 5, kind: input, shape index: {}]
  %s6 = inlined_call_operand.vmem [shape: f32[1,32], index: 6, kind: input, shape index: {}]
  %s7 = inlined_call_operand.vmem [shape: f32[2,8,32], index: 7, kind: output, shape index: {}]
  %s8 = sld [smem:[#allocation0]]
  $region38: #{transformer_forward.11} parent=0
    _
  %s10 = ssub.s32 1, %s8
  %s11 = scalar_select 0, %s10, %s8
  // Predicated region
  $region2: #{transformer_forward.11} parent=0 // pred_check
    _
  $region3: #{transformer_forward.11} parent=0 // pred_check_branch
    %13 = sbr.rel (0) target = $region5
  $region4: #{transformer_forward.11} parent=0 // pred_region
    _
  $region5: #{transformer_forward.11} parent=0 // pred_fallthru
    _
  // Predicated region
  $region6: #{transformer_forward.11} parent=0 // pred_check
    _
  $region7: #{transformer_forward.11} parent=0 // pred_check_branch
    %15 = sbr.rel (0) target = $region9
  $region8: #{transformer_forward.11} parent=0 // pred_region
    _
  $region9: #{transformer_forward.11} parent=0 // pred_fallthru
    _
  // Predicated region
  $region10: #{transformer_forward.11} parent=0 // pred_check
    _
  $region11: #{transformer_forward.11} parent=0 // pred_check_branch
    %17 = sbr.rel (0) target = $region13
  $region12: #{transformer_forward.11} parent=0 // pred_region
    _
  $region13: #{transformer_forward.11} parent=0 // pred_fallthru
    _
  // Predicated region
  $region14: #{transformer_forward.11} parent=0 // pred_check
    _
  $region15: #{transformer_forward.11} parent=0 // pred_check_branch
    %19 = sbr.rel (0) target = $region17
  $region16: #{transformer_forward.11} parent=0 // pred_region
    _
  $region17: #{transformer_forward.11} parent=0 // pred_fallthru
    _
  // Predicated region
  $region18: #{transformer_forward.11} parent=0 // pred_check
    _
  $region19: #{transformer_forward.11} parent=0 // pred_check_branch
    %21 = sbr.rel (0) target = $region21
  $region20: #{transformer_forward.11} parent=0 // pred_region
    _
  $region21: #{transformer_forward.11} parent=0 // pred_fallthru
    _
  // Predicated region
  $region22: #{transformer_forward.11} parent=0 // pred_check
    _
  $region23: #{transformer_forward.11} parent=0 // pred_check_branch
    %23 = sbr.rel (0) target = $region25
  $region24: #{transformer_forward.11} parent=0 // pred_region
    _
  $region25: #{transformer_forward.11} parent=0 // pred_fallthru
    _
  // Predicated region
  $region26: #{transformer_forward.11} parent=0 // pred_check
    _
  $region27: #{transformer_forward.11} parent=0 // pred_check_branch
    %25 = sbr.rel (0) target = $region29
  $region28: #{transformer_forward.11} parent=0 // pred_region
    _
  $region29: #{transformer_forward.11} parent=0 // pred_fallthru
    _
  %v27 = vld [vmem:[%s0] sm:$0xff]
  %v28 = vld [vmem:[%s0 + $0x8] sm:$0xff]
  %v29 = vld [vmem:[%s1] sm:$0xf]
  %v30 = vld [vmem:[%s1 + $0x4] sm:$0xf]
  %v31 = vld [vmem:[%s1 + $0x8] sm:$0xf]
  %v32 = vld [vmem:[%s1 + $0xc] sm:$0xf]
  %v33 = vpack.c.bf16 %v28, %v27
  %v34 = vld [vmem:[%s2] sm:$0x1]
  %v36 = vlaneseq
  %v37 = vshrl.u32 %v36, 7
  %v38 = vsub.s32 0, %v37
  %v39 = vrot.slane %v34, %v38
  %v45 = vunpack.c.l.b16 %v29
  %v46 = vunpack.c.l.b16 %v30
  %v47 = vunpack.c.l.b16 %v31
  %v48 = vunpack.c.l.b16 %v32
  %v49 = vpack.c.b16 %v46, %v45
  %v50 = vpack.c.b16 %v48, %v47
  %vm53 = vcmask 261120
  %v55 = vsel %vm53, %v33, 0
  %57 = vmatprep.subr.bf16.mxu0 0
  %58 = vmatpush1.bf16.msra.mxu0 %v49
  %59 = vmatprep.subr.bf16.mxu0 0
  %60 = vmatpush1.bf16.msra.mxu0 %v50
  %61 = vmatprep.subr.bf16.mxu0 0
  %62 = vmatpush1.bf16.msra.mxu0 0
  %63 = vmatprep.subr.bf16.mxu0 0
  %64 = vmatpush1.bf16.msra.mxu0 0
  %65 = vmatprep.subr.bf16.mxu0 0
  %66 = vmatpush1.bf16.msra.mxu0 0
  %67 = vmatprep.subr.bf16.mxu0 0
  %68 = vmatpush1.bf16.msra.mxu0 0
  %69 = vmatprep.subr.bf16.mxu0 0
  %70 = vmatpush1.bf16.msra.mxu0 0
  %71 = vmatprep.subr.bf16.mxu0 0
  %72 = vmatpush1.bf16.msra.mxu0 0
  %73 = vmatprep.subr.bf16.mxu0 0
  %74 = vmatpush1.bf16.msra.mxu0 0
  %75 = vmatprep.subr.bf16.mxu0 0
  %76 = vmatpush1.bf16.msra.mxu0 0
  %77 = vmatprep.subr.bf16.mxu0 0
  %78 = vmatpush1.bf16.msra.mxu0 0
  %79 = vmatprep.subr.bf16.mxu0 0
  %80 = vmatpush1.bf16.msra.mxu0 0
  %81 = vmatprep.subr.bf16.mxu0 0
  %82 = vmatpush1.bf16.msra.mxu0 0
  %83 = vmatprep.subr.bf16.mxu0 0
  %84 = vmatpush1.bf16.msra.mxu0 0
  %85 = vmatprep.subr.bf16.mxu0 0
  %86 = vmatpush1.bf16.msra.mxu0 0
  %87 = vmatprep.subr.bf16.mxu0 0
  %88 = vmatpush1.bf16.msra.mxu0 0
  %89 = vmatprep.mubr.bf16.mxu0 0
  %90 = vmatmul.mubr.bf16.gmra.mrb[0].mxu0 %v55
  %v91 = vpop.f32.mrb[0].mxu0
  %v92 = vadd.f32 %v39, %v91
  %v93 = vpop.f32.mrb[0].mxu0
  %v94 = vpop.f32.mrb[0].mxu0
  %v95 = vadd.f32 %v39, %v94
  %v96 = vpop.f32.mrb[0].mxu0
  %97 = vdwg.mxu0
  %v98 = vld [vmem:[%s3] sm:$0xf]
  %v99 = vld [vmem:[%s3 + $0x4] sm:$0xf]
  %v100 = vld [vmem:[%s3 + $0x8] sm:$0xf]
  %v101 = vld [vmem:[%s3 + $0xc] sm:$0xf]
  %v102 = vld [vmem:[%s4] sm:$0x1]
  %v103 = vld [vmem:[%s5] sm:$0x1]
  %v104 = vld [vmem:[%s6] sm:$0x1]
  %106 = vrot.lane.b32.xlu0 %v92, 120
  %v107 = vpop.permute.xlu0 %106
  %109 = vrot.lane.b32.xlu0 %v92, 112
  %v110 = vpop.permute.xlu0 %109
  %112 = vrot.lane.b32.xlu0 %v92, 104
  %v113 = vpop.permute.xlu0 %112
  %v115 = vcombine.low %v92, %v110
  %v116 = vcombine.high %v92, %v110
  %v118 = vunpack.c.l.s4 1983009808
  %v119 = vunpack.c.0.s8 %v118
  %v120 = vlaneseq
  %v121 = vshrl.u32 %v120, 7
  %v122 = vsub.s32 %v119, %v121
  %v123 = vrot.slane %v115, %v122
  %v125 = vunpack.c.l.s4 1983009808
  %v126 = vunpack.c.0.s8 %v125
  %v127 = vlaneseq
  %v128 = vshrl.u32 %v127, 7
  %v129 = vsub.s32 %v126, %v128
  %v130 = vrot.slane %v116, %v129
  %v131 = vcombine.low %v107, %v113
  %v132 = vcombine.high %v107, %v113
  %v134 = vunpack.c.l.s4 1983009808
  %v135 = vunpack.c.0.s8 %v134
  %v136 = vlaneseq
  %v137 = vshrl.u32 %v136, 7
  %v138 = vsub.s32 %v135, %v137
  %v139 = vrot.slane %v131, %v138
  %v141 = vunpack.c.l.s4 1983009808
  %v142 = vunpack.c.0.s8 %v141
  %v143 = vlaneseq
  %v144 = vshrl.u32 %v143, 7
  %v145 = vsub.s32 %v142, %v144
  %v146 = vrot.slane %v132, %v145
  %v147 = vcombine.low %v123, %v139
  %v148 = vcombine.high %v123, %v139
  %v150 = vunpack.c.l.s4 1934713408
  %v151 = vunpack.c.0.s8 %v150
  %v152 = vlaneseq
  %v153 = vshrl.u32 %v152, 7
  %v154 = vsub.s32 %v151, %v153
  %v155 = vrot.slane %v147, %v154
  %v157 = vunpack.c.l.s4 1934713408
  %v158 = vunpack.c.0.s8 %v157
  %v159 = vlaneseq
  %v160 = vshrl.u32 %v159, 7
  %v161 = vsub.s32 %v158, %v160
  %v162 = vrot.slane %v148, %v161
  %v163 = vcombine.low %v130, %v146
  %v164 = vcombine.high %v130, %v146
  %v166 = vunpack.c.l.s4 1934713408
  %v167 = vunpack.c.0.s8 %v166
  %v168 = vlaneseq
  %v169 = vshrl.u32 %v168, 7
  %v170 = vsub.s32 %v167, %v169
  %v171 = vrot.slane %v163, %v170
  %v173 = vunpack.c.l.s4 1934713408
  %v174 = vunpack.c.0.s8 %v173
  %v175 = vlaneseq
  %v176 = vshrl.u32 %v175, 7
  %v177 = vsub.s32 %v174, %v176
  %v178 = vrot.slane %v164, %v177
  %v179 = vcombine.high %v155, 0.0
  %v180 = vcombine.high %v162, 0.0
  %v181 = vcombine.high %v171, 0.0
  %v182 = vcombine.high %v178, 0.0
  %v183 = vcombine.low %v155, %v162
  %v185 = vunpack.c.l.s4 1983009808
  %v186 = vunpack.c.0.s8 %v185
  %v187 = vlaneseq
  %v188 = vshrl.u32 %v187, 7
  %v189 = vsub.s32 %v186, %v188
  %v190 = vrot.slane %v183, %v189
  %v191 = vcombine.low %v179, %v180
  %v193 = vunpack.c.l.s4 1983009808
  %v194 = vunpack.c.0.s8 %v193
  %v195 = vlaneseq
  %v196 = vshrl.u32 %v195, 7
  %v197 = vsub.s32 %v194, %v196
  %v198 = vrot.slane %v191, %v197
  %v199 = vcombine.low %v171, %v178
  %v201 = vunpack.c.l.s4 1983009808
  %v202 = vunpack.c.0.s8 %v201
  %v203 = vlaneseq
  %v204 = vshrl.u32 %v203, 7
  %v205 = vsub.s32 %v202, %v204
  %v206 = vrot.slane %v199, %v205
  %v207 = vcombine.low %v181, %v182
  %v209 = vunpack.c.l.s4 1983009808
  %v210 = vunpack.c.0.s8 %v209
  %v211 = vlaneseq
  %v212 = vshrl.u32 %v211, 7
  %v213 = vsub.s32 %v210, %v212
  %v214 = vrot.slane %v207, %v213
  %v215 = vcombine.low %v190, %v198
  %v216 = vcombine.high %v190, %v198
  %v218 = vunpack.c.l.s4 1934713408
  %v219 = vunpack.c.0.s8 %v218
  %v220 = vlaneseq
  %v221 = vshrl.u32 %v220, 7
  %v222 = vsub.s32 %v219, %v221
  %v223 = vrot.slane %v215, %v222
  %v225 = vunpack.c.l.s4 1934713408
  %v226 = vunpack.c.0.s8 %v225
  %v227 = vlaneseq
  %v228 = vshrl.u32 %v227, 7
  %v229 = vsub.s32 %v226, %v228
  %v230 = vrot.slane %v216, %v229
  %v231 = vcombine.low %v206, %v214
  %v232 = vcombine.high %v206, %v214
  %v234 = vunpack.c.l.s4 1934713408
  %v235 = vunpack.c.0.s8 %v234
  %v236 = vlaneseq
  %v237 = vshrl.u32 %v236, 7
  %v238 = vsub.s32 %v235, %v237
  %v239 = vrot.slane %v231, %v238
  %v241 = vunpack.c.l.s4 1934713408
  %v242 = vunpack.c.0.s8 %v241
  %v243 = vlaneseq
  %v244 = vshrl.u32 %v243, 7
  %v245 = vsub.s32 %v242, %v244
  %v246 = vrot.slane %v232, %v245
  %v247 = vcombine.low %v223, %v239
  %v248 = vcombine.high %v223, %v239
  %v249 = vcombine.low %v230, %v246
  %v250 = vcombine.high %v230, %v246
  %v251 = vpack.c.bf16 %v247, %v247
  %v252 = vpack.c.bf16 %v248, %v248
  %v253 = vpack.c.bf16 %v249, %v249
  %v254 = vpack.c.bf16 %v250, %v250
  %255 = vrot.lane.b32.xlu0 %v92, 96
  %v256 = vpop.permute.xlu0 %255
  %257 = vrot.lane.b32.xlu0 %v107, 96
  %v258 = vpop.permute.xlu0 %257
  %259 = vrot.lane.b32.xlu0 %v110, 96
  %v260 = vpop.permute.xlu0 %259
  %261 = vrot.lane.b32.xlu0 %v113, 96
  %v262 = vpop.permute.xlu0 %261
  %v267 = vcombine.low %v256, %v260
  %v268 = vcombine.high %v256, %v260
  %v270 = vunpack.c.l.s4 1983009808
  %v271 = vunpack.c.0.s8 %v270
  %v272 = vlaneseq
  %v273 = vshrl.u32 %v272, 7
  %v274 = vsub.s32 %v271, %v273
  %v275 = vrot.slane %v267, %v274
  %v277 = vunpack.c.l.s4 1983009808
  %v278 = vunpack.c.0.s8 %v277
  %v279 = vlaneseq
  %v280 = vshrl.u32 %v279, 7
  %v281 = vsub.s32 %v278, %v280
  %v282 = vrot.slane %v268, %v281
  %v283 = vcombine.low %v258, %v262
  %v284 = vcombine.high %v258, %v262
  %v286 = vunpack.c.l.s4 1983009808
  %v287 = vunpack.c.0.s8 %v286
  %v288 = vlaneseq
  %v289 = vshrl.u32 %v288, 7
  %v290 = vsub.s32 %v287, %v289
  %v291 = vrot.slane %v283, %v290
  %v293 = vunpack.c.l.s4 1983009808
  %v294 = vunpack.c.0.s8 %v293
  %v295 = vlaneseq
  %v296 = vshrl.u32 %v295, 7
  %v297 = vsub.s32 %v294, %v296
  %v298 = vrot.slane %v284, %v297
  %v299 = vcombine.low %v275, %v291
  %v300 = vcombine.high %v275, %v291
  %v302 = vunpack.c.l.s4 1934713408
  %v303 = vunpack.c.0.s8 %v302
  %v304 = vlaneseq
  %v305 = vshrl.u32 %v304, 7
  %v306 = vsub.s32 %v303, %v305
  %v307 = vrot.slane %v299, %v306
  %v309 = vunpack.c.l.s4 1934713408
  %v310 = vunpack.c.0.s8 %v309
  %v311 = vlaneseq
  %v312 = vshrl.u32 %v311, 7
  %v313 = vsub.s32 %v310, %v312
  %v314 = vrot.slane %v300, %v313
  %v315 = vcombine.low %v282, %v298
  %v316 = vcombine.high %v282, %v298
  %v318 = vunpack.c.l.s4 1934713408
  %v319 = vunpack.c.0.s8 %v318
  %v320 = vlaneseq
  %v321 = vshrl.u32 %v320, 7
  %v322 = vsub.s32 %v319, %v321
  %v323 = vrot.slane %v315, %v322
  %v325 = vunpack.c.l.s4 1934713408
  %v326 = vunpack.c.0.s8 %v325
  %v327 = vlaneseq
  %v328 = vshrl.u32 %v327, 7
  %v329 = vsub.s32 %v326, %v328
  %v330 = vrot.slane %v316, %v329
  %v331 = vcombine.high %v307, 0.0
  %v332 = vcombine.high %v314, 0.0
  %v333 = vcombine.high %v323, 0.0
  %v334 = vcombine.high %v330, 0.0
  %v335 = vcombine.low %v307, %v314
  %v337 = vunpack.c.l.s4 1983009808
  %v338 = vunpack.c.0.s8 %v337
  %v339 = vlaneseq
  %v340 = vshrl.u32 %v339, 7
  %v341 = vsub.s32 %v338, %v340
  %v342 = vrot.slane %v335, %v341
  %v343 = vcombine.low %v331, %v332
  %v345 = vunpack.c.l.s4 1983009808
  %v346 = vunpack.c.0.s8 %v345
  %v347 = vlaneseq
  %v348 = vshrl.u32 %v347, 7
  %v349 = vsub.s32 %v346, %v348
  %v350 = vrot.slane %v343, %v349
  %v351 = vcombine.low %v323, %v330
  %v353 = vunpack.c.l.s4 1983009808
  %v354 = vunpack.c.0.s8 %v353
  %v355 = vlaneseq
  %v356 = vshrl.u32 %v355, 7
  %v357 = vsub.s32 %v354, %v356
  %v358 = vrot.slane %v351, %v357
  %v359 = vcombine.low %v333, %v334
  %v361 = vunpack.c.l.s4 1983009808
  %v362 = vunpack.c.0.s8 %v361
  %v363 = vlaneseq
  %v364 = vshrl.u32 %v363, 7
  %v365 = vsub.s32 %v362, %v364
  %v366 = vrot.slane %v359, %v365
  %v367 = vcombine.low %v342, %v350
  %v368 = vcombine.high %v342, %v350
  %v370 = vunpack.c.l.s4 1934713408
  %v371 = vunpack.c.0.s8 %v370
  %v372 = vlaneseq
  %v373 = vshrl.u32 %v372, 7
  %v374 = vsub.s32 %v371, %v373
  %v375 = vrot.slane %v367, %v374
  %v377 = vunpack.c.l.s4 1934713408
  %v378 = vunpack.c.0.s8 %v377
  %v379 = vlaneseq
  %v380 = vshrl.u32 %v379, 7
  %v381 = vsub.s32 %v378, %v380
  %v382 = vrot.slane %v368, %v381
  %v383 = vcombine.low %v358, %v366
  %v384 = vcombine.high %v358, %v366
  %v386 = vunpack.c.l.s4 1934713408
  %v387 = vunpack.c.0.s8 %v386
  %v388 = vlaneseq
  %v389 = vshrl.u32 %v388, 7
  %v390 = vsub.s32 %v387, %v389
  %v391 = vrot.slane %v383, %v390
  %v393 = vunpack.c.l.s4 1934713408
  %v394 = vunpack.c.0.s8 %v393
  %v395 = vlaneseq
  %v396 = vshrl.u32 %v395, 7
  %v397 = vsub.s32 %v394, %v396
  %v398 = vrot.slane %v384, %v397
  %v399 = vcombine.low %v375, %v391
  %v400 = vcombine.high %v375, %v391
  %v401 = vcombine.low %v382, %v398
  %v402 = vcombine.high %v382, %v398
  %v403 = vpack.c.bf16 %v399, %v399
  %v404 = vpack.c.bf16 %v400, %v400
  %v405 = vpack.c.bf16 %v401, %v401
  %v406 = vpack.c.bf16 %v402, %v402
  %407 = vrot.lane.b32.xlu0 %v92, 64
  %v408 = vpop.permute.xlu0 %407
  %409 = vrot.lane.b32.xlu0 %v107, 64
  %v410 = vpop.permute.xlu0 %409
  %411 = vrot.lane.b32.xlu0 %v110, 64
  %v412 = vpop.permute.xlu0 %411
  %413 = vrot.lane.b32.xlu0 %v113, 64
  %v414 = vpop.permute.xlu0 %413
  %v419 = vcombine.low %v408, %v412
  %v420 = vcombine.high %v408, %v412
  %v422 = vunpack.c.l.s4 1983009808
  %v423 = vunpack.c.0.s8 %v422
  %v424 = vlaneseq
  %v425 = vshrl.u32 %v424, 7
  %v426 = vsub.s32 %v423, %v425
  %v427 = vrot.slane %v419, %v426
  %v429 = vunpack.c.l.s4 1983009808
  %v430 = vunpack.c.0.s8 %v429
  %v431 = vlaneseq
  %v432 = vshrl.u32 %v431, 7
  %v433 = vsub.s32 %v430, %v432
  %v434 = vrot.slane %v420, %v433
  %v435 = vcombine.low %v410, %v414
  %v436 = vcombine.high %v410, %v414
  %v438 = vunpack.c.l.s4 1983009808
  %v439 = vunpack.c.0.s8 %v438
  %v440 = vlaneseq
  %v441 = vshrl.u32 %v440, 7
  %v442 = vsub.s32 %v439, %v441
  %v443 = vrot.slane %v435, %v442
  %v445 = vunpack.c.l.s4 1983009808
  %v446 = vunpack.c.0.s8 %v445
  %v447 = vlaneseq
  %v448 = vshrl.u32 %v447, 7
  %v449 = vsub.s32 %v446, %v448
  %v450 = vrot.slane %v436, %v449
  %v451 = vcombine.low %v427, %v443
  %v452 = vcombine.high %v427, %v443
  %v454 = vunpack.c.l.s4 1934713408
  %v455 = vunpack.c.0.s8 %v454
  %v456 = vlaneseq
  %v457 = vshrl.u32 %v456, 7
  %v458 = vsub.s32 %v455, %v457
  %v459 = vrot.slane %v451, %v458
  %v461 = vunpack.c.l.s4 1934713408
  %v462 = vunpack.c.0.s8 %v461
  %v463 = vlaneseq
  %v464 = vshrl.u32 %v463, 7
  %v465 = vsub.s32 %v462, %v464
  %v466 = vrot.slane %v452, %v465
  %v467 = vcombine.low %v434, %v450
  %v468 = vcombine.high %v434, %v450
  %v470 = vunpack.c.l.s4 1934713408
  %v471 = vunpack.c.0.s8 %v470
  %v472 = vlaneseq
  %v473 = vshrl.u32 %v472, 7
  %v474 = vsub.s32 %v471, %v473
  %v475 = vrot.slane %v467, %v474
  %v477 = vunpack.c.l.s4 1934713408
  %v478 = vunpack.c.0.s8 %v477
  %v479 = vlaneseq
  %v480 = vshrl.u32 %v479, 7
  %v481 = vsub.s32 %v478, %v480
  %v482 = vrot.slane %v468, %v481
  %v483 = vcombine.high %v459, 0.0
  %v484 = vcombine.high %v466, 0.0
  %v485 = vcombine.high %v475, 0.0
  %v486 = vcombine.high %v482, 0.0
  %v487 = vcombine.low %v459, %v466
  %v489 = vunpack.c.l.s4 1983009808
  %v490 = vunpack.c.0.s8 %v489
  %v491 = vlaneseq
  %v492 = vshrl.u32 %v491, 7
  %v493 = vsub.s32 %v490, %v492
  %v494 = vrot.slane %v487, %v493
  %v495 = vcombine.low %v483, %v484
  %v497 = vunpack.c.l.s4 1983009808
  %v498 = vunpack.c.0.s8 %v497
  %v499 = vlaneseq
  %v500 = vshrl.u32 %v499, 7
  %v501 = vsub.s32 %v498, %v500
  %v502 = vrot.slane %v495, %v501
  %v503 = vcombine.low %v475, %v482
  %v505 = vunpack.c.l.s4 1983009808
  %v506 = vunpack.c.0.s8 %v505
  %v507 = vlaneseq
  %v508 = vshrl.u32 %v507, 7
  %v509 = vsub.s32 %v506, %v508
  %v510 = vrot.slane %v503, %v509
  %v511 = vcombine.low %v485, %v486
  %v513 = vunpack.c.l.s4 1983009808
  %v514 = vunpack.c.0.s8 %v513
  %v515 = vlaneseq
  %v516 = vshrl.u32 %v515, 7
  %v517 = vsub.s32 %v514, %v516
  %v518 = vrot.slane %v511, %v517
  %v519 = vcombine.low %v494, %v502
  %v520 = vcombine.high %v494, %v502
  %v522 = vunpack.c.l.s4 1934713408
  %v523 = vunpack.c.0.s8 %v522
  %v524 = vlaneseq
  %v525 = vshrl.u32 %v524, 7
  %v526 = vsub.s32 %v523, %v525
  %v527 = vrot.slane %v519, %v526
  %v529 = vunpack.c.l.s4 1934713408
  %v530 = vunpack.c.0.s8 %v529
  %v531 = vlaneseq
  %v532 = vshrl.u32 %v531, 7
  %v533 = vsub.s32 %v530, %v532
  %v534 = vrot.slane %v520, %v533
  %v535 = vcombine.low %v510, %v518
  %v536 = vcombine.high %v510, %v518
  %v538 = vunpack.c.l.s4 1934713408
  %v539 = vunpack.c.0.s8 %v538
  %v540 = vlaneseq
  %v541 = vshrl.u32 %v540, 7
  %v542 = vsub.s32 %v539, %v541
  %v543 = vrot.slane %v535, %v542
  %v545 = vunpack.c.l.s4 1934713408
  %v546 = vunpack.c.0.s8 %v545
  %v547 = vlaneseq
  %v548 = vshrl.u32 %v547, 7
  %v549 = vsub.s32 %v546, %v548
  %v550 = vrot.slane %v536, %v549
  %v551 = vcombine.low %v527, %v543
  %v552 = vcombine.high %v527, %v543
  %v553 = vcombine.low %v534, %v550
  %v554 = vcombine.high %v534, %v550
  %v555 = vpack.c.bf16 %v551, %v551
  %v556 = vpack.c.bf16 %v552, %v552
  %v557 = vpack.c.bf16 %v553, %v553
  %v558 = vpack.c.bf16 %v554, %v554
  %vm559 = vcmask 64512
  %v561 = vsel %vm559, %v251, 0
  %v564 = vsel %vm559, %v403, 0
  %566 = vmatprep.subr.bf16.mxu0 0
  %567 = vmatpush1.bf16.xpose.msra.mxu0 %v564
  %568 = vmatprep.subr.bf16.mxu0 0
  %569 = vmatpush1.bf16.xpose.msra.mxu0 0
  %570 = vmatprep.subr.bf16.mxu0 0
  %571 = vmatpush1.bf16.xpose.msra.mxu0 0
  %572 = vmatprep.subr.bf16.mxu0 0
  %573 = vmatpush1.bf16.xpose.msra.mxu0 0
  %574 = vmatprep.subr.bf16.mxu0 0
  %575 = vmatpush1.bf16.xpose.msra.mxu0 0
  %576 = vmatprep.subr.bf16.mxu0 0
  %577 = vmatpush1.bf16.xpose.msra.mxu0 0
  %578 = vmatprep.subr.bf16.mxu0 0
  %579 = vmatpush1.bf16.xpose.msra.mxu0 0
  %580 = vmatprep.subr.bf16.mxu0 0
  %581 = vmatpush1.bf16.xpose.msra.mxu0 0
  %582 = vmatprep.subr.bf16.mxu0 0
  %583 = vmatpush1.bf16.xpose.msra.mxu0 0
  %584 = vmatprep.subr.bf16.mxu0 0
  %585 = vmatpush1.bf16.xpose.msra.mxu0 0
  %586 = vmatprep.subr.bf16.mxu0 0
  %587 = vmatpush1.bf16.xpose.msra.mxu0 0
  %588 = vmatprep.subr.bf16.mxu0 0
  %589 = vmatpush1.bf16.xpose.msra.mxu0 0
  %590 = vmatprep.subr.bf16.mxu0 0
  %591 = vmatpush1.bf16.xpose.msra.mxu0 0
  %592 = vmatprep.subr.bf16.mxu0 0
  %593 = vmatpush1.bf16.xpose.msra.mxu0 0
  %594 = vmatprep.subr.bf16.mxu0 0
  %595 = vmatpush1.bf16.xpose.msra.mxu0 0
  %596 = vmatprep.subr.bf16.mxu0 0
  %597 = vmatpush1.bf16.xpose.msra.mxu0 0
  %598 = vmatprep.mubr.bf16.mxu0 0
  %599 = vmatmul.mubr.bf16.gmra.mrb[0].mxu0 %v561
  %v600 = vpop.f32.mrb[0].mxu0
  %v601 = vadd.f32 0.0, %v600
  %v602 = vpop.f32.mrb[0].mxu0
  %v603 = vpop.f32.mrb[0].mxu0
  %v604 = vpop.f32.mrb[0].mxu0
  %605 = vdwg.mxu0
  %v607 = vsel %vm559, %v252, 0
  %v610 = vsel %vm559, %v404, 0
  %612 = vmatprep.subr.bf16.mxu0 0
  %613 = vmatpush1.bf16.xpose.msra.mxu0 %v610
  %614 = vmatprep.subr.bf16.mxu0 0
  %615 = vmatpush1.bf16.xpose.msra.mxu0 0
  %616 = vmatprep.subr.bf16.mxu0 0
  %617 = vmatpush1.bf16.xpose.msra.mxu0 0
  %618 = vmatprep.subr.bf16.mxu0 0
  %619 = vmatpush1.bf16.xpose.msra.mxu0 0
  %620 = vmatprep.subr.bf16.mxu0 0
  %621 = vmatpush1.bf16.xpose.msra.mxu0 0
  %622 = vmatprep.subr.bf16.mxu0 0
  %623 = vmatpush1.bf16.xpose.msra.mxu0 0
  %624 = vmatprep.subr.bf16.mxu0 0
  %625 = vmatpush1.bf16.xpose.msra.mxu0 0
  %626 = vmatprep.subr.bf16.mxu0 0
  %627 = vmatpush1.bf16.xpose.msra.mxu0 0
  %628 = vmatprep.subr.bf16.mxu0 0
  %629 = vmatpush1.bf16.xpose.msra.mxu0 0
  %630 = vmatprep.subr.bf16.mxu0 0
  %631 = vmatpush1.bf16.xpose.msra.mxu0 0
  %632 = vmatprep.subr.bf16.mxu0 0
  %633 = vmatpush1.bf16.xpose.msra.mxu0 0
  %634 = vmatprep.subr.bf16.mxu0 0
  %635 = vmatpush1.bf16.xpose.msra.mxu0 0
  %636 = vmatprep.subr.bf16.mxu0 0
  %637 = vmatpush1.bf16.xpose.msra.mxu0 0
  %638 = vmatprep.subr.bf16.mxu0 0
  %639 = vmatpush1.bf16.xpose.msra.mxu0 0
  %640 = vmatprep.subr.bf16.mxu0 0
  %641 = vmatpush1.bf16.xpose.msra.mxu0 0
  %642 = vmatprep.subr.bf16.mxu0 0
  %643 = vmatpush1.bf16.xpose.msra.mxu0 0
  %644 = vmatprep.mubr.bf16.mxu0 0
  %645 = vmatmul.mubr.bf16.gmra.mrb[0].mxu0 %v607
  %v646 = vpop.f32.mrb[0].mxu0
  %v647 = vadd.f32 0.0, %v646
  %v648 = vpop.f32.mrb[0].mxu0
  %v649 = vpop.f32.mrb[0].mxu0
  %v650 = vpop.f32.mrb[0].mxu0
  %651 = vdwg.mxu0
  %v653 = vsel %vm559, %v253, 0
  %v656 = vsel %vm559, %v405, 0
  %658 = vmatprep.subr.bf16.mxu0 0
  %659 = vmatpush1.bf16.xpose.msra.mxu0 %v656
  %660 = vmatprep.subr.bf16.mxu0 0
  %661 = vmatpush1.bf16.xpose.msra.mxu0 0
  %662 = vmatprep.subr.bf16.mxu0 0
  %663 = vmatpush1.bf16.xpose.msra.mxu0 0
  %664 = vmatprep.subr.bf16.mxu0 0
  %665 = vmatpush1.bf16.xpose.msra.mxu0 0
  %666 = vmatprep.subr.bf16.mxu0 0
  %667 = vmatpush1.bf16.xpose.msra.mxu0 0
  %668 = vmatprep.subr.bf16.mxu0 0
  %669 = vmatpush1.bf16.xpose.msra.mxu0 0
  %670 = vmatprep.subr.bf16.mxu0 0
  %671 = vmatpush1.bf16.xpose.msra.mxu0 0
  %672 = vmatprep.subr.bf16.mxu0 0
  %673 = vmatpush1.bf16.xpose.msra.mxu0 0
  %674 = vmatprep.subr.bf16.mxu0 0
  %675 = vmatpush1.bf16.xpose.msra.mxu0 0
  %676 = vmatprep.subr.bf16.mxu0 0
  %677 = vmatpush1.bf16.xpose.msra.mxu0 0
  %678 = vmatprep.subr.bf16.mxu0 0
  %679 = vmatpush1.bf16.xpose.msra.mxu0 0
  %680 = vmatprep.subr.bf16.mxu0 0
  %681 = vmatpush1.bf16.xpose.msra.mxu0 0
  %682 = vmatprep.subr.bf16.mxu0 0
  %683 = vmatpush1.bf16.xpose.msra.mxu0 0
  %684 = vmatprep.subr.bf16.mxu0 0
  %685 = vmatpush1.bf16.xpose.msra.mxu0 0
  %686 = vmatprep.subr.bf16.mxu0 0
  %687 = vmatpush1.bf16.xpose.msra.mxu0 0
  %688 = vmatprep.subr.bf16.mxu0 0
  %689 = vmatpush1.bf16.xpose.msra.mxu0 0
  %690 = vmatprep.mubr.bf16.mxu0 0
  %691 = vmatmul.mubr.bf16.gmra.mrb[0].mxu0 %v653
  %v692 = vpop.f32.mrb[0].mxu0
  %v693 = vadd.f32 0.0, %v692
  %v694 = vpop.f32.mrb[0].mxu0
  %v695 = vpop.f32.mrb[0].mxu0
  %v696 = vpop.f32.mrb[0].mxu0
  %697 = vdwg.mxu0
  %v699 = vsel %vm559, %v254, 0
  %v702 = vsel %vm559, %v406, 0
  %704 = vmatprep.subr.bf16.mxu0 0
  %705 = vmatpush1.bf16.xpose.msra.mxu0 %v702
  %706 = vmatprep.subr.bf16.mxu0 0
  %707 = vmatpush1.bf16.xpose.msra.mxu0 0
  %708 = vmatprep.subr.bf16.mxu0 0
  %709 = vmatpush1.bf16.xpose.msra.mxu0 0
  %710 = vmatprep.subr.bf16.mxu0 0
  %711 = vmatpush1.bf16.xpose.msra.mxu0 0
  %712 = vmatprep.subr.bf16.mxu0 0
  %713 = vmatpush1.bf16.xpose.msra.mxu0 0
  %714 = vmatprep.subr.bf16.mxu0 0
  %715 = vmatpush1.bf16.xpose.msra.mxu0 0
  %716 = vmatprep.subr.bf16.mxu0 0
  %717 = vmatpush1.bf16.xpose.msra.mxu0 0
  %718 = vmatprep.subr.bf16.mxu0 0
  %719 = vmatpush1.bf16.xpose.msra.mxu0 0
  %720 = vmatprep.subr.bf16.mxu0 0
  %721 = vmatpush1.bf16.xpose.msra.mxu0 0
  %722 = vmatprep.subr.bf16.mxu0 0
  %723 = vmatpush1.bf16.xpose.msra.mxu0 0
  %724 = vmatprep.subr.bf16.mxu0 0
  %725 = vmatpush1.bf16.xpose.msra.mxu0 0
  %726 = vmatprep.subr.bf16.mxu0 0
  %727 = vmatpush1.bf16.xpose.msra.mxu0 0
  %728 = vmatprep.subr.bf16.mxu0 0
  %729 = vmatpush1.bf16.xpose.msra.mxu0 0
  %730 = vmatprep.subr.bf16.mxu0 0
  %731 = vmatpush1.bf16.xpose.msra.mxu0 0
  %732 = vmatprep.subr.bf16.mxu0 0
  %733 = vmatpush1.bf16.xpose.msra.mxu0 0
  %734 = vmatprep.subr.bf16.mxu0 0
  %735 = vmatpush1.bf16.xpose.msra.mxu0 0
  %736 = vmatprep.mubr.bf16.mxu0 0
  %737 = vmatmul.mubr.bf16.gmra.mrb[0].mxu0 %v699
  %v738 = vpop.f32.mrb[0].mxu0
  %v739 = vadd.f32 0.0, %v738
  %v740 = vpop.f32.mrb[0].mxu0
  %v741 = vpop.f32.mrb[0].mxu0
  %v742 = vpop.f32.mrb[0].mxu0
  %743 = vdwg.mxu0
  %v744 = vsel %vm559, %v601, -inf
  %745 = vmax.xlane.f32.xlu0 %v744
  %v746 = vpop.xlane.xlu0 %745
  %v747 = vsel %vm559, %v647, -inf
  %748 = vmax.xlane.f32.xlu0 %v747
  %v749 = vpop.xlane.xlu0 %748
  %v750 = vsel %vm559, %v693, -inf
  %751 = vmax.xlane.f32.xlu0 %v750
  %v752 = vpop.xlane.xlu0 %751
  %v753 = vsel %vm559, %v739, -inf
  %754 = vmax.xlane.f32.xlu0 %v753
  %v755 = vpop.xlane.xlu0 %754
  %v756 = vsub.f32 %v601, %v746
  %v757 = vsub.f32 %v647, %v749
  %v758 = vsub.f32 %v693, %v752
  %v759 = vsub.f32 %v739, %v755
  %v760 = vmul.f32 %v756, 1.442695
  %v761 = vpow.pop %v760
  %v762 = vmul.f32 %v757, 1.442695
  %v763 = vpow.pop %v762
  %v764 = vmul.f32 %v758, 1.442695
  %v765 = vpow.pop %v764
  %v766 = vmul.f32 %v759, 1.442695
  %v767 = vpow.pop %v766
  %v768 = vsel %vm559, %v761, 0.0
  %769 = vadd.xlane.f32.xlu0 %v768
  %v770 = vpop.xlane.xlu0 %769
  %v771 = vsel %vm559, %v763, 0.0
  %772 = vadd.xlane.f32.xlu0 %v771
  %v773 = vpop.xlane.xlu0 %772
  %v774 = vsel %vm559, %v765, 0.0
  %775 = vadd.xlane.f32.xlu0 %v774
  %v776 = vpop.xlane.xlu0 %775
  %v777 = vsel %vm559, %v767, 0.0
  %778 = vadd.xlane.f32.xlu0 %v777
  %v779 = vpop.xlane.xlu0 %778
  %v780 = vrcp.pop %v770
  %v781 = vrcp.pop %v773
  %v782 = vrcp.pop %v776
  %v783 = vrcp.pop %v779
  %v784 = vmul.f32 %v761, %v780
  %v785 = vmul.f32 %v763, %v781
  %v786 = vmul.f32 %v765, %v782
  %v787 = vmul.f32 %v767, %v783
  %v788 = vpack.c.bf16 %v784, %v784
  %v789 = vpack.c.bf16 %v785, %v785
  %v790 = vpack.c.bf16 %v786, %v786
  %v791 = vpack.c.bf16 %v787, %v787
  %v793 = vsel %vm559, %v788, 0
  %vm795 = vcmask 1043456
  %v797 = vsel %vm795, %v555, 0
  %799 = vmatprep.subr.bf16.mxu0 0
  %800 = vmatpush1.bf16.msra.mxu0 %v797
  %801 = vmatprep.subr.bf16.mxu0 0
  %802 = vmatpush1.bf16.msra.mxu0 0
  %803 = vmatprep.subr.bf16.mxu0 0
  %804 = vmatpush1.bf16.msra.mxu0 0
  %805 = vmatprep.subr.bf16.mxu0 0
  %806 = vmatpush1.bf16.msra.mxu0 0
  %807 = vmatprep.subr.bf16.mxu0 0
  %808 = vmatpush1.bf16.msra.mxu0 0
  %809 = vmatprep.subr.bf16.mxu0 0
  %810 = vmatpush1.bf16.msra.mxu0 0
  %811 = vmatprep.subr.bf16.mxu0 0
  %812 = vmatpush1.bf16.msra.mxu0 0
  %813 = vmatprep.subr.bf16.mxu0 0
  %814 = vmatpush1.bf16.msra.mxu0 0
  %815 = vmatprep.subr.bf16.mxu0 0
  %816 = vmatpush1.bf16.msra.mxu0 0
  %817 = vmatprep.subr.bf16.mxu0 0
  %818 = vmatpush1.bf16.msra.mxu0 0
  %819 = vmatprep.subr.bf16.mxu0 0
  %820 = vmatpush1.bf16.msra.mxu0 0
  %821 = vmatprep.subr.bf16.mxu0 0
  %822 = vmatpush1.bf16.msra.mxu0 0
  %823 = vmatprep.subr.bf16.mxu0 0
  %824 = vmatpush1.bf16.msra.mxu0 0
  %825 = vmatprep.subr.bf16.mxu0 0
  %826 = vmatpush1.bf16.msra.mxu0 0
  %827 = vmatprep.subr.bf16.mxu0 0
  %828 = vmatpush1.bf16.msra.mxu0 0
  %829 = vmatprep.subr.bf16.mxu0 0
  %830 = vmatpush1.bf16.msra.mxu0 0
  %831 = vmatprep.mubr.bf16.mxu0 0
  %832 = vmatmul.mubr.bf16.gmra.mrb[0].mxu0 %v793
  %v833 = vpop.f32.mrb[0].mxu0
  %v834 = vadd.f32 0.0, %v833
  %v835 = vpop.f32.mrb[0].mxu0
  %v836 = vpop.f32.mrb[0].mxu0
  %v837 = vpop.f32.mrb[0].mxu0
  %838 = vdwg.mxu0
  %v840 = vsel %vm559, %v789, 0
  %v843 = vsel %vm795, %v556, 0
  %845 = vmatprep.subr.bf16.mxu0 0
  %846 = vmatpush1.bf16.msra.mxu0 %v843
  %847 = vmatprep.subr.bf16.mxu0 0
  %848 = vmatpush1.bf16.msra.mxu0 0
  %849 = vmatprep.subr.bf16.mxu0 0
  %850 = vmatpush1.bf16.msra.mxu0 0
  %851 = vmatprep.subr.bf16.mxu0 0
  %852 = vmatpush1.bf16.msra.mxu0 0
  %853 = vmatprep.subr.bf16.mxu0 0
  %854 = vmatpush1.bf16.msra.mxu0 0
  %855 = vmatprep.subr.bf16.mxu0 0
  %856 = vmatpush1.bf16.msra.mxu0 0
  %857 = vmatprep.subr.bf16.mxu0 0
  %858 = vmatpush1.bf16.msra.mxu0 0
  %859 = vmatprep.subr.bf16.mxu0 0
  %860 = vmatpush1.bf16.msra.mxu0 0
  %861 = vmatprep.subr.bf16.mxu0 0
  %862 = vmatpush1.bf16.msra.mxu0 0
  %863 = vmatprep.subr.bf16.mxu0 0
  %864 = vmatpush1.bf16.msra.mxu0 0
  %865 = vmatprep.subr.bf16.mxu0 0
  %866 = vmatpush1.bf16.msra.mxu0 0
  %867 = vmatprep.subr.bf16.mxu0 0
  %868 = vmatpush1.bf16.msra.mxu0 0
  %869 = vmatprep.subr.bf16.mxu0 0
  %870 = vmatpush1.bf16.msra.mxu0 0
  %871 = vmatprep.subr.bf16.mxu0 0
  %872 = vmatpush1.bf16.msra.mxu0 0
  %873 = vmatprep.subr.bf16.mxu0 0
  %874 = vmatpush1.bf16.msra.mxu0 0
  %875 = vmatprep.subr.bf16.mxu0 0
  %876 = vmatpush1.bf16.msra.mxu0 0
  %877 = vmatprep.mubr.bf16.mxu0 0
  %878 = vmatmul.mubr.bf16.gmra.mrb[0].mxu0 %v840
  %v879 = vpop.f32.mrb[0].mxu0
  %v880 = vadd.f32 0.0, %v879
  %v881 = vpop.f32.mrb[0].mxu0
  %v882 = vpop.f32.mrb[0].mxu0
  %v883 = vpop.f32.mrb[0].mxu0
  %884 = vdwg.mxu0
  %v886 = vsel %vm559, %v790, 0
  %v889 = vsel %vm795, %v557, 0
  %891 = vmatprep.subr.bf16.mxu0 0
  %892 = vmatpush1.bf16.msra.mxu0 %v889
  %893 = vmatprep.subr.bf16.mxu0 0
  %894 = vmatpush1.bf16.msra.mxu0 0
  %895 = vmatprep.subr.bf16.mxu0 0
  %896 = vmatpush1.bf16.msra.mxu0 0
  %897 = vmatprep.subr.bf16.mxu0 0
  %898 = vmatpush1.bf16.msra.mxu0 0
  %899 = vmatprep.subr.bf16.mxu0 0
  %900 = vmatpush1.bf16.msra.mxu0 0
  %901 = vmatprep.subr.bf16.mxu0 0
  %902 = vmatpush1.bf16.msra.mxu0 0
  %903 = vmatprep.subr.bf16.mxu0 0
  %904 = vmatpush1.bf16.msra.mxu0 0
  %905 = vmatprep.subr.bf16.mxu0 0
  %906 = vmatpush1.bf16.msra.mxu0 0
  %907 = vmatprep.subr.bf16.mxu0 0
  %908 = vmatpush1.bf16.msra.mxu0 0
  %909 = vmatprep.subr.bf16.mxu0 0
  %910 = vmatpush1.bf16.msra.mxu0 0
  %911 = vmatprep.subr.bf16.mxu0 0
  %912 = vmatpush1.bf16.msra.mxu0 0
  %913 = vmatprep.subr.bf16.mxu0 0
  %914 = vmatpush1.bf16.msra.mxu0 0
  %915 = vmatprep.subr.bf16.mxu0 0
  %916 = vmatpush1.bf16.msra.mxu0 0
  %917 = vmatprep.subr.bf16.mxu0 0
  %918 = vmatpush1.bf16.msra.mxu0 0
  %919 = vmatprep.subr.bf16.mxu0 0
  %920 = vmatpush1.bf16.msra.mxu0 0
  %921 = vmatprep.subr.bf16.mxu0 0
  %922 = vmatpush1.bf16.msra.mxu0 0
  %923 = vmatprep.mubr.bf16.mxu0 0
  %924 = vmatmul.mubr.bf16.gmra.mrb[0].mxu0 %v886
  %v925 = vpop.f32.mrb[0].mxu0
  %v926 = vadd.f32 0.0, %v925
  %v927 = vpop.f32.mrb[0].mxu0
  %v928 = vpop.f32.mrb[0].mxu0
  %v929 = vpop.f32.mrb[0].mxu0
  %930 = vdwg.mxu0
  %v932 = vsel %vm559, %v791, 0
  %v935 = vsel %vm795, %v558, 0
  %937 = vmatprep.subr.bf16.mxu0 0
  %938 = vmatpush1.bf16.msra.mxu0 %v935
  %939 = vmatprep.subr.bf16.mxu0 0
  %940 = vmatpush1.bf16.msra.mxu0 0
  %941 = vmatprep.subr.bf16.mxu0 0
  %942 = vmatpush1.bf16.msra.mxu0 0
  %943 = vmatprep.subr.bf16.mxu0 0
  %944 = vmatpush1.bf16.msra.mxu0 0
  %945 = vmatprep.subr.bf16.mxu0 0
  %946 = vmatpush1.bf16.msra.mxu0 0
  %947 = vmatprep.subr.bf16.mxu0 0
  %948 = vmatpush1.bf16.msra.mxu0 0
  %949 = vmatprep.subr.bf16.mxu0 0
  %950 = vmatpush1.bf16.msra.mxu0 0
  %951 = vmatprep.subr.bf16.mxu0 0
  %952 = vmatpush1.bf16.msra.mxu0 0
  %953 = vmatprep.subr.bf16.mxu0 0
  %954 = vmatpush1.bf16.msra.mxu0 0
  %955 = vmatprep.subr.bf16.mxu0 0
  %956 = vmatpush1.bf16.msra.mxu0 0
  %957 = vmatprep.subr.bf16.mxu0 0
  %958 = vmatpush1.bf16.msra.mxu0 0
  %959 = vmatprep.subr.bf16.mxu0 0
  %960 = vmatpush1.bf16.msra.mxu0 0
  %961 = vmatprep.subr.bf16.mxu0 0
  %962 = vmatpush1.bf16.msra.mxu0 0
  %963 = vmatprep.subr.bf16.mxu0 0
  %964 = vmatpush1.bf16.msra.mxu0 0
  %965 = vmatprep.subr.bf16.mxu0 0
  %966 = vmatpush1.bf16.msra.mxu0 0
  %967 = vmatprep.subr.bf16.mxu0 0
  %968 = vmatpush1.bf16.msra.mxu0 0
  %969 = vmatprep.mubr.bf16.mxu0 0
  %970 = vmatmul.mubr.bf16.gmra.mrb[0].mxu0 %v932
  %v971 = vpop.f32.mrb[0].mxu0
  %v972 = vadd.f32 0.0, %v971
  %v973 = vpop.f32.mrb[0].mxu0
  %v974 = vpop.f32.mrb[0].mxu0
  %v975 = vpop.f32.mrb[0].mxu0
  %976 = vdwg.mxu0
  %v977 = vcombine.low %v834, %v926
  %v978 = vcombine.high %v834, %v926
  %v980 = vunpack.c.l.s4 1983009808
  %v981 = vunpack.c.0.s8 %v980
  %v982 = vlaneseq
  %v983 = vshrl.u32 %v982, 7
  %v984 = vsub.s32 %v981, %v983
  %v985 = vrot.slane %v977, %v984
  %v987 = vunpack.c.l.s4 1983009808
  %v988 = vunpack.c.0.s8 %v987
  %v989 = vlaneseq
  %v990 = vshrl.u32 %v989, 7
  %v991 = vsub.s32 %v988, %v990
  %v992 = vrot.slane %v978, %v991
  %v993 = vcombine.low %v880, %v972
  %v994 = vcombine.high %v880, %v972
  %v996 = vunpack.c.l.s4 1983009808
  %v997 = vunpack.c.0.s8 %v996
  %v998 = vlaneseq
  %v999 = vshrl.u32 %v998, 7
  %v1000 = vsub.s32 %v997, %v999
  %v1001 = vrot.slane %v993, %v1000
  %v1003 = vunpack.c.l.s4 1983009808
  %v1004 = vunpack.c.0.s8 %v1003
  %v1005 = vlaneseq
  %v1006 = vshrl.u32 %v1005, 7
  %v1007 = vsub.s32 %v1004, %v1006
  %v1008 = vrot.slane %v994, %v1007
  %v1009 = vcombine.low %v985, %v1001
  %v1010 = vcombine.high %v985, %v1001
  %v1012 = vunpack.c.l.s4 1934713408
  %v1013 = vunpack.c.0.s8 %v1012
  %v1014 = vlaneseq
  %v1015 = vshrl.u32 %v1014, 7
  %v1016 = vsub.s32 %v1013, %v1015
  %v1017 = vrot.slane %v1009, %v1016
  %v1019 = vunpack.c.l.s4 1934713408
  %v1020 = vunpack.c.0.s8 %v1019
  %v1021 = vlaneseq
  %v1022 = vshrl.u32 %v1021, 7
  %v1023 = vsub.s32 %v1020, %v1022
  %v1024 = vrot.slane %v1010, %v1023
  %v1025 = vcombine.low %v992, %v1008
  %v1026 = vcombine.high %v992, %v1008
  %v1028 = vunpack.c.l.s4 1934713408
  %v1029 = vunpack.c.0.s8 %v1028
  %v1030 = vlaneseq
  %v1031 = vshrl.u32 %v1030, 7
  %v1032 = vsub.s32 %v1029, %v1031
  %v1033 = vrot.slane %v1025, %v1032
  %v1035 = vunpack.c.l.s4 1934713408
  %v1036 = vunpack.c.0.s8 %v1035
  %v1037 = vlaneseq
  %v1038 = vshrl.u32 %v1037, 7
  %v1039 = vsub.s32 %v1036, %v1038
  %v1040 = vrot.slane %v1026, %v1039
  %v1041 = vcombine.high %v1017, 0.0
  %v1042 = vcombine.high %v1024, 0.0
  %v1043 = vcombine.high %v1033, 0.0
  %v1044 = vcombine.high %v1040, 0.0
  %v1045 = vcombine.low %v1017, %v1024
  %v1047 = vunpack.c.l.s4 1983009808
  %v1048 = vunpack.c.0.s8 %v1047
  %v1049 = vlaneseq
  %v1050 = vshrl.u32 %v1049, 7
  %v1051 = vsub.s32 %v1048, %v1050
  %v1052 = vrot.slane %v1045, %v1051
  %v1053 = vcombine.low %v1041, %v1042
  %v1055 = vunpack.c.l.s4 1983009808
  %v1056 = vunpack.c.0.s8 %v1055
  %v1057 = vlaneseq
  %v1058 = vshrl.u32 %v1057, 7
  %v1059 = vsub.s32 %v1056, %v1058
  %v1060 = vrot.slane %v1053, %v1059
  %v1061 = vcombine.low %v1033, %v1040
  %v1063 = vunpack.c.l.s4 1983009808
  %v1064 = vunpack.c.0.s8 %v1063
  %v1065 = vlaneseq
  %v1066 = vshrl.u32 %v1065, 7
  %v1067 = vsub.s32 %v1064, %v1066
  %v1068 = vrot.slane %v1061, %v1067
  %v1069 = vcombine.low %v1043, %v1044
  %v1071 = vunpack.c.l.s4 1983009808
  %v1072 = vunpack.c.0.s8 %v1071
  %v1073 = vlaneseq
  %v1074 = vshrl.u32 %v1073, 7
  %v1075 = vsub.s32 %v1072, %v1074
  %v1076 = vrot.slane %v1069, %v1075
  %v1077 = vcombine.low %v1052, %v1060
  %v1078 = vcombine.high %v1052, %v1060
  %v1080 = vunpack.c.l.s4 1934713408
  %v1081 = vunpack.c.0.s8 %v1080
  %v1082 = vlaneseq
  %v1083 = vshrl.u32 %v1082, 7
  %v1084 = vsub.s32 %v1081, %v1083
  %v1085 = vrot.slane %v1077, %v1084
  %v1087 = vunpack.c.l.s4 1934713408
  %v1088 = vunpack.c.0.s8 %v1087
  %v1089 = vlaneseq
  %v1090 = vshrl.u32 %v1089, 7
  %v1091 = vsub.s32 %v1088, %v1090
  %v1092 = vrot.slane %v1078, %v1091
  %v1093 = vcombine.low %v1068, %v1076
  %v1094 = vcombine.high %v1068, %v1076
  %v1096 = vunpack.c.l.s4 1934713408
  %v1097 = vunpack.c.0.s8 %v1096
  %v1098 = vlaneseq
  %v1099 = vshrl.u32 %v1098, 7
  %v1100 = vsub.s32 %v1097, %v1099
  %v1101 = vrot.slane %v1093, %v1100
  %v1103 = vunpack.c.l.s4 1934713408
  %v1104 = vunpack.c.0.s8 %v1103
  %v1105 = vlaneseq
  %v1106 = vshrl.u32 %v1105, 7
  %v1107 = vsub.s32 %v1104, %v1106
  %v1108 = vrot.slane %v1094, %v1107
  %v1109 = vcombine.low %v1085, %v1101
  %v1110 = vcombine.high %v1085, %v1101
  %v1111 = vcombine.low %v1092, %v1108
  %v1112 = vcombine.high %v1092, %v1108
  %1114 = vrot.lane.b32.xlu0 %v1110, 8
  %v1115 = vpop.permute.xlu0 %1114
  %1118 = vrot.lane.b32.xlu0 %v1111, 16
  %v1119 = vpop.permute.xlu0 %1118
  %1122 = vrot.lane.b32.xlu0 %v1112, 24
  %v1123 = vpop.permute.xlu0 %1122
  %v1125 = vsel %vm559, %v1109, %v1115
  %vm1126 = vcmask 130048
  %v1127 = vsel %vm1126, %v1125, %v1119
  %vm1128 = vcmask 195584
  %v1129 = vsel %vm1128, %v1127, %v1123
  %1131 = vrot.lane.b32.xlu0 %v95, 120
  %v1132 = vpop.permute.xlu0 %1131
  %1134 = vrot.lane.b32.xlu0 %v95, 112
  %v1135 = vpop.permute.xlu0 %1134
  %1137 = vrot.lane.b32.xlu0 %v95, 104
  %v1138 = vpop.permute.xlu0 %1137
  %v1140 = vcombine.low %v95, %v1135
  %v1141 = vcombine.high %v95, %v1135
  %v1143 = vunpack.c.l.s4 1983009808
  %v1144 = vunpack.c.0.s8 %v1143
  %v1145 = vlaneseq
  %v1146 = vshrl.u32 %v1145, 7
  %v1147 = vsub.s32 %v1144, %v1146
  %v1148 = vrot.slane %v1140, %v1147
  %v1150 = vunpack.c.l.s4 1983009808
  %v1151 = vunpack.c.0.s8 %v1150
  %v1152 = vlaneseq
  %v1153 = vshrl.u32 %v1152, 7
  %v1154 = vsub.s32 %v1151, %v1153
  %v1155 = vrot.slane %v1141, %v1154
  %v1156 = vcombine.low %v1132, %v1138
  %v1157 = vcombine.high %v1132, %v1138
  %v1159 = vunpack.c.l.s4 1983009808
  %v1160 = vunpack.c.0.s8 %v1159
  %v1161 = vlaneseq
  %v1162 = vshrl.u32 %v1161, 7
  %v1163 = vsub.s32 %v1160, %v1162
  %v1164 = vrot.slane %v1156, %v1163
  %v1166 = vunpack.c.l.s4 1983009808
  %v1167 = vunpack.c.0.s8 %v1166
  %v1168 = vlaneseq
  %v1169 = vshrl.u32 %v1168, 7
  %v1170 = vsub.s32 %v1167, %v1169
  %v1171 = vrot.slane %v1157, %v1170
  %v1172 = vcombine.low %v1148, %v1164
  %v1173 = vcombine.high %v1148, %v1164
  %v1175 = vunpack.c.l.s4 1934713408
  %v1176 = vunpack.c.0.s8 %v1175
  %v1177 = vlaneseq
  %v1178 = vshrl.u32 %v1177, 7
  %v1179 = vsub.s32 %v1176, %v1178
  %v1180 = vrot.slane %v1172, %v1179
  %v1182 = vunpack.c.l.s4 1934713408
  %v1183 = vunpack.c.0.s8 %v1182
  %v1184 = vlaneseq
  %v1185 = vshrl.u32 %v1184, 7
  %v1186 = vsub.s32 %v1183, %v1185
  %v1187 = vrot.slane %v1173, %v1186
  %v1188 = vcombine.low %v1155, %v1171
  %v1189 = vcombine.high %v1155, %v1171
  %v1191 = vunpack.c.l.s4 1934713408
  %v1192 = vunpack.c.0.s8 %v1191
  %v1193 = vlaneseq
  %v1194 = vshrl.u32 %v1193, 7
  %v1195 = vsub.s32 %v1192, %v1194
  %v1196 = vrot.slane %v1188, %v1195
  %v1198 = vunpack.c.l.s4 1934713408
  %v1199 = vunpack.c.0.s8 %v1198
  %v1200 = vlaneseq
  %v1201 = vshrl.u32 %v1200, 7
  %v1202 = vsub.s32 %v1199, %v1201
  %v1203 = vrot.slane %v1189, %v1202
  %v1204 = vcombine.high %v1180, 0.0
  %v1205 = vcombine.high %v1187, 0.0
  %v1206 = vcombine.high %v1196, 0.0
  %v1207 = vcombine.high %v1203, 0.0
  %v1208 = vcombine.low %v1180, %v1187
  %v1210 = vunpack.c.l.s4 1983009808
  %v1211 = vunpack.c.0.s8 %v1210
  %v1212 = vlaneseq
  %v1213 = vshrl.u32 %v1212, 7
  %v1214 = vsub.s32 %v1211, %v1213
  %v1215 = vrot.slane %v1208, %v1214
  %v1216 = vcombine.low %v1204, %v1205
  %v1218 = vunpack.c.l.s4 1983009808
  %v1219 = vunpack.c.0.s8 %v1218
  %v1220 = vlaneseq
  %v1221 = vshrl.u32 %v1220, 7
  %v1222 = vsub.s32 %v1219, %v1221
  %v1223 = vrot.slane %v1216, %v1222
  %v1224 = vcombine.low %v1196, %v1203
  %v1226 = vunpack.c.l.s4 1983009808
  %v1227 = vunpack.c.0.s8 %v1226
  %v1228 = vlaneseq
  %v1229 = vshrl.u32 %v1228, 7
  %v1230 = vsub.s32 %v1227, %v1229
  %v1231 = vrot.slane %v1224, %v1230
  %v1232 = vcombine.low %v1206, %v1207
  %v1234 = vunpack.c.l.s4 1983009808
  %v1235 = vunpack.c.0.s8 %v1234
  %v1236 = vlaneseq
  %v1237 = vshrl.u32 %v1236, 7
  %v1238 = vsub.s32 %v1235, %v1237
  %v1239 = vrot.slane %v1232, %v1238
  %v1240 = vcombine.low %v1215, %v1223
  %v1241 = vcombine.high %v1215, %v1223
  %v1243 = vunpack.c.l.s4 1934713408
  %v1244 = vunpack.c.0.s8 %v1243
  %v1245 = vlaneseq
  %v1246 = vshrl.u32 %v1245, 7
  %v1247 = vsub.s32 %v1244, %v1246
  %v1248 = vrot.slane %v1240, %v1247
  %v1250 = vunpack.c.l.s4 1934713408
  %v1251 = vunpack.c.0.s8 %v1250
  %v1252 = vlaneseq
  %v1253 = vshrl.u32 %v1252, 7
  %v1254 = vsub.s32 %v1251, %v1253
  %v1255 = vrot.slane %v1241, %v1254
  %v1256 = vcombine.low %v1231, %v1239
  %v1257 = vcombine.high %v1231, %v1239
  %v1259 = vunpack.c.l.s4 1934713408
  %v1260 = vunpack.c.0.s8 %v1259
  %v1261 = vlaneseq
  %v1262 = vshrl.u32 %v1261, 7
  %v1263 = vsub.s32 %v1260, %v1262
  %v1264 = vrot.slane %v1256, %v1263
  %v1266 = vunpack.c.l.s4 1934713408
  %v1267 = vunpack.c.0.s8 %v1266
  %v1268 = vlaneseq
  %v1269 = vshrl.u32 %v1268, 7
  %v1270 = vsub.s32 %v1267, %v1269
  %v1271 = vrot.slane %v1257, %v1270
  %v1272 = vcombine.low %v1248, %v1264
  %v1273 = vcombine.high %v1248, %v1264
  %v1274 = vcombine.low %v1255, %v1271
  %v1275 = vcombine.high %v1255, %v1271
  %v1276 = vpack.c.bf16 %v1272, %v1272
  %v1277 = vpack.c.bf16 %v1273, %v1273
  %v1278 = vpack.c.bf16 %v1274, %v1274
  %v1279 = vpack.c.bf16 %v1275, %v1275
  %1280 = vrot.lane.b32.xlu0 %v95, 96
  %v1281 = vpop.permute.xlu0 %1280
  %1282 = vrot.lane.b32.xlu0 %v1132, 96
  %v1283 = vpop.permute.xlu0 %1282
  %1284 = vrot.lane.b32.xlu0 %v1135, 96
  %v1285 = vpop.permute.xlu0 %1284
  %1286 = vrot.lane.b32.xlu0 %v1138, 96
  %v1287 = vpop.permute.xlu0 %1286
  %v1292 = vcombine.low %v1281, %v1285
  %v1293 = vcombine.high %v1281, %v1285
  %v1295 = vunpack.c.l.s4 1983009808
  %v1296 = vunpack.c.0.s8 %v1295
  %v1297 = vlaneseq
  %v1298 = vshrl.u32 %v1297, 7
  %v1299 = vsub.s32 %v1296, %v1298
  %v1300 = vrot.slane %v1292, %v1299
  %v1302 = vunpack.c.l.s4 1983009808
  %v1303 = vunpack.c.0.s8 %v1302
  %v1304 = vlaneseq
  %v1305 = vshrl.u32 %v1304, 7
  %v1306 = vsub.s32 %v1303, %v1305
  %v1307 = vrot.slane %v1293, %v1306
  %v1308 = vcombine.low %v1283, %v1287
  %v1309 = vcombine.high %v1283, %v1287
  %v1311 = vunpack.c.l.s4 1983009808
  %v1312 = vunpack.c.0.s8 %v1311
  %v1313 = vlaneseq
  %v1314 = vshrl.u32 %v1313, 7
  %v1315 = vsub.s32 %v1312, %v1314
  %v1316 = vrot.slane %v1308, %v1315
  %v1318 = vunpack.c.l.s4 1983009808
  %v1319 = vunpack.c.0.s8 %v1318
  %v1320 = vlaneseq
  %v1321 = vshrl.u32 %v1320, 7
  %v1322 = vsub.s32 %v1319, %v1321
  %v1323 = vrot.slane %v1309, %v1322
  %v1324 = vcombine.low %v1300, %v1316
  %v1325 = vcombine.high %v1300, %v1316
  %v1327 = vunpack.c.l.s4 1934713408
  %v1328 = vunpack.c.0.s8 %v1327
  %v1329 = vlaneseq
  %v1330 = vshrl.u32 %v1329, 7
  %v1331 = vsub.s32 %v1328, %v1330
  %v1332 = vrot.slane %v1324, %v1331
  %v1334 = vunpack.c.l.s4 1934713408
  %v1335 = vunpack.c.0.s8 %v1334
  %v1336 = vlaneseq
  %v1337 = vshrl.u32 %v1336, 7
  %v1338 = vsub.s32 %v1335, %v1337
  %v1339 = vrot.slane %v1325, %v1338
  %v1340 = vcombine.low %v1307, %v1323
  %v1341 = vcombine.high %v1307, %v1323
  %v1343 = vunpack.c.l.s4 1934713408
  %v1344 = vunpack.c.0.s8 %v1343
  %v1345 = vlaneseq
  %v1346 = vshrl.u32 %v1345, 7
  %v1347 = vsub.s32 %v1344, %v1346
  %v1348 = vrot.slane %v1340, %v1347
  %v1350 = vunpack.c.l.s4 1934713408
  %v1351 = vunpack.c.0.s8 %v1350
  %v1352 = vlaneseq
  %v1353 = vshrl.u32 %v1352, 7
  %v1354 = vsub.s32 %v1351, %v1353
  %v1355 = vrot.slane %v1341, %v1354
  %v1356 = vcombine.high %v1332, 0.0
  %v1357 = vcombine.high %v1339, 0.0
  %v1358 = vcombine.high %v1348, 0.0
  %v1359 = vcombine.high %v1355, 0.0
  %v1360 = vcombine.low %v1332, %v1339
  %v1362 = vunpack.c.l.s4 1983009808
  %v1363 = vunpack.c.0.s8 %v1362
  %v1364 = vlaneseq
  %v1365 = vshrl.u32 %v1364, 7
  %v1366 = vsub.s32 %v1363, %v1365
  %v1367 = vrot.slane %v1360, %v1366
  %v1368 = vcombine.low %v1356, %v1357
  %v1370 = vunpack.c.l.s4 1983009808
  %v1371 = vunpack.c.0.s8 %v1370
  %v1372 = vlaneseq
  %v1373 = vshrl.u32 %v1372, 7
  %v1374 = vsub.s32 %v1371, %v1373
  %v1375 = vrot.slane %v1368, %v1374
  %v1376 = vcombine.low %v1348, %v1355
  %v1378 = vunpack.c.l.s4 1983009808
  %v1379 = vunpack.c.0.s8 %v1378
  %v1380 = vlaneseq
  %v1381 = vshrl.u32 %v1380, 7
  %v1382 = vsub.s32 %v1379, %v1381
  %v1383 = vrot.slane %v1376, %v1382
  %v1384 = vcombine.low %v1358, %v1359
  %v1386 = vunpack.c.l.s4 1983009808
  %v1387 = vunpack.c.0.s8 %v1386
  %v1388 = vlaneseq
  %v1389 = vshrl.u32 %v1388, 7
  %v1390 = vsub.s32 %v1387, %v1389
  %v1391 = vrot.slane %v1384, %v1390
  %v1392 = vcombine.low %v1367, %v1375
  %v1393 = vcombine.high %v1367, %v1375
  %v1395 = vunpack.c.l.s4 1934713408
  %v1396 = vunpack.c.0.s8 %v1395
  %v1397 = vlaneseq
  %v1398 = vshrl.u32 %v1397, 7
  %v1399 = vsub.s32 %v1396, %v1398
  %v1400 = vrot.slane %v1392, %v1399
  %v1402 = vunpack.c.l.s4 1934713408
  %v1403 = vunpack.c.0.s8 %v1402
  %v1404 = vlaneseq
  %v1405 = vshrl.u32 %v1404, 7
  %v1406 = vsub.s32 %v1403, %v1405
  %v1407 = vrot.slane %v1393, %v1406
  %v1408 = vcombine.low %v1383, %v1391
  %v1409 = vcombine.high %v1383, %v1391
  %v1411 = vunpack.c.l.s4 1934713408
  %v1412 = vunpack.c.0.s8 %v1411
  %v1413 = vlaneseq
  %v1414 = vshrl.u32 %v1413, 7
  %v1415 = vsub.s32 %v1412, %v1414
  %v1416 = vrot.slane %v1408, %v1415
  %v1418 = vunpack.c.l.s4 1934713408
  %v1419 = vunpack.c.0.s8 %v1418
  %v1420 = vlaneseq
  %v1421 = vshrl.u32 %v1420, 7
  %v1422 = vsub.s32 %v1419, %v1421
  %v1423 = vrot.slane %v1409, %v1422
  %v1424 = vcombine.low %v1400, %v1416
  %v1425 = vcombine.high %v1400, %v1416
  %v1426 = vcombine.low %v1407, %v1423
  %v1427 = vcombine.high %v1407, %v1423
  %v1428 = vpack.c.bf16 %v1424, %v1424
  %v1429 = vpack.c.bf16 %v1425, %v1425
  %v1430 = vpack.c.bf16 %v1426, %v1426
  %v1431 = vpack.c.bf16 %v1427, %v1427
  %1432 = vrot.lane.b32.xlu0 %v95, 64
  %v1433 = vpop.permute.xlu0 %1432
  %1434 = vrot.lane.b32.xlu0 %v1132, 64
  %v1435 = vpop.permute.xlu0 %1434
  %1436 = vrot.lane.b32.xlu0 %v1135, 64
  %v1437 = vpop.permute.xlu0 %1436
  %1438 = vrot.lane.b32.xlu0 %v1138, 64
  %v1439 = vpop.permute.xlu0 %1438
  %v1444 = vcombine.low %v1433, %v1437
  %v1445 = vcombine.high %v1433, %v1437
  %v1447 = vunpack.c.l.s4 1983009808
  %v1448 = vunpack.c.0.s8 %v1447
  %v1449 = vlaneseq
  %v1450 = vshrl.u32 %v1449, 7
  %v1451 = vsub.s32 %v1448, %v1450
  %v1452 = vrot.slane %v1444, %v1451
  %v1454 = vunpack.c.l.s4 1983009808
  %v1455 = vunpack.c.0.s8 %v1454
  %v1456 = vlaneseq
  %v1457 = vshrl.u32 %v1456, 7
  %v1458 = vsub.s32 %v1455, %v1457
  %v1459 = vrot.slane %v1445, %v1458
  %v1460 = vcombine.low %v1435, %v1439
  %v1461 = vcombine.high %v1435, %v1439
  %v1463 = vunpack.c.l.s4 1983009808
  %v1464 = vunpack.c.0.s8 %v1463
  %v1465 = vlaneseq
  %v1466 = vshrl.u32 %v1465, 7
  %v1467 = vsub.s32 %v1464, %v1466
  %v1468 = vrot.slane %v1460, %v1467
  %v1470 = vunpack.c.l.s4 1983009808
  %v1471 = vunpack.c.0.s8 %v1470
  %v1472 = vlaneseq
  %v1473 = vshrl.u32 %v1472, 7
  %v1474 = vsub.s32 %v1471, %v1473
  %v1475 = vrot.slane %v1461, %v1474
  %v1476 = vcombine.low %v1452, %v1468
  %v1477 = vcombine.high %v1452, %v1468
  %v1479 = vunpack.c.l.s4 1934713408
  %v1480 = vunpack.c.0.s8 %v1479
  %v1481 = vlaneseq
  %v1482 = vshrl.u32 %v1481, 7
  %v1483 = vsub.s32 %v1480, %v1482
  %v1484 = vrot.slane %v1476, %v1483
  %v1486 = vunpack.c.l.s4 1934713408
  %v1487 = vunpack.c.0.s8 %v1486
  %v1488 = vlaneseq
  %v1489 = vshrl.u32 %v1488, 7
  %v1490 = vsub.s32 %v1487, %v1489
  %v1491 = vrot.slane %v1477, %v1490
  %v1492 = vcombine.low %v1459, %v1475
  %v1493 = vcombine.high %v1459, %v1475
  %v1495 = vunpack.c.l.s4 1934713408
  %v1496 = vunpack.c.0.s8 %v1495
  %v1497 = vlaneseq
  %v1498 = vshrl.u32 %v1497, 7
  %v1499 = vsub.s32 %v1496, %v1498
  %v1500 = vrot.slane %v1492, %v1499
  %v1502 = vunpack.c.l.s4 1934713408
  %v1503 = vunpack.c.0.s8 %v1502
  %v1504 = vlaneseq
  %v1505 = vshrl.u32 %v1504, 7
  %v1506 = vsub.s32 %v1503, %v1505
  %v1507 = vrot.slane %v1493, %v1506
  %v1508 = vcombine.high %v1484, 0.0
  %v1509 = vcombine.high %v1491, 0.0
  %v1510 = vcombine.high %v1500, 0.0
  %v1511 = vcombine.high %v1507, 0.0
  %v1512 = vcombine.low %v1484, %v1491
  %v1514 = vunpack.c.l.s4 1983009808
  %v1515 = vunpack.c.0.s8 %v1514
  %v1516 = vlaneseq
  %v1517 = vshrl.u32 %v1516, 7
  %v1518 = vsub.s32 %v1515, %v1517
  %v1519 = vrot.slane %v1512, %v1518
  %v1520 = vcombine.low %v1508, %v1509
  %v1522 = vunpack.c.l.s4 1983009808
  %v1523 = vunpack.c.0.s8 %v1522
  %v1524 = vlaneseq
  %v1525 = vshrl.u32 %v1524, 7
  %v1526 = vsub.s32 %v1523, %v1525
  %v1527 = vrot.slane %v1520, %v1526
  %v1528 = vcombine.low %v1500, %v1507
  %v1530 = vunpack.c.l.s4 1983009808
  %v1531 = vunpack.c.0.s8 %v1530
  %v1532 = vlaneseq
  %v1533 = vshrl.u32 %v1532, 7
  %v1534 = vsub.s32 %v1531, %v1533
  %v1535 = vrot.slane %v1528, %v1534
  %v1536 = vcombine.low %v1510, %v1511
  %v1538 = vunpack.c.l.s4 1983009808
  %v1539 = vunpack.c.0.s8 %v1538
  %v1540 = vlaneseq
  %v1541 = vshrl.u32 %v1540, 7
  %v1542 = vsub.s32 %v1539, %v1541
  %v1543 = vrot.slane %v1536, %v1542
  %v1544 = vcombine.low %v1519, %v1527
  %v1545 = vcombine.high %v1519, %v1527
  %v1547 = vunpack.c.l.s4 1934713408
  %v1548 = vunpack.c.0.s8 %v1547
  %v1549 = vlaneseq
  %v1550 = vshrl.u32 %v1549, 7
  %v1551 = vsub.s32 %v1548, %v1550
  %v1552 = vrot.slane %v1544, %v1551
  %v1554 = vunpack.c.l.s4 1934713408
  %v1555 = vunpack.c.0.s8 %v1554
  %v1556 = vlaneseq
  %v1557 = vshrl.u32 %v1556, 7
  %v1558 = vsub.s32 %v1555, %v1557
  %v1559 = vrot.slane %v1545, %v1558
  %v1560 = vcombine.low %v1535, %v1543
  %v1561 = vcombine.high %v1535, %v1543
  %v1563 = vunpack.c.l.s4 1934713408
  %v1564 = vunpack.c.0.s8 %v1563
  %v1565 = vlaneseq
  %v1566 = vshrl.u32 %v1565, 7
  %v1567 = vsub.s32 %v1564, %v1566
  %v1568 = vrot.slane %v1560, %v1567
  %v1570 = vunpack.c.l.s4 1934713408
  %v1571 = vunpack.c.0.s8 %v1570
  %v1572 = vlaneseq
  %v1573 = vshrl.u32 %v1572, 7
  %v1574 = vsub.s32 %v1571, %v1573
  %v1575 = vrot.slane %v1561, %v1574
  %v1576 = vcombine.low %v1552, %v1568
  %v1577 = vcombine.high %v1552, %v1568
  %v1578 = vcombine.low %v1559, %v1575
  %v1579 = vcombine.high %v1559, %v1575
  %v1580 = vpack.c.bf16 %v1576, %v1576
  %v1581 = vpack.c.bf16 %v1577, %v1577
  %v1582 = vpack.c.bf16 %v1578, %v1578
  %v1583 = vpack.c.bf16 %v1579, %v1579
  %v1585 = vsel %vm559, %v1276, 0
  %v1588 = vsel %vm559, %v1428, 0
  %1590 = vmatprep.subr.bf16.mxu0 0
  %1591 = vmatpush1.bf16.xpose.msra.mxu0 %v1588
  %1592 = vmatprep.subr.bf16.mxu0 0
  %1593 = vmatpush1.bf16.xpose.msra.mxu0 0
  %1594 = vmatprep.subr.bf16.mxu0 0
  %1595 = vmatpush1.bf16.xpose.msra.mxu0 0
  %1596 = vmatprep.subr.bf16.mxu0 0
  %1597 = vmatpush1.bf16.xpose.msra.mxu0 0
  %1598 = vmatprep.subr.bf16.mxu0 0
  %1599 = vmatpush1.bf16.xpose.msra.mxu0 0
  %1600 = vmatprep.subr.bf16.mxu0 0
  %1601 = vmatpush1.bf16.xpose.msra.mxu0 0
  %1602 = vmatprep.subr.bf16.mxu0 0
  %1603 = vmatpush1.bf16.xpose.msra.mxu0 0
  %1604 = vmatprep.subr.bf16.mxu0 0
  %1605 = vmatpush1.bf16.xpose.msra.mxu0 0
  %1606 = vmatprep.subr.bf16.mxu0 0
  %1607 = vmatpush1.bf16.xpose.msra.mxu0 0
  %1608 = vmatprep.subr.bf16.mxu0 0
  %1609 = vmatpush1.bf16.xpose.msra.mxu0 0
  %1610 = vmatprep.subr.bf16.mxu0 0
  %1611 = vmatpush1.bf16.xpose.msra.mxu0 0
  %1612 = vmatprep.subr.bf16.mxu0 0
  %1613 = vmatpush1.bf16.xpose.msra.mxu0 0
  %1614 = vmatprep.subr.bf16.mxu0 0
  %1615 = vmatpush1.bf16.xpose.msra.mxu0 0
  %1616 = vmatprep.subr.bf16.mxu0 0
  %1617 = vmatpush1.bf16.xpose.msra.mxu0 0
  %1618 = vmatprep.subr.bf16.mxu0 0
  %1619 = vmatpush1.bf16.xpose.msra.mxu0 0
  %1620 = vmatprep.subr.bf16.mxu0 0
  %1621 = vmatpush1.bf16.xpose.msra.mxu0 0
  %1622 = vmatprep.mubr.bf16.mxu0 0
  %1623 = vmatmul.mubr.bf16.gmra.mrb[0].mxu0 %v1585
  %v1624 = vpop.f32.mrb[0].mxu0
  %v1625 = vadd.f32 0.0, %v1624
  %v1626 = vpop.f32.mrb[0].mxu0
  %v1627 = vpop.f32.mrb[0].mxu0
  %v1628 = vpop.f32.mrb[0].mxu0
  %1629 = vdwg.mxu0
  %v1631 = vsel %vm559, %v1277, 0
  %v1634 = vsel %vm559, %v1429, 0
  %1636 = vmatprep.subr.bf16.mxu0 0
  %1637 = vmatpush1.bf16.xpose.msra.mxu0 %v1634
  %1638 = vmatprep.subr.bf16.mxu0 0
  %1639 = vmatpush1.bf16.xpose.msra.mxu0 0
  %1640 = vmatprep.subr.bf16.mxu0 0
  %1641 = vmatpush1.bf16.xpose.msra.mxu0 0
  %1642 = vmatprep.subr.bf16.mxu0 0
  %1643 = vmatpush1.bf16.xpose.msra.mxu0 0
  %1644 = vmatprep.subr.bf16.mxu0 0
  %1645 = vmatpush1.bf16.xpose.msra.mxu0 0
  %1646 = vmatprep.subr.bf16.mxu0 0
  %1647 = vmatpush1.bf16.xpose.msra.mxu0 0
  %1648 = vmatprep.subr.bf16.mxu0 0
  %1649 = vmatpush1.bf16.xpose.msra.mxu0 0
  %1650 = vmatprep.subr.bf16.mxu0 0
  %1651 = vmatpush1.bf16.xpose.msra.mxu0 0
  %1652 = vmatprep.subr.bf16.mxu0 0
  %1653 = vmatpush1.bf16.xpose.msra.mxu0 0
  %1654 = vmatprep.subr.bf16.mxu0 0
  %1655 = vmatpush1.bf16.xpose.msra.mxu0 0
  %1656 = vmatprep.subr.bf16.mxu0 0
  %1657 = vmatpush1.bf16.xpose.msra.mxu0 0
  %1658 = vmatprep.subr.bf16.mxu0 0
  %1659 = vmatpush1.bf16.xpose.msra.mxu0 0
  %1660 = vmatprep.subr.bf16.mxu0 0
  %1661 = vmatpush1.bf16.xpose.msra.mxu0 0
  %1662 = vmatprep.subr.bf16.mxu0 0
  %1663 = vmatpush1.bf16.xpose.msra.mxu0 0
  %1664 = vmatprep.subr.bf16.mxu0 0
  %1665 = vmatpush1.bf16.xpose.msra.mxu0 0
  %1666 = vmatprep.subr.bf16.mxu0 0
  %1667 = vmatpush1.bf16.xpose.msra.mxu0 0
  %1668 = vmatprep.mubr.bf16.mxu0 0
  %1669 = vmatmul.mubr.bf16.gmra.mrb[0].mxu0 %v1631
  %v1670 = vpop.f32.mrb[0].mxu0
  %v1671 = vadd.f32 0.0, %v1670
  %v1672 = vpop.f32.mrb[0].mxu0
  %v1673 = vpop.f32.mrb[0].mxu0
  %v1674 = vpop.f32.mrb[0].mxu0
  %1675 = vdwg.mxu0
  %v1677 = vsel %vm559, %v1278, 0
  %v1680 = vsel %vm559, %v1430, 0
  %1682 = vmatprep.subr.bf16.mxu0 0
  %1683 = vmatpush1.bf16.xpose.msra.mxu0 %v1680
  %1684 = vmatprep.subr.bf16.mxu0 0
  %1685 = vmatpush1.bf16.xpose.msra.mxu0 0
  %1686 = vmatprep.subr.bf16.mxu0 0
  %1687 = vmatpush1.bf16.xpose.msra.mxu0 0
  %1688 = vmatprep.subr.bf16.mxu0 0
  %1689 = vmatpush1.bf16.xpose.msra.mxu0 0
  %1690 = vmatprep.subr.bf16.mxu0 0
  %1691 = vmatpush1.bf16.xpose.msra.mxu0 0
  %1692 = vmatprep.subr.bf16.mxu0 0
  %1693 = vmatpush1.bf16.xpose.msra.mxu0 0
  %1694 = vmatprep.subr.bf16.mxu0 0
  %1695 = vmatpush1.bf16.xpose.msra.mxu0 0
  %1696 = vmatprep.subr.bf16.mxu0 0
  %1697 = vmatpush1.bf16.xpose.msra.mxu0 0
  %1698 = vmatprep.subr.bf16.mxu0 0
  %1699 = vmatpush1.bf16.xpose.msra.mxu0 0
  %1700 = vmatprep.subr.bf16.mxu0 0
  %1701 = vmatpush1.bf16.xpose.msra.mxu0 0
  %1702 = vmatprep.subr.bf16.mxu0 0
  %1703 = vmatpush1.bf16.xpose.msra.mxu0 0
  %1704 = vmatprep.subr.bf16.mxu0 0
  %1705 = vmatpush1.bf16.xpose.msra.mxu0 0
  %1706 = vmatprep.subr.bf16.mxu0 0
  %1707 = vmatpush1.bf16.xpose.msra.mxu0 0
  %1708 = vmatprep.subr.bf16.mxu0 0
  %1709 = vmatpush1.bf16.xpose.msra.mxu0 0
  %1710 = vmatprep.subr.bf16.mxu0 0
  %1711 = vmatpush1.bf16.xpose.msra.mxu0 0
  %1712 = vmatprep.subr.bf16.mxu0 0
  %1713 = vmatpush1.bf16.xpose.msra.mxu0 0
  %1714 = vmatprep.mubr.bf16.mxu0 0
  %1715 = vmatmul.mubr.bf16.gmra.mrb[0].mxu0 %v1677
  %v1716 = vpop.f32.mrb[0].mxu0
  %v1717 = vadd.f32 0.0, %v1716
  %v1718 = vpop.f32.mrb[0].mxu0
  %v1719 = vpop.f32.mrb[0].mxu0
  %v1720 = vpop.f32.mrb[0].mxu0
  %1721 = vdwg.mxu0
  %v1723 = vsel %vm559, %v1279, 0
  %v1726 = vsel %vm559, %v1431, 0
  %1728 = vmatprep.subr.bf16.mxu0 0
  %1729 = vmatpush1.bf16.xpose.msra.mxu0 %v1726
  %1730 = vmatprep.subr.bf16.mxu0 0
  %1731 = vmatpush1.bf16.xpose.msra.mxu0 0
  %1732 = vmatprep.subr.bf16.mxu0 0
  %1733 = vmatpush1.bf16.xpose.msra.mxu0 0
  %1734 = vmatprep.subr.bf16.mxu0 0
  %1735 = vmatpush1.bf16.xpose.msra.mxu0 0
  %1736 = vmatprep.subr.bf16.mxu0 0
  %1737 = vmatpush1.bf16.xpose.msra.mxu0 0
  %1738 = vmatprep.subr.bf16.mxu0 0
  %1739 = vmatpush1.bf16.xpose.msra.mxu0 0
  %1740 = vmatprep.subr.bf16.mxu0 0
  %1741 = vmatpush1.bf16.xpose.msra.mxu0 0
  %1742 = vmatprep.subr.bf16.mxu0 0
  %1743 = vmatpush1.bf16.xpose.msra.mxu0 0
  %1744 = vmatprep.subr.bf16.mxu0 0
  %1745 = vmatpush1.bf16.xpose.msra.mxu0 0
  %1746 = vmatprep.subr.bf16.mxu0 0
  %1747 = vmatpush1.bf16.xpose.msra.mxu0 0
  %1748 = vmatprep.subr.bf16.mxu0 0
  %1749 = vmatpush1.bf16.xpose.msra.mxu0 0
  %1750 = vmatprep.subr.bf16.mxu0 0
  %1751 = vmatpush1.bf16.xpose.msra.mxu0 0
  %1752 = vmatprep.subr.bf16.mxu0 0
  %1753 = vmatpush1.bf16.xpose.msra.mxu0 0
  %1754 = vmatprep.subr.bf16.mxu0 0
  %1755 = vmatpush1.bf16.xpose.msra.mxu0 0
  %1756 = vmatprep.subr.bf16.mxu0 0
  %1757 = vmatpush1.bf16.xpose.msra.mxu0 0
  %1758 = vmatprep.subr.bf16.mxu0 0
  %1759 = vmatpush1.bf16.xpose.msra.mxu0 0
  %1760 = vmatprep.mubr.bf16.mxu0 0
  %1761 = vmatmul.mubr.bf16.gmra.mrb[0].mxu0 %v1723
  %v1762 = vpop.f32.mrb[0].mxu0
  %v1763 = vadd.f32 0.0, %v1762
  %v1764 = vpop.f32.mrb[0].mxu0
  %v1765 = vpop.f32.mrb[0].mxu0
  %v1766 = vpop.f32.mrb[0].mxu0
  %1767 = vdwg.mxu0
  %v1768 = vsel %vm559, %v1625, -inf
  %1769 = vmax.xlane.f32.xlu0 %v1768
  %v1770 = vpop.xlane.xlu0 %1769
  %v1771 = vsel %vm559, %v1671, -inf
  %1772 = vmax.xlane.f32.xlu0 %v1771
  %v1773 = vpop.xlane.xlu0 %1772
  %v1774 = vsel %vm559, %v1717, -inf
  %1775 = vmax.xlane.f32.xlu0 %v1774
  %v1776 = vpop.xlane.xlu0 %1775
  %v1777 = vsel %vm559, %v1763, -inf
  %1778 = vmax.xlane.f32.xlu0 %v1777
  %v1779 = vpop.xlane.xlu0 %1778
  %v1780 = vsub.f32 %v1625, %v1770
  %v1781 = vsub.f32 %v1671, %v1773
  %v1782 = vsub.f32 %v1717, %v1776
  %v1783 = vsub.f32 %v1763, %v1779
  %v1784 = vmul.f32 %v1780, 1.442695
  %v1785 = vpow.pop %v1784
  %v1786 = vmul.f32 %v1781, 1.442695
  %v1787 = vpow.pop %v1786
  %v1788 = vmul.f32 %v1782, 1.442695
  %v1789 = vpow.pop %v1788
  %v1790 = vmul.f32 %v1783, 1.442695
  %v1791 = vpow.pop %v1790
  %v1792 = vsel %vm559, %v1785, 0.0
  %1793 = vadd.xlane.f32.xlu0 %v1792
  %v1794 = vpop.xlane.xlu0 %1793
  %v1795 = vsel %vm559, %v1787, 0.0
  %1796 = vadd.xlane.f32.xlu0 %v1795
  %v1797 = vpop.xlane.xlu0 %1796
  %v1798 = vsel %vm559, %v1789, 0.0
  %1799 = vadd.xlane.f32.xlu0 %v1798
  %v1800 = vpop.xlane.xlu0 %1799
  %v1801 = vsel %vm559, %v1791, 0.0
  %1802 = vadd.xlane.f32.xlu0 %v1801
  %v1803 = vpop.xlane.xlu0 %1802
  %v1804 = vrcp.pop %v1794
  %v1805 = vrcp.pop %v1797
  %v1806 = vrcp.pop %v1800
  %v1807 = vrcp.pop %v1803
  %v1808 = vmul.f32 %v1785, %v1804
  %v1809 = vmul.f32 %v1787, %v1805
  %v1810 = vmul.f32 %v1789, %v1806
  %v1811 = vmul.f32 %v1791, %v1807
  %v1812 = vpack.c.bf16 %v1808, %v1808
  %v1813 = vpack.c.bf16 %v1809, %v1809
  %v1814 = vpack.c.bf16 %v1810, %v1810
  %v1815 = vpack.c.bf16 %v1811, %v1811
  %v1817 = vsel %vm559, %v1812, 0
  %v1820 = vsel %vm795, %v1580, 0
  %1822 = vmatprep.subr.bf16.mxu0 0
  %1823 = vmatpush1.bf16.msra.mxu0 %v1820
  %1824 = vmatprep.subr.bf16.mxu0 0
  %1825 = vmatpush1.bf16.msra.mxu0 0
  %1826 = vmatprep.subr.bf16.mxu0 0
  %1827 = vmatpush1.bf16.msra.mxu0 0
  %1828 = vmatprep.subr.bf16.mxu0 0
  %1829 = vmatpush1.bf16.msra.mxu0 0
  %1830 = vmatprep.subr.bf16.mxu0 0
  %1831 = vmatpush1.bf16.msra.mxu0 0
  %1832 = vmatprep.subr.bf16.mxu0 0
  %1833 = vmatpush1.bf16.msra.mxu0 0
  %1834 = vmatprep.subr.bf16.mxu0 0
  %1835 = vmatpush1.bf16.msra.mxu0 0
  %1836 = vmatprep.subr.bf16.mxu0 0
  %1837 = vmatpush1.bf16.msra.mxu0 0
  %1838 = vmatprep.subr.bf16.mxu0 0
  %1839 = vmatpush1.bf16.msra.mxu0 0
  %1840 = vmatprep.subr.bf16.mxu0 0
  %1841 = vmatpush1.bf16.msra.mxu0 0
  %1842 = vmatprep.subr.bf16.mxu0 0
  %1843 = vmatpush1.bf16.msra.mxu0 0
  %1844 = vmatprep.subr.bf16.mxu0 0
  %1845 = vmatpush1.bf16.msra.mxu0 0
  %1846 = vmatprep.subr.bf16.mxu0 0
  %1847 = vmatpush1.bf16.msra.mxu0 0
  %1848 = vmatprep.subr.bf16.mxu0 0
  %1849 = vmatpush1.bf16.msra.mxu0 0
  %1850 = vmatprep.subr.bf16.mxu0 0
  %1851 = vmatpush1.bf16.msra.mxu0 0
  %1852 = vmatprep.subr.bf16.mxu0 0
  %1853 = vmatpush1.bf16.msra.mxu0 0
  %1854 = vmatprep.mubr.bf16.mxu0 0
  %1855 = vmatmul.mubr.bf16.gmra.mrb[0].mxu0 %v1817
  %v1856 = vpop.f32.mrb[0].mxu0
  %v1857 = vadd.f32 0.0, %v1856
  %v1858 = vpop.f32.mrb[0].mxu0
  %v1859 = vpop.f32.mrb[0].mxu0
  %v1860 = vpop.f32.mrb[0].mxu0
  %1861 = vdwg.mxu0
  %v1863 = vsel %vm559, %v1813, 0
  %v1866 = vsel %vm795, %v1581, 0
  %1868 = vmatprep.subr.bf16.mxu0 0
  %1869 = vmatpush1.bf16.msra.mxu0 %v1866
  %1870 = vmatprep.subr.bf16.mxu0 0
  %1871 = vmatpush1.bf16.msra.mxu0 0
  %1872 = vmatprep.subr.bf16.mxu0 0
  %1873 = vmatpush1.bf16.msra.mxu0 0
  %1874 = vmatprep.subr.bf16.mxu0 0
  %1875 = vmatpush1.bf16.msra.mxu0 0
  %1876 = vmatprep.subr.bf16.mxu0 0
  %1877 = vmatpush1.bf16.msra.mxu0 0
  %1878 = vmatprep.subr.bf16.mxu0 0
  %1879 = vmatpush1.bf16.msra.mxu0 0
  %1880 = vmatprep.subr.bf16.mxu0 0
  %1881 = vmatpush1.bf16.msra.mxu0 0
  %1882 = vmatprep.subr.bf16.mxu0 0
  %1883 = vmatpush1.bf16.msra.mxu0 0
  %1884 = vmatprep.subr.bf16.mxu0 0
  %1885 = vmatpush1.bf16.msra.mxu0 0
  %1886 = vmatprep.subr.bf16.mxu0 0
  %1887 = vmatpush1.bf16.msra.mxu0 0
  %1888 = vmatprep.subr.bf16.mxu0 0
  %1889 = vmatpush1.bf16.msra.mxu0 0
  %1890 = vmatprep.subr.bf16.mxu0 0
  %1891 = vmatpush1.bf16.msra.mxu0 0
  %1892 = vmatprep.subr.bf16.mxu0 0
  %1893 = vmatpush1.bf16.msra.mxu0 0
  %1894 = vmatprep.subr.bf16.mxu0 0
  %1895 = vmatpush1.bf16.msra.mxu0 0
  %1896 = vmatprep.subr.bf16.mxu0 0
  %1897 = vmatpush1.bf16.msra.mxu0 0
  %1898 = vmatprep.subr.bf16.mxu0 0
  %1899 = vmatpush1.bf16.msra.mxu0 0
  %1900 = vmatprep.mubr.bf16.mxu0 0
  %1901 = vmatmul.mubr.bf16.gmra.mrb[0].mxu0 %v1863
  %v1902 = vpop.f32.mrb[0].mxu0
  %v1903 = vadd.f32 0.0, %v1902
  %v1904 = vpop.f32.mrb[0].mxu0
  %v1905 = vpop.f32.mrb[0].mxu0
  %v1906 = vpop.f32.mrb[0].mxu0
  %1907 = vdwg.mxu0
  %v1909 = vsel %vm559, %v1814, 0
  %v1912 = vsel %vm795, %v1582, 0
  %1914 = vmatprep.subr.bf16.mxu0 0
  %1915 = vmatpush1.bf16.msra.mxu0 %v1912
  %1916 = vmatprep.subr.bf16.mxu0 0
  %1917 = vmatpush1.bf16.msra.mxu0 0
  %1918 = vmatprep.subr.bf16.mxu0 0
  %1919 = vmatpush1.bf16.msra.mxu0 0
  %1920 = vmatprep.subr.bf16.mxu0 0
  %1921 = vmatpush1.bf16.msra.mxu0 0
  %1922 = vmatprep.subr.bf16.mxu0 0
  %1923 = vmatpush1.bf16.msra.mxu0 0
  %1924 = vmatprep.subr.bf16.mxu0 0
  %1925 = vmatpush1.bf16.msra.mxu0 0
  %1926 = vmatprep.subr.bf16.mxu0 0
  %1927 = vmatpush1.bf16.msra.mxu0 0
  %1928 = vmatprep.subr.bf16.mxu0 0
  %1929 = vmatpush1.bf16.msra.mxu0 0
  %1930 = vmatprep.subr.bf16.mxu0 0
  %1931 = vmatpush1.bf16.msra.mxu0 0
  %1932 = vmatprep.subr.bf16.mxu0 0
  %1933 = vmatpush1.bf16.msra.mxu0 0
  %1934 = vmatprep.subr.bf16.mxu0 0
  %1935 = vmatpush1.bf16.msra.mxu0 0
  %1936 = vmatprep.subr.bf16.mxu0 0
  %1937 = vmatpush1.bf16.msra.mxu0 0
  %1938 = vmatprep.subr.bf16.mxu0 0
  %1939 = vmatpush1.bf16.msra.mxu0 0
  %1940 = vmatprep.subr.bf16.mxu0 0
  %1941 = vmatpush1.bf16.msra.mxu0 0
  %1942 = vmatprep.subr.bf16.mxu0 0
  %1943 = vmatpush1.bf16.msra.mxu0 0
  %1944 = vmatprep.subr.bf16.mxu0 0
  %1945 = vmatpush1.bf16.msra.mxu0 0
  %1946 = vmatprep.mubr.bf16.mxu0 0
  %1947 = vmatmul.mubr.bf16.gmra.mrb[0].mxu0 %v1909
  %v1948 = vpop.f32.mrb[0].mxu0
  %v1949 = vadd.f32 0.0, %v1948
  %v1950 = vpop.f32.mrb[0].mxu0
  %v1951 = vpop.f32.mrb[0].mxu0
  %v1952 = vpop.f32.mrb[0].mxu0
  %1953 = vdwg.mxu0
  %v1955 = vsel %vm559, %v1815, 0
  %v1958 = vsel %vm795, %v1583, 0
  %1960 = vmatprep.subr.bf16.mxu0 0
  %1961 = vmatpush1.bf16.msra.mxu0 %v1958
  %1962 = vmatprep.subr.bf16.mxu0 0
  %1963 = vmatpush1.bf16.msra.mxu0 0
  %1964 = vmatprep.subr.bf16.mxu0 0
  %1965 = vmatpush1.bf16.msra.mxu0 0
  %1966 = vmatprep.subr.bf16.mxu0 0
  %1967 = vmatpush1.bf16.msra.mxu0 0
  %1968 = vmatprep.subr.bf16.mxu0 0
  %1969 = vmatpush1.bf16.msra.mxu0 0
  %1970 = vmatprep.subr.bf16.mxu0 0
  %1971 = vmatpush1.bf16.msra.mxu0 0
  %1972 = vmatprep.subr.bf16.mxu0 0
  %1973 = vmatpush1.bf16.msra.mxu0 0
  %1974 = vmatprep.subr.bf16.mxu0 0
  %1975 = vmatpush1.bf16.msra.mxu0 0
  %1976 = vmatprep.subr.bf16.mxu0 0
  %1977 = vmatpush1.bf16.msra.mxu0 0
  %1978 = vmatprep.subr.bf16.mxu0 0
  %1979 = vmatpush1.bf16.msra.mxu0 0
  %1980 = vmatprep.subr.bf16.mxu0 0
  %1981 = vmatpush1.bf16.msra.mxu0 0
  %1982 = vmatprep.subr.bf16.mxu0 0
  %1983 = vmatpush1.bf16.msra.mxu0 0
  %1984 = vmatprep.subr.bf16.mxu0 0
  %1985 = vmatpush1.bf16.msra.mxu0 0
  %1986 = vmatprep.subr.bf16.mxu0 0
  %1987 = vmatpush1.bf16.msra.mxu0 0
  %1988 = vmatprep.subr.bf16.mxu0 0
  %1989 = vmatpush1.bf16.msra.mxu0 0
  %1990 = vmatprep.subr.bf16.mxu0 0
  %1991 = vmatpush1.bf16.msra.mxu0 0
  %1992 = vmatprep.mubr.bf16.mxu0 0
  %1993 = vmatmul.mubr.bf16.gmra.mrb[0].mxu0 %v1955
  %v1994 = vpop.f32.mrb[0].mxu0
  %v1995 = vadd.f32 0.0, %v1994
  %v1996 = vpop.f32.mrb[0].mxu0
  %v1997 = vpop.f32.mrb[0].mxu0
  %v1998 = vpop.f32.mrb[0].mxu0
  %1999 = vdwg.mxu0
  %v2000 = vcombine.low %v1857, %v1949
  %v2001 = vcombine.high %v1857, %v1949
  %v2003 = vunpack.c.l.s4 1983009808
  %v2004 = vunpack.c.0.s8 %v2003
  %v2005 = vlaneseq
  %v2006 = vshrl.u32 %v2005, 7
  %v2007 = vsub.s32 %v2004, %v2006
  %v2008 = vrot.slane %v2000, %v2007
  %v2010 = vunpack.c.l.s4 1983009808
  %v2011 = vunpack.c.0.s8 %v2010
  %v2012 = vlaneseq
  %v2013 = vshrl.u32 %v2012, 7
  %v2014 = vsub.s32 %v2011, %v2013
  %v2015 = vrot.slane %v2001, %v2014
  %v2016 = vcombine.low %v1903, %v1995
  %v2017 = vcombine.high %v1903, %v1995
  %v2019 = vunpack.c.l.s4 1983009808
  %v2020 = vunpack.c.0.s8 %v2019
  %v2021 = vlaneseq
  %v2022 = vshrl.u32 %v2021, 7
  %v2023 = vsub.s32 %v2020, %v2022
  %v2024 = vrot.slane %v2016, %v2023
  %v2026 = vunpack.c.l.s4 1983009808
  %v2027 = vunpack.c.0.s8 %v2026
  %v2028 = vlaneseq
  %v2029 = vshrl.u32 %v2028, 7
  %v2030 = vsub.s32 %v2027, %v2029
  %v2031 = vrot.slane %v2017, %v2030
  %v2032 = vcombine.low %v2008, %v2024
  %v2033 = vcombine.high %v2008, %v2024
  %v2035 = vunpack.c.l.s4 1934713408
  %v2036 = vunpack.c.0.s8 %v2035
  %v2037 = vlaneseq
  %v2038 = vshrl.u32 %v2037, 7
  %v2039 = vsub.s32 %v2036, %v2038
  %v2040 = vrot.slane %v2032, %v2039
  %v2042 = vunpack.c.l.s4 1934713408
  %v2043 = vunpack.c.0.s8 %v2042
  %v2044 = vlaneseq
  %v2045 = vshrl.u32 %v2044, 7
  %v2046 = vsub.s32 %v2043, %v2045
  %v2047 = vrot.slane %v2033, %v2046
  %v2048 = vcombine.low %v2015, %v2031
  %v2049 = vcombine.high %v2015, %v2031
  %v2051 = vunpack.c.l.s4 1934713408
  %v2052 = vunpack.c.0.s8 %v2051
  %v2053 = vlaneseq
  %v2054 = vshrl.u32 %v2053, 7
  %v2055 = vsub.s32 %v2052, %v2054
  %v2056 = vrot.slane %v2048, %v2055
  %v2058 = vunpack.c.l.s4 1934713408
  %v2059 = vunpack.c.0.s8 %v2058
  %v2060 = vlaneseq
  %v2061 = vshrl.u32 %v2060, 7
  %v2062 = vsub.s32 %v2059, %v2061
  %v2063 = vrot.slane %v2049, %v2062
  %v2064 = vcombine.high %v2040, 0.0
  %v2065 = vcombine.high %v2047, 0.0
  %v2066 = vcombine.high %v2056, 0.0
  %v2067 = vcombine.high %v2063, 0.0
  %v2068 = vcombine.low %v2040, %v2047
  %v2070 = vunpack.c.l.s4 1983009808
  %v2071 = vunpack.c.0.s8 %v2070
  %v2072 = vlaneseq
  %v2073 = vshrl.u32 %v2072, 7
  %v2074 = vsub.s32 %v2071, %v2073
  %v2075 = vrot.slane %v2068, %v2074
  %v2076 = vcombine.low %v2064, %v2065
  %v2078 = vunpack.c.l.s4 1983009808
  %v2079 = vunpack.c.0.s8 %v2078
  %v2080 = vlaneseq
  %v2081 = vshrl.u32 %v2080, 7
  %v2082 = vsub.s32 %v2079, %v2081
  %v2083 = vrot.slane %v2076, %v2082
  %v2084 = vcombine.low %v2056, %v2063
  %v2086 = vunpack.c.l.s4 1983009808
  %v2087 = vunpack.c.0.s8 %v2086
  %v2088 = vlaneseq
  %v2089 = vshrl.u32 %v2088, 7
  %v2090 = vsub.s32 %v2087, %v2089
  %v2091 = vrot.slane %v2084, %v2090
  %v2092 = vcombine.low %v2066, %v2067
  %v2094 = vunpack.c.l.s4 1983009808
  %v2095 = vunpack.c.0.s8 %v2094
  %v2096 = vlaneseq
  %v2097 = vshrl.u32 %v2096, 7
  %v2098 = vsub.s32 %v2095, %v2097
  %v2099 = vrot.slane %v2092, %v2098
  %v2100 = vcombine.low %v2075, %v2083
  %v2101 = vcombine.high %v2075, %v2083
  %v2103 = vunpack.c.l.s4 1934713408
  %v2104 = vunpack.c.0.s8 %v2103
  %v2105 = vlaneseq
  %v2106 = vshrl.u32 %v2105, 7
  %v2107 = vsub.s32 %v2104, %v2106
  %v2108 = vrot.slane %v2100, %v2107
  %v2110 = vunpack.c.l.s4 1934713408
  %v2111 = vunpack.c.0.s8 %v2110
  %v2112 = vlaneseq
  %v2113 = vshrl.u32 %v2112, 7
  %v2114 = vsub.s32 %v2111, %v2113
  %v2115 = vrot.slane %v2101, %v2114
  %v2116 = vcombine.low %v2091, %v2099
  %v2117 = vcombine.high %v2091, %v2099
  %v2119 = vunpack.c.l.s4 1934713408
  %v2120 = vunpack.c.0.s8 %v2119
  %v2121 = vlaneseq
  %v2122 = vshrl.u32 %v2121, 7
  %v2123 = vsub.s32 %v2120, %v2122
  %v2124 = vrot.slane %v2116, %v2123
  %v2126 = vunpack.c.l.s4 1934713408
  %v2127 = vunpack.c.0.s8 %v2126
  %v2128 = vlaneseq
  %v2129 = vshrl.u32 %v2128, 7
  %v2130 = vsub.s32 %v2127, %v2129
  %v2131 = vrot.slane %v2117, %v2130
  %v2132 = vcombine.low %v2108, %v2124
  %v2133 = vcombine.high %v2108, %v2124
  %v2134 = vcombine.low %v2115, %v2131
  %v2135 = vcombine.high %v2115, %v2131
  %2137 = vrot.lane.b32.xlu0 %v2133, 8
  %v2138 = vpop.permute.xlu0 %2137
  %2141 = vrot.lane.b32.xlu0 %v2134, 16
  %v2142 = vpop.permute.xlu0 %2141
  %2145 = vrot.lane.b32.xlu0 %v2135, 24
  %v2146 = vpop.permute.xlu0 %2145
  %v2148 = vsel %vm559, %v2132, %v2138
  %v2149 = vsel %vm1126, %v2148, %v2142
  %v2150 = vsel %vm1128, %v2149, %v2146
  %v2151 = vpack.c.bf16 %v2150, %v1129
  %v2153 = vlaneseq
  %v2154 = vshrl.u32 %v2153, 7
  %v2155 = vsub.s32 0, %v2154
  %v2156 = vrot.slane %v102, %v2155
  %v2162 = vunpack.c.l.b16 %v98
  %v2163 = vunpack.c.l.b16 %v99
  %v2164 = vunpack.c.l.b16 %v100
  %v2165 = vunpack.c.l.b16 %v101
  %v2166 = vpack.c.b16 %v2163, %v2162
  %v2167 = vpack.c.b16 %v2165, %v2164
  %v2171 = vsel %vm53, %v2151, 0
  %2173 = vmatprep.subr.bf16.mxu0 0
  %2174 = vmatpush1.bf16.msra.mxu0 %v2166
  %2175 = vmatprep.subr.bf16.mxu0 0
  %2176 = vmatpush1.bf16.msra.mxu0 %v2167
  %2177 = vmatprep.subr.bf16.mxu0 0
  %2178 = vmatpush1.bf16.msra.mxu0 0
  %2179 = vmatprep.subr.bf16.mxu0 0
  %2180 = vmatpush1.bf16.msra.mxu0 0
  %2181 = vmatprep.subr.bf16.mxu0 0
  %2182 = vmatpush1.bf16.msra.mxu0 0
  %2183 = vmatprep.subr.bf16.mxu0 0
  %2184 = vmatpush1.bf16.msra.mxu0 0
  %2185 = vmatprep.subr.bf16.mxu0 0
  %2186 = vmatpush1.bf16.msra.mxu0 0
  %2187 = vmatprep.subr.bf16.mxu0 0
  %2188 = vmatpush1.bf16.msra.mxu0 0
  %2189 = vmatprep.subr.bf16.mxu0 0
  %2190 = vmatpush1.bf16.msra.mxu0 0
  %2191 = vmatprep.subr.bf16.mxu0 0
  %2192 = vmatpush1.bf16.msra.mxu0 0
  %2193 = vmatprep.subr.bf16.mxu0 0
  %2194 = vmatpush1.bf16.msra.mxu0 0
  %2195 = vmatprep.subr.bf16.mxu0 0
  %2196 = vmatpush1.bf16.msra.mxu0 0
  %2197 = vmatprep.subr.bf16.mxu0 0
  %2198 = vmatpush1.bf16.msra.mxu0 0
  %2199 = vmatprep.subr.bf16.mxu0 0
  %2200 = vmatpush1.bf16.msra.mxu0 0
  %2201 = vmatprep.subr.bf16.mxu0 0
  %2202 = vmatpush1.bf16.msra.mxu0 0
  %2203 = vmatprep.subr.bf16.mxu0 0
  %2204 = vmatpush1.bf16.msra.mxu0 0
  %2205 = vmatprep.mubr.bf16.mxu0 0
  %2206 = vmatmul.mubr.bf16.gmra.mrb[0].mxu0 %v2171
  %v2207 = vpop.f32.mrb[0].mxu0
  %v2208 = vadd.f32 %v2156, %v2207
  %v2209 = vpop.f32.mrb[0].mxu0
  %v2210 = vpop.f32.mrb[0].mxu0
  %v2211 = vadd.f32 %v2156, %v2210
  %v2212 = vpop.f32.mrb[0].mxu0
  %2213 = vdwg.mxu0
  %v2214 = vadd.f32 %v27, %v2208
  %v2215 = vadd.f32 %v28, %v2211
  %v2216 = vsel %vm53, %v2214, 0.0
  %2217 = vadd.xlane.f32.xlu0 %v2216
  %v2218 = vpop.xlane.xlu0 %2217
  %v2219 = vsel %vm53, %v2215, 0.0
  %2220 = vadd.xlane.f32.xlu0 %v2219
  %v2221 = vpop.xlane.xlu0 %2220
  %v2222 = vrcp.pop 32.0
  %v2223 = vmul.f32 %v2218, %v2222
  %v2224 = vmul.f32 %v2221, %v2222
  %v2225 = vsub.f32 %v2214, %v2223
  %v2226 = vsub.f32 %v2215, %v2224
  %v2227 = vmul.f32 %v2225, %v2225
  %v2228 = vmul.f32 %v2226, %v2226
  %v2229 = vsel %vm53, %v2227, 0.0
  %2230 = vadd.xlane.f32.xlu0 %v2229
  %v2231 = vpop.xlane.xlu0 %2230
  %v2232 = vsel %vm53, %v2228, 0.0
  %2233 = vadd.xlane.f32.xlu0 %v2232
  %v2234 = vpop.xlane.xlu0 %2233
  %v2235 = vmul.f32 %v2231, %v2222
  %v2236 = vmul.f32 %v2234, %v2222
  %v2237 = vadd.f32 %v2235, 1e-05
  %v2238 = vadd.f32 %v2236, 1e-05
  %v2239 = vrsqrt.pop %v2237
  %v2240 = vrsqrt.pop %v2238
  %v2241 = vmul.f32 %v2225, %v2239
  %v2242 = vmul.f32 %v2226, %v2240
  %v2244 = vlaneseq
  %v2245 = vshrl.u32 %v2244, 7
  %v2246 = vsub.s32 0, %v2245
  %v2247 = vrot.slane %v103, %v2246
  %v2249 = vmul.f32 %v2241, %v2247
  %v2250 = vmul.f32 %v2242, %v2247
  %v2252 = vlaneseq
  %v2253 = vshrl.u32 %v2252, 7
  %v2254 = vsub.s32 0, %v2253
  %v2255 = vrot.slane %v104, %v2254
  %v2257 = vadd.f32 %v2249, %v2255
  %v2258 = vadd.f32 %v2250, %v2255
  %2259 = vst.msk [vmem:[%s7] sm:$0xff] %vm53, %v2257
  %2260 = vst.msk [vmem:[%s7 + $0x8] sm:$0xff] %vm53, %v2258
  // Predicated region
  $region30: #{transformer_forward.11} parent=0 // pred_check
    _
  $region31: #{transformer_forward.11} parent=0 // pred_check_branch
    %2262 = sbr.rel (0) target = $region33
  $region32: #{transformer_forward.11} parent=0 // pred_region
    _
  $region33: #{transformer_forward.11} parent=0 // pred_fallthru
    _
  // Predicated region
  $region34: #{transformer_forward.11} parent=0 // pred_check
    _
  $region35: #{transformer_forward.11} parent=0 // pred_check_branch
    %2264 = sbr.rel (0) target = $region37
  $region36: #{transformer_forward.11} parent=0 // pred_region
    _
  $region37: #{transformer_forward.11} parent=0 // pred_fallthru
    _

// kernel: transformer_forward.16
$region0: #{transformer_forward.16}
  #allocation0 [shape = 'u32[]', space=smem, size = 0x4, offset = 0x4, fixed_abs, tag = 'smem constant byte address 0x4 - core index']
  #allocation1 [shape = 'u32[144,128]{1,0:T(1,128)}', space=vmem, size = 0x12000, scoped, tag = 'internal scratch']
  %s0 = inlined_call_operand.vmem [shape: f32[2,8,32], index: 0, kind: input, shape index: {}]
  %s1 = inlined_call_operand.vmem [shape: f32[2,8,32], index: 1, kind: input, shape index: {}]
  %s2 = inlined_call_operand.vmem [shape: bf16[32,32], index: 2, kind: input, shape index: {}]
  %s3 = inlined_call_operand.vmem [shape: f32[1,32], index: 3, kind: input, shape index: {}]
  %s4 = inlined_call_operand.vmem [shape: bf16[32,64], index: 4, kind: input, shape index: {}]
  %s5 = inlined_call_operand.vmem [shape: f32[1,64], index: 5, kind: input, shape index: {}]
  %s6 = inlined_call_operand.vmem [shape: bf16[32,32], index: 6, kind: input, shape index: {}]
  %s7 = inlined_call_operand.vmem [shape: f32[1,32], index: 7, kind: input, shape index: {}]
  %s8 = inlined_call_operand.vmem [shape: f32[1,32], index: 8, kind: input, shape index: {}]
  %s9 = inlined_call_operand.vmem [shape: f32[1,32], index: 9, kind: input, shape index: {}]
  %s10 = inlined_call_operand.vmem [shape: f32[2,8,32], index: 10, kind: output, shape index: {}]
  %s11 = sld [smem:[#allocation0]]
  $region50: #{transformer_forward.16} parent=0
    _
  %s13 = ssub.s32 1, %s11
  %s14 = scalar_select 0, %s13, %s11
  // Predicated region
  $region2: #{transformer_forward.16} parent=0 // pred_check
    _
  $region3: #{transformer_forward.16} parent=0 // pred_check_branch
    %16 = sbr.rel (0) target = $region5
  $region4: #{transformer_forward.16} parent=0 // pred_region
    _
  $region5: #{transformer_forward.16} parent=0 // pred_fallthru
    _
  // Predicated region
  $region6: #{transformer_forward.16} parent=0 // pred_check
    _
  $region7: #{transformer_forward.16} parent=0 // pred_check_branch
    %18 = sbr.rel (0) target = $region9
  $region8: #{transformer_forward.16} parent=0 // pred_region
    _
  $region9: #{transformer_forward.16} parent=0 // pred_fallthru
    _
  // Predicated region
  $region10: #{transformer_forward.16} parent=0 // pred_check
    _
  $region11: #{transformer_forward.16} parent=0 // pred_check_branch
    %20 = sbr.rel (0) target = $region13
  $region12: #{transformer_forward.16} parent=0 // pred_region
    _
  $region13: #{transformer_forward.16} parent=0 // pred_fallthru
    _
  // Predicated region
  $region14: #{transformer_forward.16} parent=0 // pred_check
    _
  $region15: #{transformer_forward.16} parent=0 // pred_check_branch
    %22 = sbr.rel (0) target = $region17
  $region16: #{transformer_forward.16} parent=0 // pred_region
    _
  $region17: #{transformer_forward.16} parent=0 // pred_fallthru
    _
  // Predicated region
  $region18: #{transformer_forward.16} parent=0 // pred_check
    _
  $region19: #{transformer_forward.16} parent=0 // pred_check_branch
    %24 = sbr.rel (0) target = $region21
  $region20: #{transformer_forward.16} parent=0 // pred_region
    _
  $region21: #{transformer_forward.16} parent=0 // pred_fallthru
    _
  // Predicated region
  $region22: #{transformer_forward.16} parent=0 // pred_check
    _
  $region23: #{transformer_forward.16} parent=0 // pred_check_branch
    %26 = sbr.rel (0) target = $region25
  $region24: #{transformer_forward.16} parent=0 // pred_region
    _
  $region25: #{transformer_forward.16} parent=0 // pred_fallthru
    _
  // Predicated region
  $region26: #{transformer_forward.16} parent=0 // pred_check
    _
  $region27: #{transformer_forward.16} parent=0 // pred_check_branch
    %28 = sbr.rel (0) target = $region29
  $region28: #{transformer_forward.16} parent=0 // pred_region
    _
  $region29: #{transformer_forward.16} parent=0 // pred_fallthru
    _
  // Predicated region
  $region30: #{transformer_forward.16} parent=0 // pred_check
    _
  $region31: #{transformer_forward.16} parent=0 // pred_check_branch
    %30 = sbr.rel (0) target = $region33
  $region32: #{transformer_forward.16} parent=0 // pred_region
    _
  $region33: #{transformer_forward.16} parent=0 // pred_fallthru
    _
  // Predicated region
  $region34: #{transformer_forward.16} parent=0 // pred_check
    _
  $region35: #{transformer_forward.16} parent=0 // pred_check_branch
    %32 = sbr.rel (0) target = $region37
  $region36: #{transformer_forward.16} parent=0 // pred_region
    _
  $region37: #{transformer_forward.16} parent=0 // pred_fallthru
    _
  // Predicated region
  $region38: #{transformer_forward.16} parent=0 // pred_check
    _
  $region39: #{transformer_forward.16} parent=0 // pred_check_branch
    %34 = sbr.rel (0) target = $region41
  $region40: #{transformer_forward.16} parent=0 // pred_region
    _
  $region41: #{transformer_forward.16} parent=0 // pred_fallthru
    _
  %v36 = vld [vmem:[%s0] sm:$0xff]
  %v37 = vld [vmem:[%s0 + $0x8] sm:$0xff]
  %v38 = vld [vmem:[%s1] sm:$0xff]
  %v39 = vld [vmem:[%s1 + $0x8] sm:$0xff]
  %v40 = vld [vmem:[%s2] sm:$0xf]
  %v41 = vld [vmem:[%s2 + $0x4] sm:$0xf]
  %v42 = vld [vmem:[%s2 + $0x8] sm:$0xf]
  %v43 = vld [vmem:[%s2 + $0xc] sm:$0xf]
  %v44 = vpack.c.bf16 %v37, %v36
  %v45 = vld [vmem:[%s3] sm:$0x1]
  %v47 = vlaneseq
  %v48 = vshrl.u32 %v47, 7
  %v49 = vsub.s32 0, %v48
  %v50 = vrot.slane %v45, %v49
  %v56 = vunpack.c.l.b16 %v40
  %v57 = vunpack.c.l.b16 %v41
  %v58 = vunpack.c.l.b16 %v42
  %v59 = vunpack.c.l.b16 %v43
  %v60 = vpack.c.b16 %v57, %v56
  %v61 = vpack.c.b16 %v59, %v58
  %vm64 = vcmask 261120
  %v66 = vsel %vm64, %v44, 0
  %68 = vmatprep.subr.bf16.mxu0 0
  %69 = vmatpush1.bf16.msra.mxu0 %v60
  %70 = vmatprep.subr.bf16.mxu0 0
  %71 = vmatpush1.bf16.msra.mxu0 %v61
  %72 = vmatprep.subr.bf16.mxu0 0
  %73 = vmatpush1.bf16.msra.mxu0 0
  %74 = vmatprep.subr.bf16.mxu0 0
  %75 = vmatpush1.bf16.msra.mxu0 0
  %76 = vmatprep.subr.bf16.mxu0 0
  %77 = vmatpush1.bf16.msra.mxu0 0
  %78 = vmatprep.subr.bf16.mxu0 0
  %79 = vmatpush1.bf16.msra.mxu0 0
  %80 = vmatprep.subr.bf16.mxu0 0
  %81 = vmatpush1.bf16.msra.mxu0 0
  %82 = vmatprep.subr.bf16.mxu0 0
  %83 = vmatpush1.bf16.msra.mxu0 0
  %84 = vmatprep.subr.bf16.mxu0 0
  %85 = vmatpush1.bf16.msra.mxu0 0
  %86 = vmatprep.subr.bf16.mxu0 0
  %87 = vmatpush1.bf16.msra.mxu0 0
  %88 = vmatprep.subr.bf16.mxu0 0
  %89 = vmatpush1.bf16.msra.mxu0 0
  %90 = vmatprep.subr.bf16.mxu0 0
  %91 = vmatpush1.bf16.msra.mxu0 0
  %92 = vmatprep.subr.bf16.mxu0 0
  %93 = vmatpush1.bf16.msra.mxu0 0
  %94 = vmatprep.subr.bf16.mxu0 0
  %95 = vmatpush1.bf16.msra.mxu0 0
  %96 = vmatprep.subr.bf16.mxu0 0
  %97 = vmatpush1.bf16.msra.mxu0 0
  %98 = vmatprep.subr.bf16.mxu0 0
  %99 = vmatpush1.bf16.msra.mxu0 0
  %100 = vmatprep.mubr.bf16.mxu0 0
  %101 = vmatmul.mubr.bf16.gmra.mrb[0].mxu0 %v66
  %v102 = vpop.f32.mrb[0].mxu0
  %v103 = vadd.f32 %v50, %v102
  %v104 = vpop.f32.mrb[0].mxu0
  %v105 = vpop.f32.mrb[0].mxu0
  %v106 = vadd.f32 %v50, %v105
  %v107 = vpop.f32.mrb[0].mxu0
  %108 = vdwg.mxu0
  %v109 = vld [vmem:[%s4] sm:$0xf]
  %v110 = vld [vmem:[%s4 + $0x4] sm:$0xf]
  %v111 = vld [vmem:[%s4 + $0x8] sm:$0xf]
  %v112 = vld [vmem:[%s4 + $0xc] sm:$0xf]
  %v113 = vpack.c.bf16 %v39, %v38
  %v114 = vld [vmem:[%s5] sm:$0x1]
  %v116 = vlaneseq
  %v117 = vshrl.u32 %v116, 7
  %v118 = vsub.s32 0, %v117
  %v119 = vrot.slane %v114, %v118
  %v125 = vunpack.c.l.b16 %v109
  %v126 = vunpack.c.l.b16 %v110
  %v127 = vunpack.c.l.b16 %v111
  %v128 = vunpack.c.l.b16 %v112
  %v129 = vpack.c.b16 %v126, %v125
  %v130 = vpack.c.b16 %v128, %v127
  %v134 = vsel %vm64, %v113, 0
  %136 = vmatprep.subr.bf16.mxu0 0
  %137 = vmatpush1.bf16.msra.mxu0 %v129
  %138 = vmatprep.subr.bf16.mxu0 0
  %139 = vmatpush1.bf16.msra.mxu0 %v130
  %140 = vmatprep.subr.bf16.mxu0 0
  %141 = vmatpush1.bf16.msra.mxu0 0
  %142 = vmatprep.subr.bf16.mxu0 0
  %143 = vmatpush1.bf16.msra.mxu0 0
  %144 = vmatprep.subr.bf16.mxu0 0
  %145 = vmatpush1.bf16.msra.mxu0 0
  %146 = vmatprep.subr.bf16.mxu0 0
  %147 = vmatpush1.bf16.msra.mxu0 0
  %148 = vmatprep.subr.bf16.mxu0 0
  %149 = vmatpush1.bf16.msra.mxu0 0
  %150 = vmatprep.subr.bf16.mxu0 0
  %151 = vmatpush1.bf16.msra.mxu0 0
  %152 = vmatprep.subr.bf16.mxu0 0
  %153 = vmatpush1.bf16.msra.mxu0 0
  %154 = vmatprep.subr.bf16.mxu0 0
  %155 = vmatpush1.bf16.msra.mxu0 0
  %156 = vmatprep.subr.bf16.mxu0 0
  %157 = vmatpush1.bf16.msra.mxu0 0
  %158 = vmatprep.subr.bf16.mxu0 0
  %159 = vmatpush1.bf16.msra.mxu0 0
  %160 = vmatprep.subr.bf16.mxu0 0
  %161 = vmatpush1.bf16.msra.mxu0 0
  %162 = vmatprep.subr.bf16.mxu0 0
  %163 = vmatpush1.bf16.msra.mxu0 0
  %164 = vmatprep.subr.bf16.mxu0 0
  %165 = vmatpush1.bf16.msra.mxu0 0
  %166 = vmatprep.subr.bf16.mxu0 0
  %167 = vmatpush1.bf16.msra.mxu0 0
  %168 = vmatprep.mubr.bf16.mxu0 0
  %169 = vmatmul.mubr.bf16.gmra.mrb[0].mxu0 %v134
  %v170 = vpop.f32.mrb[0].mxu0
  %v171 = vadd.f32 %v119, %v170
  %v172 = vpop.f32.mrb[0].mxu0
  %v173 = vpop.f32.mrb[0].mxu0
  %v174 = vadd.f32 %v119, %v173
  %v175 = vpop.f32.mrb[0].mxu0
  %176 = vdwg.mxu0
  %v177 = vld [vmem:[%s6] sm:$0xf]
  %v178 = vld [vmem:[%s6 + $0x4] sm:$0xf]
  %v179 = vld [vmem:[%s6 + $0x8] sm:$0xf]
  %v180 = vld [vmem:[%s6 + $0xc] sm:$0xf]
  %v181 = vld [vmem:[%s7] sm:$0x1]
  %v182 = vld [vmem:[%s8] sm:$0x1]
  %v183 = vld [vmem:[%s9] sm:$0x1]
  %185 = vrot.lane.b32.xlu0 %v103, 120
  %v186 = vpop.permute.xlu0 %185
  %188 = vrot.lane.b32.xlu0 %v103, 112
  %v189 = vpop.permute.xlu0 %188
  %191 = vrot.lane.b32.xlu0 %v103, 104
  %v192 = vpop.permute.xlu0 %191
  %v194 = vcombine.low %v103, %v189
  %v195 = vcombine.high %v103, %v189
  %v197 = vunpack.c.l.s4 1983009808
  %v198 = vunpack.c.0.s8 %v197
  %v199 = vlaneseq
  %v200 = vshrl.u32 %v199, 7
  %v201 = vsub.s32 %v198, %v200
  %v202 = vrot.slane %v194, %v201
  %v204 = vunpack.c.l.s4 1983009808
  %v205 = vunpack.c.0.s8 %v204
  %v206 = vlaneseq
  %v207 = vshrl.u32 %v206, 7
  %v208 = vsub.s32 %v205, %v207
  %v209 = vrot.slane %v195, %v208
  %v210 = vcombine.low %v186, %v192
  %v211 = vcombine.high %v186, %v192
  %v213 = vunpack.c.l.s4 1983009808
  %v214 = vunpack.c.0.s8 %v213
  %v215 = vlaneseq
  %v216 = vshrl.u32 %v215, 7
  %v217 = vsub.s32 %v214, %v216
  %v218 = vrot.slane %v210, %v217
  %v220 = vunpack.c.l.s4 1983009808
  %v221 = vunpack.c.0.s8 %v220
  %v222 = vlaneseq
  %v223 = vshrl.u32 %v222, 7
  %v224 = vsub.s32 %v221, %v223
  %v225 = vrot.slane %v211, %v224
  %v226 = vcombine.low %v202, %v218
  %v227 = vcombine.high %v202, %v218
  %v229 = vunpack.c.l.s4 1934713408
  %v230 = vunpack.c.0.s8 %v229
  %v231 = vlaneseq
  %v232 = vshrl.u32 %v231, 7
  %v233 = vsub.s32 %v230, %v232
  %v234 = vrot.slane %v226, %v233
  %v236 = vunpack.c.l.s4 1934713408
  %v237 = vunpack.c.0.s8 %v236
  %v238 = vlaneseq
  %v239 = vshrl.u32 %v238, 7
  %v240 = vsub.s32 %v237, %v239
  %v241 = vrot.slane %v227, %v240
  %v242 = vcombine.low %v209, %v225
  %v243 = vcombine.high %v209, %v225
  %v245 = vunpack.c.l.s4 1934713408
  %v246 = vunpack.c.0.s8 %v245
  %v247 = vlaneseq
  %v248 = vshrl.u32 %v247, 7
  %v249 = vsub.s32 %v246, %v248
  %v250 = vrot.slane %v242, %v249
  %v252 = vunpack.c.l.s4 1934713408
  %v253 = vunpack.c.0.s8 %v252
  %v254 = vlaneseq
  %v255 = vshrl.u32 %v254, 7
  %v256 = vsub.s32 %v253, %v255
  %v257 = vrot.slane %v243, %v256
  %v258 = vcombine.high %v234, 0.0
  %v259 = vcombine.high %v241, 0.0
  %v260 = vcombine.high %v250, 0.0
  %v261 = vcombine.high %v257, 0.0
  %v262 = vcombine.low %v234, %v241
  %v264 = vunpack.c.l.s4 1983009808
  %v265 = vunpack.c.0.s8 %v264
  %v266 = vlaneseq
  %v267 = vshrl.u32 %v266, 7
  %v268 = vsub.s32 %v265, %v267
  %v269 = vrot.slane %v262, %v268
  %v270 = vcombine.low %v258, %v259
  %v272 = vunpack.c.l.s4 1983009808
  %v273 = vunpack.c.0.s8 %v272
  %v274 = vlaneseq
  %v275 = vshrl.u32 %v274, 7
  %v276 = vsub.s32 %v273, %v275
  %v277 = vrot.slane %v270, %v276
  %v278 = vcombine.low %v250, %v257
  %v280 = vunpack.c.l.s4 1983009808
  %v281 = vunpack.c.0.s8 %v280
  %v282 = vlaneseq
  %v283 = vshrl.u32 %v282, 7
  %v284 = vsub.s32 %v281, %v283
  %v285 = vrot.slane %v278, %v284
  %v286 = vcombine.low %v260, %v261
  %v288 = vunpack.c.l.s4 1983009808
  %v289 = vunpack.c.0.s8 %v288
  %v290 = vlaneseq
  %v291 = vshrl.u32 %v290, 7
  %v292 = vsub.s32 %v289, %v291
  %v293 = vrot.slane %v286, %v292
  %v294 = vcombine.low %v269, %v277
  %v295 = vcombine.high %v269, %v277
  %v297 = vunpack.c.l.s4 1934713408
  %v298 = vunpack.c.0.s8 %v297
  %v299 = vlaneseq
  %v300 = vshrl.u32 %v299, 7
  %v301 = vsub.s32 %v298, %v300
  %v302 = vrot.slane %v294, %v301
  %v304 = vunpack.c.l.s4 1934713408
  %v305 = vunpack.c.0.s8 %v304
  %v306 = vlaneseq
  %v307 = vshrl.u32 %v306, 7
  %v308 = vsub.s32 %v305, %v307
  %v309 = vrot.slane %v295, %v308
  %v310 = vcombine.low %v285, %v293
  %v311 = vcombine.high %v285, %v293
  %v313 = vunpack.c.l.s4 1934713408
  %v314 = vunpack.c.0.s8 %v313
  %v315 = vlaneseq
  %v316 = vshrl.u32 %v315, 7
  %v317 = vsub.s32 %v314, %v316
  %v318 = vrot.slane %v310, %v317
  %v320 = vunpack.c.l.s4 1934713408
  %v321 = vunpack.c.0.s8 %v320
  %v322 = vlaneseq
  %v323 = vshrl.u32 %v322, 7
  %v324 = vsub.s32 %v321, %v323
  %v325 = vrot.slane %v311, %v324
  %v326 = vcombine.low %v302, %v318
  %v327 = vcombine.high %v302, %v318
  %v328 = vcombine.low %v309, %v325
  %v329 = vcombine.high %v309, %v325
  %v330 = vpack.c.bf16 %v326, %v326
  %v331 = vpack.c.bf16 %v327, %v327
  %v332 = vpack.c.bf16 %v328, %v328
  %v333 = vpack.c.bf16 %v329, %v329
  %335 = vrot.lane.b32.xlu0 %v171, 120
  %v336 = vpop.permute.xlu0 %335
  %338 = vrot.lane.b32.xlu0 %v171, 112
  %v339 = vpop.permute.xlu0 %338
  %341 = vrot.lane.b32.xlu0 %v171, 104
  %v342 = vpop.permute.xlu0 %341
  %v344 = vcombine.low %v171, %v339
  %v345 = vcombine.high %v171, %v339
  %v347 = vunpack.c.l.s4 1983009808
  %v348 = vunpack.c.0.s8 %v347
  %v349 = vlaneseq
  %v350 = vshrl.u32 %v349, 7
  %v351 = vsub.s32 %v348, %v350
  %v352 = vrot.slane %v344, %v351
  %v354 = vunpack.c.l.s4 1983009808
  %v355 = vunpack.c.0.s8 %v354
  %v356 = vlaneseq
  %v357 = vshrl.u32 %v356, 7
  %v358 = vsub.s32 %v355, %v357
  %v359 = vrot.slane %v345, %v358
  %v360 = vcombine.low %v336, %v342
  %v361 = vcombine.high %v336, %v342
  %v363 = vunpack.c.l.s4 1983009808
  %v364 = vunpack.c.0.s8 %v363
  %v365 = vlaneseq
  %v366 = vshrl.u32 %v365, 7
  %v367 = vsub.s32 %v364, %v366
  %v368 = vrot.slane %v360, %v367
  %v370 = vunpack.c.l.s4 1983009808
  %v371 = vunpack.c.0.s8 %v370
  %v372 = vlaneseq
  %v373 = vshrl.u32 %v372, 7
  %v374 = vsub.s32 %v371, %v373
  %v375 = vrot.slane %v361, %v374
  %v376 = vcombine.low %v352, %v368
  %v377 = vcombine.high %v352, %v368
  %v379 = vunpack.c.l.s4 1934713408
  %v380 = vunpack.c.0.s8 %v379
  %v381 = vlaneseq
  %v382 = vshrl.u32 %v381, 7
  %v383 = vsub.s32 %v380, %v382
  %v384 = vrot.slane %v376, %v383
  %v386 = vunpack.c.l.s4 1934713408
  %v387 = vunpack.c.0.s8 %v386
  %v388 = vlaneseq
  %v389 = vshrl.u32 %v388, 7
  %v390 = vsub.s32 %v387, %v389
  %v391 = vrot.slane %v377, %v390
  %v392 = vcombine.low %v359, %v375
  %v393 = vcombine.high %v359, %v375
  %v395 = vunpack.c.l.s4 1934713408
  %v396 = vunpack.c.0.s8 %v395
  %v397 = vlaneseq
  %v398 = vshrl.u32 %v397, 7
  %v399 = vsub.s32 %v396, %v398
  %v400 = vrot.slane %v392, %v399
  %v402 = vunpack.c.l.s4 1934713408
  %v403 = vunpack.c.0.s8 %v402
  %v404 = vlaneseq
  %v405 = vshrl.u32 %v404, 7
  %v406 = vsub.s32 %v403, %v405
  %v407 = vrot.slane %v393, %v406
  %v408 = vcombine.high %v384, 0.0
  %v409 = vcombine.high %v391, 0.0
  %v410 = vcombine.high %v400, 0.0
  %v411 = vcombine.high %v407, 0.0
  %v412 = vcombine.low %v384, %v391
  %v414 = vunpack.c.l.s4 1983009808
  %v415 = vunpack.c.0.s8 %v414
  %v416 = vlaneseq
  %v417 = vshrl.u32 %v416, 7
  %v418 = vsub.s32 %v415, %v417
  %v419 = vrot.slane %v412, %v418
  %v420 = vcombine.low %v408, %v409
  %v422 = vunpack.c.l.s4 1983009808
  %v423 = vunpack.c.0.s8 %v422
  %v424 = vlaneseq
  %v425 = vshrl.u32 %v424, 7
  %v426 = vsub.s32 %v423, %v425
  %v427 = vrot.slane %v420, %v426
  %v428 = vcombine.low %v400, %v407
  %v430 = vunpack.c.l.s4 1983009808
  %v431 = vunpack.c.0.s8 %v430
  %v432 = vlaneseq
  %v433 = vshrl.u32 %v432, 7
  %v434 = vsub.s32 %v431, %v433
  %v435 = vrot.slane %v428, %v434
  %v436 = vcombine.low %v410, %v411
  %v438 = vunpack.c.l.s4 1983009808
  %v439 = vunpack.c.0.s8 %v438
  %v440 = vlaneseq
  %v441 = vshrl.u32 %v440, 7
  %v442 = vsub.s32 %v439, %v441
  %v443 = vrot.slane %v436, %v442
  %v444 = vcombine.low %v419, %v427
  %v445 = vcombine.high %v419, %v427
  %v447 = vunpack.c.l.s4 1934713408
  %v448 = vunpack.c.0.s8 %v447
  %v449 = vlaneseq
  %v450 = vshrl.u32 %v449, 7
  %v451 = vsub.s32 %v448, %v450
  %v452 = vrot.slane %v444, %v451
  %v454 = vunpack.c.l.s4 1934713408
  %v455 = vunpack.c.0.s8 %v454
  %v456 = vlaneseq
  %v457 = vshrl.u32 %v456, 7
  %v458 = vsub.s32 %v455, %v457
  %v459 = vrot.slane %v445, %v458
  %v460 = vcombine.low %v435, %v443
  %v461 = vcombine.high %v435, %v443
  %v463 = vunpack.c.l.s4 1934713408
  %v464 = vunpack.c.0.s8 %v463
  %v465 = vlaneseq
  %v466 = vshrl.u32 %v465, 7
  %v467 = vsub.s32 %v464, %v466
  %v468 = vrot.slane %v460, %v467
  %v470 = vunpack.c.l.s4 1934713408
  %v471 = vunpack.c.0.s8 %v470
  %v472 = vlaneseq
  %v473 = vshrl.u32 %v472, 7
  %v474 = vsub.s32 %v471, %v473
  %v475 = vrot.slane %v461, %v474
  %v476 = vcombine.low %v452, %v468
  %v477 = vcombine.high %v452, %v468
  %v478 = vcombine.low %v459, %v475
  %v479 = vcombine.high %v459, %v475
  %v480 = vpack.c.bf16 %v476, %v476
  %v481 = vpack.c.bf16 %v477, %v477
  %v482 = vpack.c.bf16 %v478, %v478
  %v483 = vpack.c.bf16 %v479, %v479
  %484 = vrot.lane.b32.xlu0 %v171, 96
  %v485 = vpop.permute.xlu0 %484
  %486 = vrot.lane.b32.xlu0 %v336, 96
  %v487 = vpop.permute.xlu0 %486
  %488 = vrot.lane.b32.xlu0 %v339, 96
  %v489 = vpop.permute.xlu0 %488
  %490 = vrot.lane.b32.xlu0 %v342, 96
  %v491 = vpop.permute.xlu0 %490
  %v496 = vcombine.low %v485, %v489
  %v497 = vcombine.high %v485, %v489
  %v499 = vunpack.c.l.s4 1983009808
  %v500 = vunpack.c.0.s8 %v499
  %v501 = vlaneseq
  %v502 = vshrl.u32 %v501, 7
  %v503 = vsub.s32 %v500, %v502
  %v504 = vrot.slane %v496, %v503
  %v506 = vunpack.c.l.s4 1983009808
  %v507 = vunpack.c.0.s8 %v506
  %v508 = vlaneseq
  %v509 = vshrl.u32 %v508, 7
  %v510 = vsub.s32 %v507, %v509
  %v511 = vrot.slane %v497, %v510
  %v512 = vcombine.low %v487, %v491
  %v513 = vcombine.high %v487, %v491
  %v515 = vunpack.c.l.s4 1983009808
  %v516 = vunpack.c.0.s8 %v515
  %v517 = vlaneseq
  %v518 = vshrl.u32 %v517, 7
  %v519 = vsub.s32 %v516, %v518
  %v520 = vrot.slane %v512, %v519
  %v522 = vunpack.c.l.s4 1983009808
  %v523 = vunpack.c.0.s8 %v522
  %v524 = vlaneseq
  %v525 = vshrl.u32 %v524, 7
  %v526 = vsub.s32 %v523, %v525
  %v527 = vrot.slane %v513, %v526
  %v528 = vcombine.low %v504, %v520
  %v529 = vcombine.high %v504, %v520
  %v531 = vunpack.c.l.s4 1934713408
  %v532 = vunpack.c.0.s8 %v531
  %v533 = vlaneseq
  %v534 = vshrl.u32 %v533, 7
  %v535 = vsub.s32 %v532, %v534
  %v536 = vrot.slane %v528, %v535
  %v538 = vunpack.c.l.s4 1934713408
  %v539 = vunpack.c.0.s8 %v538
  %v540 = vlaneseq
  %v541 = vshrl.u32 %v540, 7
  %v542 = vsub.s32 %v539, %v541
  %v543 = vrot.slane %v529, %v542
  %v544 = vcombine.low %v511, %v527
  %v545 = vcombine.high %v511, %v527
  %v547 = vunpack.c.l.s4 1934713408
  %v548 = vunpack.c.0.s8 %v547
  %v549 = vlaneseq
  %v550 = vshrl.u32 %v549, 7
  %v551 = vsub.s32 %v548, %v550
  %v552 = vrot.slane %v544, %v551
  %v554 = vunpack.c.l.s4 1934713408
  %v555 = vunpack.c.0.s8 %v554
  %v556 = vlaneseq
  %v557 = vshrl.u32 %v556, 7
  %v558 = vsub.s32 %v555, %v557
  %v559 = vrot.slane %v545, %v558
  %v560 = vcombine.high %v536, 0.0
  %v561 = vcombine.high %v543, 0.0
  %v562 = vcombine.high %v552, 0.0
  %v563 = vcombine.high %v559, 0.0
  %v564 = vcombine.low %v536, %v543
  %v566 = vunpack.c.l.s4 1983009808
  %v567 = vunpack.c.0.s8 %v566
  %v568 = vlaneseq
  %v569 = vshrl.u32 %v568, 7
  %v570 = vsub.s32 %v567, %v569
  %v571 = vrot.slane %v564, %v570
  %v572 = vcombine.low %v560, %v561
  %v574 = vunpack.c.l.s4 1983009808
  %v575 = vunpack.c.0.s8 %v574
  %v576 = vlaneseq
  %v577 = vshrl.u32 %v576, 7
  %v578 = vsub.s32 %v575, %v577
  %v579 = vrot.slane %v572, %v578
  %v580 = vcombine.low %v552, %v559
  %v582 = vunpack.c.l.s4 1983009808
  %v583 = vunpack.c.0.s8 %v582
  %v584 = vlaneseq
  %v585 = vshrl.u32 %v584, 7
  %v586 = vsub.s32 %v583, %v585
  %v587 = vrot.slane %v580, %v586
  %v588 = vcombine.low %v562, %v563
  %v590 = vunpack.c.l.s4 1983009808
  %v591 = vunpack.c.0.s8 %v590
  %v592 = vlaneseq
  %v593 = vshrl.u32 %v592, 7
  %v594 = vsub.s32 %v591, %v593
  %v595 = vrot.slane %v588, %v594
  %v596 = vcombine.low %v571, %v579
  %v597 = vcombine.high %v571, %v579
  %v599 = vunpack.c.l.s4 1934713408
  %v600 = vunpack.c.0.s8 %v599
  %v601 = vlaneseq
  %v602 = vshrl.u32 %v601, 7
  %v603 = vsub.s32 %v600, %v602
  %v604 = vrot.slane %v596, %v603
  %v606 = vunpack.c.l.s4 1934713408
  %v607 = vunpack.c.0.s8 %v606
  %v608 = vlaneseq
  %v609 = vshrl.u32 %v608, 7
  %v610 = vsub.s32 %v607, %v609
  %v611 = vrot.slane %v597, %v610
  %v612 = vcombine.low %v587, %v595
  %v613 = vcombine.high %v587, %v595
  %v615 = vunpack.c.l.s4 1934713408
  %v616 = vunpack.c.0.s8 %v615
  %v617 = vlaneseq
  %v618 = vshrl.u32 %v617, 7
  %v619 = vsub.s32 %v616, %v618
  %v620 = vrot.slane %v612, %v619
  %v622 = vunpack.c.l.s4 1934713408
  %v623 = vunpack.c.0.s8 %v622
  %v624 = vlaneseq
  %v625 = vshrl.u32 %v624, 7
  %v626 = vsub.s32 %v623, %v625
  %v627 = vrot.slane %v613, %v626
  %v628 = vcombine.low %v604, %v620
  %v629 = vcombine.high %v604, %v620
  %v630 = vcombine.low %v611, %v627
  %v631 = vcombine.high %v611, %v627
  %v632 = vpack.c.bf16 %v628, %v628
  %v633 = vpack.c.bf16 %v629, %v629
  %v634 = vpack.c.bf16 %v630, %v630
  %v635 = vpack.c.bf16 %v631, %v631
  %vm636 = vcmask 64512
  %v638 = vsel %vm636, %v330, 0
  %v641 = vsel %vm636, %v480, 0
  %643 = vmatprep.subr.bf16.mxu0 0
  %644 = vmatpush1.bf16.xpose.msra.mxu0 %v641
  %645 = vmatprep.subr.bf16.mxu0 0
  %646 = vmatpush1.bf16.xpose.msra.mxu0 0
  %647 = vmatprep.subr.bf16.mxu0 0
  %648 = vmatpush1.bf16.xpose.msra.mxu0 0
  %649 = vmatprep.subr.bf16.mxu0 0
  %650 = vmatpush1.bf16.xpose.msra.mxu0 0
  %651 = vmatprep.subr.bf16.mxu0 0
  %652 = vmatpush1.bf16.xpose.msra.mxu0 0
  %653 = vmatprep.subr.bf16.mxu0 0
  %654 = vmatpush1.bf16.xpose.msra.mxu0 0
  %655 = vmatprep.subr.bf16.mxu0 0
  %656 = vmatpush1.bf16.xpose.msra.mxu0 0
  %657 = vmatprep.subr.bf16.mxu0 0
  %658 = vmatpush1.bf16.xpose.msra.mxu0 0
  %659 = vmatprep.subr.bf16.mxu0 0
  %660 = vmatpush1.bf16.xpose.msra.mxu0 0
  %661 = vmatprep.subr.bf16.mxu0 0
  %662 = vmatpush1.bf16.xpose.msra.mxu0 0
  %663 = vmatprep.subr.bf16.mxu0 0
  %664 = vmatpush1.bf16.xpose.msra.mxu0 0
  %665 = vmatprep.subr.bf16.mxu0 0
  %666 = vmatpush1.bf16.xpose.msra.mxu0 0
  %667 = vmatprep.subr.bf16.mxu0 0
  %668 = vmatpush1.bf16.xpose.msra.mxu0 0
  %669 = vmatprep.subr.bf16.mxu0 0
  %670 = vmatpush1.bf16.xpose.msra.mxu0 0
  %671 = vmatprep.subr.bf16.mxu0 0
  %672 = vmatpush1.bf16.xpose.msra.mxu0 0
  %673 = vmatprep.subr.bf16.mxu0 0
  %674 = vmatpush1.bf16.xpose.msra.mxu0 0
  %675 = vmatprep.mubr.bf16.mxu0 0
  %676 = vmatmul.mubr.bf16.gmra.mrb[0].mxu0 %v638
  %v677 = vpop.f32.mrb[0].mxu0
  %v678 = vadd.f32 0.0, %v677
  %v679 = vpop.f32.mrb[0].mxu0
  %v680 = vpop.f32.mrb[0].mxu0
  %v681 = vpop.f32.mrb[0].mxu0
  %682 = vdwg.mxu0
  %v684 = vsel %vm636, %v331, 0
  %v687 = vsel %vm636, %v481, 0
  %689 = vmatprep.subr.bf16.mxu0 0
  %690 = vmatpush1.bf16.xpose.msra.mxu0 %v687
  %691 = vmatprep.subr.bf16.mxu0 0
  %692 = vmatpush1.bf16.xpose.msra.mxu0 0
  %693 = vmatprep.subr.bf16.mxu0 0
  %694 = vmatpush1.bf16.xpose.msra.mxu0 0
  %695 = vmatprep.subr.bf16.mxu0 0
  %696 = vmatpush1.bf16.xpose.msra.mxu0 0
  %697 = vmatprep.subr.bf16.mxu0 0
  %698 = vmatpush1.bf16.xpose.msra.mxu0 0
  %699 = vmatprep.subr.bf16.mxu0 0
  %700 = vmatpush1.bf16.xpose.msra.mxu0 0
  %701 = vmatprep.subr.bf16.mxu0 0
  %702 = vmatpush1.bf16.xpose.msra.mxu0 0
  %703 = vmatprep.subr.bf16.mxu0 0
  %704 = vmatpush1.bf16.xpose.msra.mxu0 0
  %705 = vmatprep.subr.bf16.mxu0 0
  %706 = vmatpush1.bf16.xpose.msra.mxu0 0
  %707 = vmatprep.subr.bf16.mxu0 0
  %708 = vmatpush1.bf16.xpose.msra.mxu0 0
  %709 = vmatprep.subr.bf16.mxu0 0
  %710 = vmatpush1.bf16.xpose.msra.mxu0 0
  %711 = vmatprep.subr.bf16.mxu0 0
  %712 = vmatpush1.bf16.xpose.msra.mxu0 0
  %713 = vmatprep.subr.bf16.mxu0 0
  %714 = vmatpush1.bf16.xpose.msra.mxu0 0
  %715 = vmatprep.subr.bf16.mxu0 0
  %716 = vmatpush1.bf16.xpose.msra.mxu0 0
  %717 = vmatprep.subr.bf16.mxu0 0
  %718 = vmatpush1.bf16.xpose.msra.mxu0 0
  %719 = vmatprep.subr.bf16.mxu0 0
  %720 = vmatpush1.bf16.xpose.msra.mxu0 0
  %721 = vmatprep.mubr.bf16.mxu0 0
  %722 = vmatmul.mubr.bf16.gmra.mrb[0].mxu0 %v684
  %v723 = vpop.f32.mrb[0].mxu0
  %v724 = vadd.f32 0.0, %v723
  %v725 = vpop.f32.mrb[0].mxu0
  %v726 = vpop.f32.mrb[0].mxu0
  %v727 = vpop.f32.mrb[0].mxu0
  %728 = vdwg.mxu0
  %v730 = vsel %vm636, %v332, 0
  %v733 = vsel %vm636, %v482, 0
  %735 = vmatprep.subr.bf16.mxu0 0
  %736 = vmatpush1.bf16.xpose.msra.mxu0 %v733
  %737 = vmatprep.subr.bf16.mxu0 0
  %738 = vmatpush1.bf16.xpose.msra.mxu0 0
  %739 = vmatprep.subr.bf16.mxu0 0
  %740 = vmatpush1.bf16.xpose.msra.mxu0 0
  %741 = vmatprep.subr.bf16.mxu0 0
  %742 = vmatpush1.bf16.xpose.msra.mxu0 0
  %743 = vmatprep.subr.bf16.mxu0 0
  %744 = vmatpush1.bf16.xpose.msra.mxu0 0
  %745 = vmatprep.subr.bf16.mxu0 0
  %746 = vmatpush1.bf16.xpose.msra.mxu0 0
  %747 = vmatprep.subr.bf16.mxu0 0
  %748 = vmatpush1.bf16.xpose.msra.mxu0 0
  %749 = vmatprep.subr.bf16.mxu0 0
  %750 = vmatpush1.bf16.xpose.msra.mxu0 0
  %751 = vmatprep.subr.bf16.mxu0 0
  %752 = vmatpush1.bf16.xpose.msra.mxu0 0
  %753 = vmatprep.subr.bf16.mxu0 0
  %754 = vmatpush1.bf16.xpose.msra.mxu0 0
  %755 = vmatprep.subr.bf16.mxu0 0
  %756 = vmatpush1.bf16.xpose.msra.mxu0 0
  %757 = vmatprep.subr.bf16.mxu0 0
  %758 = vmatpush1.bf16.xpose.msra.mxu0 0
  %759 = vmatprep.subr.bf16.mxu0 0
  %760 = vmatpush1.bf16.xpose.msra.mxu0 0
  %761 = vmatprep.subr.bf16.mxu0 0
  %762 = vmatpush1.bf16.xpose.msra.mxu0 0
  %763 = vmatprep.subr.bf16.mxu0 0
  %764 = vmatpush1.bf16.xpose.msra.mxu0 0
  %765 = vmatprep.subr.bf16.mxu0 0
  %766 = vmatpush1.bf16.xpose.msra.mxu0 0
  %767 = vmatprep.mubr.bf16.mxu0 0
  %768 = vmatmul.mubr.bf16.gmra.mrb[0].mxu0 %v730
  %v769 = vpop.f32.mrb[0].mxu0
  %v770 = vadd.f32 0.0, %v769
  %v771 = vpop.f32.mrb[0].mxu0
  %v772 = vpop.f32.mrb[0].mxu0
  %v773 = vpop.f32.mrb[0].mxu0
  %774 = vdwg.mxu0
  %v776 = vsel %vm636, %v333, 0
  %v779 = vsel %vm636, %v483, 0
  %781 = vmatprep.subr.bf16.mxu0 0
  %782 = vmatpush1.bf16.xpose.msra.mxu0 %v779
  %783 = vmatprep.subr.bf16.mxu0 0
  %784 = vmatpush1.bf16.xpose.msra.mxu0 0
  %785 = vmatprep.subr.bf16.mxu0 0
  %786 = vmatpush1.bf16.xpose.msra.mxu0 0
  %787 = vmatprep.subr.bf16.mxu0 0
  %788 = vmatpush1.bf16.xpose.msra.mxu0 0
  %789 = vmatprep.subr.bf16.mxu0 0
  %790 = vmatpush1.bf16.xpose.msra.mxu0 0
  %791 = vmatprep.subr.bf16.mxu0 0
  %792 = vmatpush1.bf16.xpose.msra.mxu0 0
  %793 = vmatprep.subr.bf16.mxu0 0
  %794 = vmatpush1.bf16.xpose.msra.mxu0 0
  %795 = vmatprep.subr.bf16.mxu0 0
  %796 = vmatpush1.bf16.xpose.msra.mxu0 0
  %797 = vmatprep.subr.bf16.mxu0 0
  %798 = vmatpush1.bf16.xpose.msra.mxu0 0
  %799 = vmatprep.subr.bf16.mxu0 0
  %800 = vmatpush1.bf16.xpose.msra.mxu0 0
  %801 = vmatprep.subr.bf16.mxu0 0
  %802 = vmatpush1.bf16.xpose.msra.mxu0 0
  %803 = vmatprep.subr.bf16.mxu0 0
  %804 = vmatpush1.bf16.xpose.msra.mxu0 0
  %805 = vmatprep.subr.bf16.mxu0 0
  %806 = vmatpush1.bf16.xpose.msra.mxu0 0
  %807 = vmatprep.subr.bf16.mxu0 0
  %808 = vmatpush1.bf16.xpose.msra.mxu0 0
  %809 = vmatprep.subr.bf16.mxu0 0
  %810 = vmatpush1.bf16.xpose.msra.mxu0 0
  %811 = vmatprep.subr.bf16.mxu0 0
  %812 = vmatpush1.bf16.xpose.msra.mxu0 0
  %813 = vmatprep.mubr.bf16.mxu0 0
  %814 = vmatmul.mubr.bf16.gmra.mrb[0].mxu0 %v776
  %v815 = vpop.f32.mrb[0].mxu0
  %v816 = vadd.f32 0.0, %v815
  %v817 = vpop.f32.mrb[0].mxu0
  %v818 = vpop.f32.mrb[0].mxu0
  %v819 = vpop.f32.mrb[0].mxu0
  %820 = vdwg.mxu0
  %v821 = vsel %vm636, %v678, -inf
  %822 = vmax.xlane.f32.xlu0 %v821
  %v823 = vpop.xlane.xlu0 %822
  %v824 = vsel %vm636, %v724, -inf
  %825 = vmax.xlane.f32.xlu0 %v824
  %v826 = vpop.xlane.xlu0 %825
  %v827 = vsel %vm636, %v770, -inf
  %828 = vmax.xlane.f32.xlu0 %v827
  %v829 = vpop.xlane.xlu0 %828
  %v830 = vsel %vm636, %v816, -inf
  %831 = vmax.xlane.f32.xlu0 %v830
  %v832 = vpop.xlane.xlu0 %831
  %v833 = vsub.f32 %v678, %v823
  %v834 = vsub.f32 %v724, %v826
  %v835 = vsub.f32 %v770, %v829
  %v836 = vsub.f32 %v816, %v832
  %v837 = vmul.f32 %v833, 1.442695
  %v838 = vpow.pop %v837
  %v839 = vmul.f32 %v834, 1.442695
  %v840 = vpow.pop %v839
  %v841 = vmul.f32 %v835, 1.442695
  %v842 = vpow.pop %v841
  %v843 = vmul.f32 %v836, 1.442695
  %v844 = vpow.pop %v843
  %v845 = vsel %vm636, %v838, 0.0
  %846 = vadd.xlane.f32.xlu0 %v845
  %v847 = vpop.xlane.xlu0 %846
  %v848 = vsel %vm636, %v840, 0.0
  %849 = vadd.xlane.f32.xlu0 %v848
  %v850 = vpop.xlane.xlu0 %849
  %v851 = vsel %vm636, %v842, 0.0
  %852 = vadd.xlane.f32.xlu0 %v851
  %v853 = vpop.xlane.xlu0 %852
  %v854 = vsel %vm636, %v844, 0.0
  %855 = vadd.xlane.f32.xlu0 %v854
  %v856 = vpop.xlane.xlu0 %855
  %v857 = vrcp.pop %v847
  %v858 = vrcp.pop %v850
  %v859 = vrcp.pop %v853
  %v860 = vrcp.pop %v856
  %v861 = vmul.f32 %v838, %v857
  %v862 = vmul.f32 %v840, %v858
  %v863 = vmul.f32 %v842, %v859
  %v864 = vmul.f32 %v844, %v860
  %v865 = vpack.c.bf16 %v861, %v861
  %v866 = vpack.c.bf16 %v862, %v862
  %v867 = vpack.c.bf16 %v863, %v863
  %v868 = vpack.c.bf16 %v864, %v864
  %v870 = vsel %vm636, %v865, 0
  %vm872 = vcmask 1043456
  %v874 = vsel %vm872, %v632, 0
  %876 = vmatprep.subr.bf16.mxu0 0
  %877 = vmatpush1.bf16.msra.mxu0 %v874
  %878 = vmatprep.subr.bf16.mxu0 0
  %879 = vmatpush1.bf16.msra.mxu0 0
  %880 = vmatprep.subr.bf16.mxu0 0
  %881 = vmatpush1.bf16.msra.mxu0 0
  %882 = vmatprep.subr.bf16.mxu0 0
  %883 = vmatpush1.bf16.msra.mxu0 0
  %884 = vmatprep.subr.bf16.mxu0 0
  %885 = vmatpush1.bf16.msra.mxu0 0
  %886 = vmatprep.subr.bf16.mxu0 0
  %887 = vmatpush1.bf16.msra.mxu0 0
  %888 = vmatprep.subr.bf16.mxu0 0
  %889 = vmatpush1.bf16.msra.mxu0 0
  %890 = vmatprep.subr.bf16.mxu0 0
  %891 = vmatpush1.bf16.msra.mxu0 0
  %892 = vmatprep.subr.bf16.mxu0 0
  %893 = vmatpush1.bf16.msra.mxu0 0
  %894 = vmatprep.subr.bf16.mxu0 0
  %895 = vmatpush1.bf16.msra.mxu0 0
  %896 = vmatprep.subr.bf16.mxu0 0
  %897 = vmatpush1.bf16.msra.mxu0 0
  %898 = vmatprep.subr.bf16.mxu0 0
  %899 = vmatpush1.bf16.msra.mxu0 0
  %900 = vmatprep.subr.bf16.mxu0 0
  %901 = vmatpush1.bf16.msra.mxu0 0
  %902 = vmatprep.subr.bf16.mxu0 0
  %903 = vmatpush1.bf16.msra.mxu0 0
  %904 = vmatprep.subr.bf16.mxu0 0
  %905 = vmatpush1.bf16.msra.mxu0 0
  %906 = vmatprep.subr.bf16.mxu0 0
  %907 = vmatpush1.bf16.msra.mxu0 0
  %908 = vmatprep.mubr.bf16.mxu0 0
  %909 = vmatmul.mubr.bf16.gmra.mrb[0].mxu0 %v870
  %v910 = vpop.f32.mrb[0].mxu0
  %v911 = vadd.f32 0.0, %v910
  %v912 = vpop.f32.mrb[0].mxu0
  %v913 = vpop.f32.mrb[0].mxu0
  %v914 = vpop.f32.mrb[0].mxu0
  %915 = vdwg.mxu0
  %v917 = vsel %vm636, %v866, 0
  %v920 = vsel %vm872, %v633, 0
  %922 = vmatprep.subr.bf16.mxu0 0
  %923 = vmatpush1.bf16.msra.mxu0 %v920
  %924 = vmatprep.subr.bf16.mxu0 0
  %925 = vmatpush1.bf16.msra.mxu0 0
  %926 = vmatprep.subr.bf16.mxu0 0
  %927 = vmatpush1.bf16.msra.mxu0 0
  %928 = vmatprep.subr.bf16.mxu0 0
  %929 = vmatpush1.bf16.msra.mxu0 0
  %930 = vmatprep.subr.bf16.mxu0 0
  %931 = vmatpush1.bf16.msra.mxu0 0
  %932 = vmatprep.subr.bf16.mxu0 0
  %933 = vmatpush1.bf16.msra.mxu0 0
  %934 = vmatprep.subr.bf16.mxu0 0
  %935 = vmatpush1.bf16.msra.mxu0 0
  %936 = vmatprep.subr.bf16.mxu0 0
  %937 = vmatpush1.bf16.msra.mxu0 0
  %938 = vmatprep.subr.bf16.mxu0 0
  %939 = vmatpush1.bf16.msra.mxu0 0
  %940 = vmatprep.subr.bf16.mxu0 0
  %941 = vmatpush1.bf16.msra.mxu0 0
  %942 = vmatprep.subr.bf16.mxu0 0
  %943 = vmatpush1.bf16.msra.mxu0 0
  %944 = vmatprep.subr.bf16.mxu0 0
  %945 = vmatpush1.bf16.msra.mxu0 0
  %946 = vmatprep.subr.bf16.mxu0 0
  %947 = vmatpush1.bf16.msra.mxu0 0
  %948 = vmatprep.subr.bf16.mxu0 0
  %949 = vmatpush1.bf16.msra.mxu0 0
  %950 = vmatprep.subr.bf16.mxu0 0
  %951 = vmatpush1.bf16.msra.mxu0 0
  %952 = vmatprep.subr.bf16.mxu0 0
  %953 = vmatpush1.bf16.msra.mxu0 0
  %954 = vmatprep.mubr.bf16.mxu0 0
  %955 = vmatmul.mubr.bf16.gmra.mrb[0].mxu0 %v917
  %v956 = vpop.f32.mrb[0].mxu0
  %v957 = vadd.f32 0.0, %v956
  %v958 = vpop.f32.mrb[0].mxu0
  %v959 = vpop.f32.mrb[0].mxu0
  %v960 = vpop.f32.mrb[0].mxu0
  %961 = vdwg.mxu0
  %v963 = vsel %vm636, %v867, 0
  %v966 = vsel %vm872, %v634, 0
  %968 = vmatprep.subr.bf16.mxu0 0
  %969 = vmatpush1.bf16.msra.mxu0 %v966
  %970 = vmatprep.subr.bf16.mxu0 0
  %971 = vmatpush1.bf16.msra.mxu0 0
  %972 = vmatprep.subr.bf16.mxu0 0
  %973 = vmatpush1.bf16.msra.mxu0 0
  %974 = vmatprep.subr.bf16.mxu0 0
  %975 = vmatpush1.bf16.msra.mxu0 0
  %976 = vmatprep.subr.bf16.mxu0 0
  %977 = vmatpush1.bf16.msra.mxu0 0
  %978 = vmatprep.subr.bf16.mxu0 0
  %979 = vmatpush1.bf16.msra.mxu0 0
  %980 = vmatprep.subr.bf16.mxu0 0
  %981 = vmatpush1.bf16.msra.mxu0 0
  %982 = vmatprep.subr.bf16.mxu0 0
  %983 = vmatpush1.bf16.msra.mxu0 0
  %984 = vmatprep.subr.bf16.mxu0 0
  %985 = vmatpush1.bf16.msra.mxu0 0
  %986 = vmatprep.subr.bf16.mxu0 0
  %987 = vmatpush1.bf16.msra.mxu0 0
  %988 = vmatprep.subr.bf16.mxu0 0
  %989 = vmatpush1.bf16.msra.mxu0 0
  %990 = vmatprep.subr.bf16.mxu0 0
  %991 = vmatpush1.bf16.msra.mxu0 0
  %992 = vmatprep.subr.bf16.mxu0 0
  %993 = vmatpush1.bf16.msra.mxu0 0
  %994 = vmatprep.subr.bf16.mxu0 0
  %995 = vmatpush1.bf16.msra.mxu0 0
  %996 = vmatprep.subr.bf16.mxu0 0
  %997 = vmatpush1.bf16.msra.mxu0 0
  %998 = vmatprep.subr.bf16.mxu0 0
  %999 = vmatpush1.bf16.msra.mxu0 0
  %1000 = vmatprep.mubr.bf16.mxu0 0
  %1001 = vmatmul.mubr.bf16.gmra.mrb[0].mxu0 %v963
  %v1002 = vpop.f32.mrb[0].mxu0
  %v1003 = vadd.f32 0.0, %v1002
  %v1004 = vpop.f32.mrb[0].mxu0
  %v1005 = vpop.f32.mrb[0].mxu0
  %v1006 = vpop.f32.mrb[0].mxu0
  %1007 = vdwg.mxu0
  %v1009 = vsel %vm636, %v868, 0
  %v1012 = vsel %vm872, %v635, 0
  %1014 = vmatprep.subr.bf16.mxu0 0
  %1015 = vmatpush1.bf16.msra.mxu0 %v1012
  %1016 = vmatprep.subr.bf16.mxu0 0
  %1017 = vmatpush1.bf16.msra.mxu0 0
  %1018 = vmatprep.subr.bf16.mxu0 0
  %1019 = vmatpush1.bf16.msra.mxu0 0
  %1020 = vmatprep.subr.bf16.mxu0 0
  %1021 = vmatpush1.bf16.msra.mxu0 0
  %1022 = vmatprep.subr.bf16.mxu0 0
  %1023 = vmatpush1.bf16.msra.mxu0 0
  %1024 = vmatprep.subr.bf16.mxu0 0
  %1025 = vmatpush1.bf16.msra.mxu0 0
  %1026 = vmatprep.subr.bf16.mxu0 0
  %1027 = vmatpush1.bf16.msra.mxu0 0
  %1028 = vmatprep.subr.bf16.mxu0 0
  %1029 = vmatpush1.bf16.msra.mxu0 0
  %1030 = vmatprep.subr.bf16.mxu0 0
  %1031 = vmatpush1.bf16.msra.mxu0 0
  %1032 = vmatprep.subr.bf16.mxu0 0
  %1033 = vmatpush1.bf16.msra.mxu0 0
  %1034 = vmatprep.subr.bf16.mxu0 0
  %1035 = vmatpush1.bf16.msra.mxu0 0
  %1036 = vmatprep.subr.bf16.mxu0 0
  %1037 = vmatpush1.bf16.msra.mxu0 0
  %1038 = vmatprep.subr.bf16.mxu0 0
  %1039 = vmatpush1.bf16.msra.mxu0 0
  %1040 = vmatprep.subr.bf16.mxu0 0
  %1041 = vmatpush1.bf16.msra.mxu0 0
  %1042 = vmatprep.subr.bf16.mxu0 0
  %1043 = vmatpush1.bf16.msra.mxu0 0
  %1044 = vmatprep.subr.bf16.mxu0 0
  %1045 = vmatpush1.bf16.msra.mxu0 0
  %1046 = vmatprep.mubr.bf16.mxu0 0
  %1047 = vmatmul.mubr.bf16.gmra.mrb[0].mxu0 %v1009
  %v1048 = vpop.f32.mrb[0].mxu0
  %v1049 = vadd.f32 0.0, %v1048
  %v1050 = vpop.f32.mrb[0].mxu0
  %v1051 = vpop.f32.mrb[0].mxu0
  %v1052 = vpop.f32.mrb[0].mxu0
  %1053 = vdwg.mxu0
  %v1054 = vcombine.low %v911, %v1003
  %v1055 = vcombine.high %v911, %v1003
  %v1057 = vunpack.c.l.s4 1983009808
  %v1058 = vunpack.c.0.s8 %v1057
  %v1059 = vlaneseq
  %v1060 = vshrl.u32 %v1059, 7
  %v1061 = vsub.s32 %v1058, %v1060
  %v1062 = vrot.slane %v1054, %v1061
  %v1064 = vunpack.c.l.s4 1983009808
  %v1065 = vunpack.c.0.s8 %v1064
  %v1066 = vlaneseq
  %v1067 = vshrl.u32 %v1066, 7
  %v1068 = vsub.s32 %v1065, %v1067
  %v1069 = vrot.slane %v1055, %v1068
  %v1070 = vcombine.low %v957, %v1049
  %v1071 = vcombine.high %v957, %v1049
  %v1073 = vunpack.c.l.s4 1983009808
  %v1074 = vunpack.c.0.s8 %v1073
  %v1075 = vlaneseq
  %v1076 = vshrl.u32 %v1075, 7
  %v1077 = vsub.s32 %v1074, %v1076
  %v1078 = vrot.slane %v1070, %v1077
  %v1080 = vunpack.c.l.s4 1983009808
  %v1081 = vunpack.c.0.s8 %v1080
  %v1082 = vlaneseq
  %v1083 = vshrl.u32 %v1082, 7
  %v1084 = vsub.s32 %v1081, %v1083
  %v1085 = vrot.slane %v1071, %v1084
  %v1086 = vcombine.low %v1062, %v1078
  %v1087 = vcombine.high %v1062, %v1078
  %v1089 = vunpack.c.l.s4 1934713408
  %v1090 = vunpack.c.0.s8 %v1089
  %v1091 = vlaneseq
  %v1092 = vshrl.u32 %v1091, 7
  %v1093 = vsub.s32 %v1090, %v1092
  %v1094 = vrot.slane %v1086, %v1093
  %v1096 = vunpack.c.l.s4 1934713408
  %v1097 = vunpack.c.0.s8 %v1096
  %v1098 = vlaneseq
  %v1099 = vshrl.u32 %v1098, 7
  %v1100 = vsub.s32 %v1097, %v1099
  %v1101 = vrot.slane %v1087, %v1100
  %v1102 = vcombine.low %v1069, %v1085
  %v1103 = vcombine.high %v1069, %v1085
  %v1105 = vunpack.c.l.s4 1934713408
  %v1106 = vunpack.c.0.s8 %v1105
  %v1107 = vlaneseq
  %v1108 = vshrl.u32 %v1107, 7
  %v1109 = vsub.s32 %v1106, %v1108
  %v1110 = vrot.slane %v1102, %v1109
  %v1112 = vunpack.c.l.s4 1934713408
  %v1113 = vunpack.c.0.s8 %v1112
  %v1114 = vlaneseq
  %v1115 = vshrl.u32 %v1114, 7
  %v1116 = vsub.s32 %v1113, %v1115
  %v1117 = vrot.slane %v1103, %v1116
  %v1118 = vcombine.high %v1094, 0.0
  %v1119 = vcombine.high %v1101, 0.0
  %v1120 = vcombine.high %v1110, 0.0
  %v1121 = vcombine.high %v1117, 0.0
  %v1122 = vcombine.low %v1094, %v1101
  %v1124 = vunpack.c.l.s4 1983009808
  %v1125 = vunpack.c.0.s8 %v1124
  %v1126 = vlaneseq
  %v1127 = vshrl.u32 %v1126, 7
  %v1128 = vsub.s32 %v1125, %v1127
  %v1129 = vrot.slane %v1122, %v1128
  %v1130 = vcombine.low %v1118, %v1119
  %v1132 = vunpack.c.l.s4 1983009808
  %v1133 = vunpack.c.0.s8 %v1132
  %v1134 = vlaneseq
  %v1135 = vshrl.u32 %v1134, 7
  %v1136 = vsub.s32 %v1133, %v1135
  %v1137 = vrot.slane %v1130, %v1136
  %v1138 = vcombine.low %v1110, %v1117
  %v1140 = vunpack.c.l.s4 1983009808
  %v1141 = vunpack.c.0.s8 %v1140
  %v1142 = vlaneseq
  %v1143 = vshrl.u32 %v1142, 7
  %v1144 = vsub.s32 %v1141, %v1143
  %v1145 = vrot.slane %v1138, %v1144
  %v1146 = vcombine.low %v1120, %v1121
  %v1148 = vunpack.c.l.s4 1983009808
  %v1149 = vunpack.c.0.s8 %v1148
  %v1150 = vlaneseq
  %v1151 = vshrl.u32 %v1150, 7
  %v1152 = vsub.s32 %v1149, %v1151
  %v1153 = vrot.slane %v1146, %v1152
  %v1154 = vcombine.low %v1129, %v1137
  %v1155 = vcombine.high %v1129, %v1137
  %v1157 = vunpack.c.l.s4 1934713408
  %v1158 = vunpack.c.0.s8 %v1157
  %v1159 = vlaneseq
  %v1160 = vshrl.u32 %v1159, 7
  %v1161 = vsub.s32 %v1158, %v1160
  %v1162 = vrot.slane %v1154, %v1161
  %v1164 = vunpack.c.l.s4 1934713408
  %v1165 = vunpack.c.0.s8 %v1164
  %v1166 = vlaneseq
  %v1167 = vshrl.u32 %v1166, 7
  %v1168 = vsub.s32 %v1165, %v1167
  %v1169 = vrot.slane %v1155, %v1168
  %v1170 = vcombine.low %v1145, %v1153
  %v1171 = vcombine.high %v1145, %v1153
  %v1173 = vunpack.c.l.s4 1934713408
  %v1174 = vunpack.c.0.s8 %v1173
  %v1175 = vlaneseq
  %v1176 = vshrl.u32 %v1175, 7
  %v1177 = vsub.s32 %v1174, %v1176
  %v1178 = vrot.slane %v1170, %v1177
  %v1180 = vunpack.c.l.s4 1934713408
  %v1181 = vunpack.c.0.s8 %v1180
  %v1182 = vlaneseq
  %v1183 = vshrl.u32 %v1182, 7
  %v1184 = vsub.s32 %v1181, %v1183
  %v1185 = vrot.slane %v1171, %v1184
  %v1186 = vcombine.low %v1162, %v1178
  %v1187 = vcombine.high %v1162, %v1178
  %v1188 = vcombine.low %v1169, %v1185
  %v1189 = vcombine.high %v1169, %v1185
  %1191 = vrot.lane.b32.xlu0 %v1187, 8
  %v1192 = vpop.permute.xlu0 %1191
  %1195 = vrot.lane.b32.xlu0 %v1188, 16
  %v1196 = vpop.permute.xlu0 %1195
  %1199 = vrot.lane.b32.xlu0 %v1189, 24
  %v1200 = vpop.permute.xlu0 %1199
  %v1202 = vsel %vm636, %v1186, %v1192
  %vm1203 = vcmask 130048
  %v1204 = vsel %vm1203, %v1202, %v1196
  %vm1205 = vcmask 195584
  %v1206 = vsel %vm1205, %v1204, %v1200
  %1208 = vrot.lane.b32.xlu0 %v106, 120
  %v1209 = vpop.permute.xlu0 %1208
  %1211 = vrot.lane.b32.xlu0 %v106, 112
  %v1212 = vpop.permute.xlu0 %1211
  %1214 = vrot.lane.b32.xlu0 %v106, 104
  %v1215 = vpop.permute.xlu0 %1214
  %v1217 = vcombine.low %v106, %v1212
  %v1218 = vcombine.high %v106, %v1212
  %v1220 = vunpack.c.l.s4 1983009808
  %v1221 = vunpack.c.0.s8 %v1220
  %v1222 = vlaneseq
  %v1223 = vshrl.u32 %v1222, 7
  %v1224 = vsub.s32 %v1221, %v1223
  %v1225 = vrot.slane %v1217, %v1224
  %v1227 = vunpack.c.l.s4 1983009808
  %v1228 = vunpack.c.0.s8 %v1227
  %v1229 = vlaneseq
  %v1230 = vshrl.u32 %v1229, 7
  %v1231 = vsub.s32 %v1228, %v1230
  %v1232 = vrot.slane %v1218, %v1231
  %v1233 = vcombine.low %v1209, %v1215
  %v1234 = vcombine.high %v1209, %v1215
  %v1236 = vunpack.c.l.s4 1983009808
  %v1237 = vunpack.c.0.s8 %v1236
  %v1238 = vlaneseq
  %v1239 = vshrl.u32 %v1238, 7
  %v1240 = vsub.s32 %v1237, %v1239
  %v1241 = vrot.slane %v1233, %v1240
  %v1243 = vunpack.c.l.s4 1983009808
  %v1244 = vunpack.c.0.s8 %v1243
  %v1245 = vlaneseq
  %v1246 = vshrl.u32 %v1245, 7
  %v1247 = vsub.s32 %v1244, %v1246
  %v1248 = vrot.slane %v1234, %v1247
  %v1249 = vcombine.low %v1225, %v1241
  %v1250 = vcombine.high %v1225, %v1241
  %v1252 = vunpack.c.l.s4 1934713408
  %v1253 = vunpack.c.0.s8 %v1252
  %v1254 = vlaneseq
  %v1255 = vshrl.u32 %v1254, 7
  %v1256 = vsub.s32 %v1253, %v1255
  %v1257 = vrot.slane %v1249, %v1256
  %v1259 = vunpack.c.l.s4 1934713408
  %v1260 = vunpack.c.0.s8 %v1259
  %v1261 = vlaneseq
  %v1262 = vshrl.u32 %v1261, 7
  %v1263 = vsub.s32 %v1260, %v1262
  %v1264 = vrot.slane %v1250, %v1263
  %v1265 = vcombine.low %v1232, %v1248
  %v1266 = vcombine.high %v1232, %v1248
  %v1268 = vunpack.c.l.s4 1934713408
  %v1269 = vunpack.c.0.s8 %v1268
  %v1270 = vlaneseq
  %v1271 = vshrl.u32 %v1270, 7
  %v1272 = vsub.s32 %v1269, %v1271
  %v1273 = vrot.slane %v1265, %v1272
  %v1275 = vunpack.c.l.s4 1934713408
  %v1276 = vunpack.c.0.s8 %v1275
  %v1277 = vlaneseq
  %v1278 = vshrl.u32 %v1277, 7
  %v1279 = vsub.s32 %v1276, %v1278
  %v1280 = vrot.slane %v1266, %v1279
  %v1281 = vcombine.high %v1257, 0.0
  %v1282 = vcombine.high %v1264, 0.0
  %v1283 = vcombine.high %v1273, 0.0
  %v1284 = vcombine.high %v1280, 0.0
  %v1285 = vcombine.low %v1257, %v1264
  %v1287 = vunpack.c.l.s4 1983009808
  %v1288 = vunpack.c.0.s8 %v1287
  %v1289 = vlaneseq
  %v1290 = vshrl.u32 %v1289, 7
  %v1291 = vsub.s32 %v1288, %v1290
  %v1292 = vrot.slane %v1285, %v1291
  %v1293 = vcombine.low %v1281, %v1282
  %v1295 = vunpack.c.l.s4 1983009808
  %v1296 = vunpack.c.0.s8 %v1295
  %v1297 = vlaneseq
  %v1298 = vshrl.u32 %v1297, 7
  %v1299 = vsub.s32 %v1296, %v1298
  %v1300 = vrot.slane %v1293, %v1299
  %v1301 = vcombine.low %v1273, %v1280
  %v1303 = vunpack.c.l.s4 1983009808
  %v1304 = vunpack.c.0.s8 %v1303
  %v1305 = vlaneseq
  %v1306 = vshrl.u32 %v1305, 7
  %v1307 = vsub.s32 %v1304, %v1306
  %v1308 = vrot.slane %v1301, %v1307
  %v1309 = vcombine.low %v1283, %v1284
  %v1311 = vunpack.c.l.s4 1983009808
  %v1312 = vunpack.c.0.s8 %v1311
  %v1313 = vlaneseq
  %v1314 = vshrl.u32 %v1313, 7
  %v1315 = vsub.s32 %v1312, %v1314
  %v1316 = vrot.slane %v1309, %v1315
  %v1317 = vcombine.low %v1292, %v1300
  %v1318 = vcombine.high %v1292, %v1300
  %v1320 = vunpack.c.l.s4 1934713408
  %v1321 = vunpack.c.0.s8 %v1320
  %v1322 = vlaneseq
  %v1323 = vshrl.u32 %v1322, 7
  %v1324 = vsub.s32 %v1321, %v1323
  %v1325 = vrot.slane %v1317, %v1324
  %v1327 = vunpack.c.l.s4 1934713408
  %v1328 = vunpack.c.0.s8 %v1327
  %v1329 = vlaneseq
  %v1330 = vshrl.u32 %v1329, 7
  %v1331 = vsub.s32 %v1328, %v1330
  %v1332 = vrot.slane %v1318, %v1331
  %v1333 = vcombine.low %v1308, %v1316
  %v1334 = vcombine.high %v1308, %v1316
  %v1336 = vunpack.c.l.s4 1934713408
  %v1337 = vunpack.c.0.s8 %v1336
  %v1338 = vlaneseq
  %v1339 = vshrl.u32 %v1338, 7
  %v1340 = vsub.s32 %v1337, %v1339
  %v1341 = vrot.slane %v1333, %v1340
  %v1343 = vunpack.c.l.s4 1934713408
  %v1344 = vunpack.c.0.s8 %v1343
  %v1345 = vlaneseq
  %v1346 = vshrl.u32 %v1345, 7
  %v1347 = vsub.s32 %v1344, %v1346
  %v1348 = vrot.slane %v1334, %v1347
  %v1349 = vcombine.low %v1325, %v1341
  %v1350 = vcombine.high %v1325, %v1341
  %v1351 = vcombine.low %v1332, %v1348
  %v1352 = vcombine.high %v1332, %v1348
  %v1353 = vpack.c.bf16 %v1349, %v1349
  %v1354 = vpack.c.bf16 %v1350, %v1350
  %v1355 = vpack.c.bf16 %v1351, %v1351
  %v1356 = vpack.c.bf16 %v1352, %v1352
  %1358 = vrot.lane.b32.xlu0 %v174, 120
  %v1359 = vpop.permute.xlu0 %1358
  %1361 = vrot.lane.b32.xlu0 %v174, 112
  %v1362 = vpop.permute.xlu0 %1361
  %1364 = vrot.lane.b32.xlu0 %v174, 104
  %v1365 = vpop.permute.xlu0 %1364
  %v1367 = vcombine.low %v174, %v1362
  %v1368 = vcombine.high %v174, %v1362
  %v1370 = vunpack.c.l.s4 1983009808
  %v1371 = vunpack.c.0.s8 %v1370
  %v1372 = vlaneseq
  %v1373 = vshrl.u32 %v1372, 7
  %v1374 = vsub.s32 %v1371, %v1373
  %v1375 = vrot.slane %v1367, %v1374
  %v1377 = vunpack.c.l.s4 1983009808
  %v1378 = vunpack.c.0.s8 %v1377
  %v1379 = vlaneseq
  %v1380 = vshrl.u32 %v1379, 7
  %v1381 = vsub.s32 %v1378, %v1380
  %v1382 = vrot.slane %v1368, %v1381
  %v1383 = vcombine.low %v1359, %v1365
  %v1384 = vcombine.high %v1359, %v1365
  %v1386 = vunpack.c.l.s4 1983009808
  %v1387 = vunpack.c.0.s8 %v1386
  %v1388 = vlaneseq
  %v1389 = vshrl.u32 %v1388, 7
  %v1390 = vsub.s32 %v1387, %v1389
  %v1391 = vrot.slane %v1383, %v1390
  %v1393 = vunpack.c.l.s4 1983009808
  %v1394 = vunpack.c.0.s8 %v1393
  %v1395 = vlaneseq
  %v1396 = vshrl.u32 %v1395, 7
  %v1397 = vsub.s32 %v1394, %v1396
  %v1398 = vrot.slane %v1384, %v1397
  %v1399 = vcombine.low %v1375, %v1391
  %v1400 = vcombine.high %v1375, %v1391
  %v1402 = vunpack.c.l.s4 1934713408
  %v1403 = vunpack.c.0.s8 %v1402
  %v1404 = vlaneseq
  %v1405 = vshrl.u32 %v1404, 7
  %v1406 = vsub.s32 %v1403, %v1405
  %v1407 = vrot.slane %v1399, %v1406
  %v1409 = vunpack.c.l.s4 1934713408
  %v1410 = vunpack.c.0.s8 %v1409
  %v1411 = vlaneseq
  %v1412 = vshrl.u32 %v1411, 7
  %v1413 = vsub.s32 %v1410, %v1412
  %v1414 = vrot.slane %v1400, %v1413
  %v1415 = vcombine.low %v1382, %v1398
  %v1416 = vcombine.high %v1382, %v1398
  %v1418 = vunpack.c.l.s4 1934713408
  %v1419 = vunpack.c.0.s8 %v1418
  %v1420 = vlaneseq
  %v1421 = vshrl.u32 %v1420, 7
  %v1422 = vsub.s32 %v1419, %v1421
  %v1423 = vrot.slane %v1415, %v1422
  %v1425 = vunpack.c.l.s4 1934713408
  %v1426 = vunpack.c.0.s8 %v1425
  %v1427 = vlaneseq
  %v1428 = vshrl.u32 %v1427, 7
  %v1429 = vsub.s32 %v1426, %v1428
  %v1430 = vrot.slane %v1416, %v1429
  %v1431 = vcombine.high %v1407, 0.0
  %v1432 = vcombine.high %v1414, 0.0
  %v1433 = vcombine.high %v1423, 0.0
  %v1434 = vcombine.high %v1430, 0.0
  %v1435 = vcombine.low %v1407, %v1414
  %v1437 = vunpack.c.l.s4 1983009808
  %v1438 = vunpack.c.0.s8 %v1437
  %v1439 = vlaneseq
  %v1440 = vshrl.u32 %v1439, 7
  %v1441 = vsub.s32 %v1438, %v1440
  %v1442 = vrot.slane %v1435, %v1441
  %v1443 = vcombine.low %v1431, %v1432
  %v1445 = vunpack.c.l.s4 1983009808
  %v1446 = vunpack.c.0.s8 %v1445
  %v1447 = vlaneseq
  %v1448 = vshrl.u32 %v1447, 7
  %v1449 = vsub.s32 %v1446, %v1448
  %v1450 = vrot.slane %v1443, %v1449
  %v1451 = vcombine.low %v1423, %v1430
  %v1453 = vunpack.c.l.s4 1983009808
  %v1454 = vunpack.c.0.s8 %v1453
  %v1455 = vlaneseq
  %v1456 = vshrl.u32 %v1455, 7
  %v1457 = vsub.s32 %v1454, %v1456
  %v1458 = vrot.slane %v1451, %v1457
  %v1459 = vcombine.low %v1433, %v1434
  %v1461 = vunpack.c.l.s4 1983009808
  %v1462 = vunpack.c.0.s8 %v1461
  %v1463 = vlaneseq
  %v1464 = vshrl.u32 %v1463, 7
  %v1465 = vsub.s32 %v1462, %v1464
  %v1466 = vrot.slane %v1459, %v1465
  %v1467 = vcombine.low %v1442, %v1450
  %v1468 = vcombine.high %v1442, %v1450
  %v1470 = vunpack.c.l.s4 1934713408
  %v1471 = vunpack.c.0.s8 %v1470
  %v1472 = vlaneseq
  %v1473 = vshrl.u32 %v1472, 7
  %v1474 = vsub.s32 %v1471, %v1473
  %v1475 = vrot.slane %v1467, %v1474
  %v1477 = vunpack.c.l.s4 1934713408
  %v1478 = vunpack.c.0.s8 %v1477
  %v1479 = vlaneseq
  %v1480 = vshrl.u32 %v1479, 7
  %v1481 = vsub.s32 %v1478, %v1480
  %v1482 = vrot.slane %v1468, %v1481
  %v1483 = vcombine.low %v1458, %v1466
  %v1484 = vcombine.high %v1458, %v1466
  %v1486 = vunpack.c.l.s4 1934713408
  %v1487 = vunpack.c.0.s8 %v1486
  %v1488 = vlaneseq
  %v1489 = vshrl.u32 %v1488, 7
  %v1490 = vsub.s32 %v1487, %v1489
  %v1491 = vrot.slane %v1483, %v1490
  %v1493 = vunpack.c.l.s4 1934713408
  %v1494 = vunpack.c.0.s8 %v1493
  %v1495 = vlaneseq
  %v1496 = vshrl.u32 %v1495, 7
  %v1497 = vsub.s32 %v1494, %v1496
  %v1498 = vrot.slane %v1484, %v1497
  %v1499 = vcombine.low %v1475, %v1491
  %v1500 = vcombine.high %v1475, %v1491
  %v1501 = vcombine.low %v1482, %v1498
  %v1502 = vcombine.high %v1482, %v1498
  %v1503 = vpack.c.bf16 %v1499, %v1499
  %v1504 = vpack.c.bf16 %v1500, %v1500
  %v1505 = vpack.c.bf16 %v1501, %v1501
  %v1506 = vpack.c.bf16 %v1502, %v1502
  %1507 = vrot.lane.b32.xlu0 %v174, 96
  %v1508 = vpop.permute.xlu0 %1507
  %1509 = vrot.lane.b32.xlu0 %v1359, 96
  %v1510 = vpop.permute.xlu0 %1509
  %1511 = vrot.lane.b32.xlu0 %v1362, 96
  %v1512 = vpop.permute.xlu0 %1511
  %1513 = vrot.lane.b32.xlu0 %v1365, 96
  %v1514 = vpop.permute.xlu0 %1513
  %v1519 = vcombine.low %v1508, %v1512
  %v1520 = vcombine.high %v1508, %v1512
  %v1522 = vunpack.c.l.s4 1983009808
  %v1523 = vunpack.c.0.s8 %v1522
  %v1524 = vlaneseq
  %v1525 = vshrl.u32 %v1524, 7
  %v1526 = vsub.s32 %v1523, %v1525
  %v1527 = vrot.slane %v1519, %v1526
  %v1529 = vunpack.c.l.s4 1983009808
  %v1530 = vunpack.c.0.s8 %v1529
  %v1531 = vlaneseq
  %v1532 = vshrl.u32 %v1531, 7
  %v1533 = vsub.s32 %v1530, %v1532
  %v1534 = vrot.slane %v1520, %v1533
  %v1535 = vcombine.low %v1510, %v1514
  %v1536 = vcombine.high %v1510, %v1514
  %v1538 = vunpack.c.l.s4 1983009808
  %v1539 = vunpack.c.0.s8 %v1538
  %v1540 = vlaneseq
  %v1541 = vshrl.u32 %v1540, 7
  %v1542 = vsub.s32 %v1539, %v1541
  %v1543 = vrot.slane %v1535, %v1542
  %v1545 = vunpack.c.l.s4 1983009808
  %v1546 = vunpack.c.0.s8 %v1545
  %v1547 = vlaneseq
  %v1548 = vshrl.u32 %v1547, 7
  %v1549 = vsub.s32 %v1546, %v1548
  %v1550 = vrot.slane %v1536, %v1549
  %v1551 = vcombine.low %v1527, %v1543
  %v1552 = vcombine.high %v1527, %v1543
  %v1554 = vunpack.c.l.s4 1934713408
  %v1555 = vunpack.c.0.s8 %v1554
  %v1556 = vlaneseq
  %v1557 = vshrl.u32 %v1556, 7
  %v1558 = vsub.s32 %v1555, %v1557
  %v1559 = vrot.slane %v1551, %v1558
  %v1561 = vunpack.c.l.s4 1934713408
  %v1562 = vunpack.c.0.s8 %v1561
  %v1563 = vlaneseq
  %v1564 = vshrl.u32 %v1563, 7
  %v1565 = vsub.s32 %v1562, %v1564
  %v1566 = vrot.slane %v1552, %v1565
  %v1567 = vcombine.low %v1534, %v1550
  %v1568 = vcombine.high %v1534, %v1550
  %v1570 = vunpack.c.l.s4 1934713408
  %v1571 = vunpack.c.0.s8 %v1570
  %v1572 = vlaneseq
  %v1573 = vshrl.u32 %v1572, 7
  %v1574 = vsub.s32 %v1571, %v1573
  %v1575 = vrot.slane %v1567, %v1574
  %v1577 = vunpack.c.l.s4 1934713408
  %v1578 = vunpack.c.0.s8 %v1577
  %v1579 = vlaneseq
  %v1580 = vshrl.u32 %v1579, 7
  %v1581 = vsub.s32 %v1578, %v1580
  %v1582 = vrot.slane %v1568, %v1581
  %v1583 = vcombine.high %v1559, 0.0
  %v1584 = vcombine.high %v1566, 0.0
  %v1585 = vcombine.high %v1575, 0.0
  %v1586 = vcombine.high %v1582, 0.0
  %v1587 = vcombine.low %v1559, %v1566
  %v1589 = vunpack.c.l.s4 1983009808
  %v1590 = vunpack.c.0.s8 %v1589
  %v1591 = vlaneseq
  %v1592 = vshrl.u32 %v1591, 7
  %v1593 = vsub.s32 %v1590, %v1592
  %v1594 = vrot.slane %v1587, %v1593
  %v1595 = vcombine.low %v1583, %v1584
  %v1597 = vunpack.c.l.s4 1983009808
  %v1598 = vunpack.c.0.s8 %v1597
  %v1599 = vlaneseq
  %v1600 = vshrl.u32 %v1599, 7
  %v1601 = vsub.s32 %v1598, %v1600
  %v1602 = vrot.slane %v1595, %v1601
  %v1603 = vcombine.low %v1575, %v1582
  %v1605 = vunpack.c.l.s4 1983009808
  %v1606 = vunpack.c.0.s8 %v1605
  %v1607 = vlaneseq
  %v1608 = vshrl.u32 %v1607, 7
  %v1609 = vsub.s32 %v1606, %v1608
  %v1610 = vrot.slane %v1603, %v1609
  %v1611 = vcombine.low %v1585, %v1586
  %v1613 = vunpack.c.l.s4 1983009808
  %v1614 = vunpack.c.0.s8 %v1613
  %v1615 = vlaneseq
  %v1616 = vshrl.u32 %v1615, 7
  %v1617 = vsub.s32 %v1614, %v1616
  %v1618 = vrot.slane %v1611, %v1617
  %v1619 = vcombine.low %v1594, %v1602
  %v1620 = vcombine.high %v1594, %v1602
  %v1622 = vunpack.c.l.s4 1934713408
  %v1623 = vunpack.c.0.s8 %v1622
  %v1624 = vlaneseq
  %v1625 = vshrl.u32 %v1624, 7
  %v1626 = vsub.s32 %v1623, %v1625
  %v1627 = vrot.slane %v1619, %v1626
  %v1629 = vunpack.c.l.s4 1934713408
  %v1630 = vunpack.c.0.s8 %v1629
  %v1631 = vlaneseq
  %v1632 = vshrl.u32 %v1631, 7
  %v1633 = vsub.s32 %v1630, %v1632
  %v1634 = vrot.slane %v1620, %v1633
  %v1635 = vcombine.low %v1610, %v1618
  %v1636 = vcombine.high %v1610, %v1618
  %v1638 = vunpack.c.l.s4 1934713408
  %v1639 = vunpack.c.0.s8 %v1638
  %v1640 = vlaneseq
  %v1641 = vshrl.u32 %v1640, 7
  %v1642 = vsub.s32 %v1639, %v1641
  %v1643 = vrot.slane %v1635, %v1642
  %v1645 = vunpack.c.l.s4 1934713408
  %v1646 = vunpack.c.0.s8 %v1645
  %v1647 = vlaneseq
  %v1648 = vshrl.u32 %v1647, 7
  %v1649 = vsub.s32 %v1646, %v1648
  %v1650 = vrot.slane %v1636, %v1649
  %v1651 = vcombine.low %v1627, %v1643
  %v1652 = vcombine.high %v1627, %v1643
  %v1653 = vcombine.low %v1634, %v1650
  %v1654 = vcombine.high %v1634, %v1650
  %v1655 = vpack.c.bf16 %v1651, %v1651
  %v1656 = vpack.c.bf16 %v1652, %v1652
  %v1657 = vpack.c.bf16 %v1653, %v1653
  %v1658 = vpack.c.bf16 %v1654, %v1654
  %v1660 = vsel %vm636, %v1353, 0
  %v1663 = vsel %vm636, %v1503, 0
  %1665 = vmatprep.subr.bf16.mxu0 0
  %1666 = vmatpush1.bf16.xpose.msra.mxu0 %v1663
  %1667 = vmatprep.subr.bf16.mxu0 0
  %1668 = vmatpush1.bf16.xpose.msra.mxu0 0
  %1669 = vmatprep.subr.bf16.mxu0 0
  %1670 = vmatpush1.bf16.xpose.msra.mxu0 0
  %1671 = vmatprep.subr.bf16.mxu0 0
  %1672 = vmatpush1.bf16.xpose.msra.mxu0 0
  %1673 = vmatprep.subr.bf16.mxu0 0
  %1674 = vmatpush1.bf16.xpose.msra.mxu0 0
  %1675 = vmatprep.subr.bf16.mxu0 0
  %1676 = vmatpush1.bf16.xpose.msra.mxu0 0
  %1677 = vmatprep.subr.bf16.mxu0 0
  %1678 = vmatpush1.bf16.xpose.msra.mxu0 0
  %1679 = vmatprep.subr.bf16.mxu0 0
  %1680 = vmatpush1.bf16.xpose.msra.mxu0 0
  %1681 = vmatprep.subr.bf16.mxu0 0
  %1682 = vmatpush1.bf16.xpose.msra.mxu0 0
  %1683 = vmatprep.subr.bf16.mxu0 0
  %1684 = vmatpush1.bf16.xpose.msra.mxu0 0
  %1685 = vmatprep.subr.bf16.mxu0 0
  %1686 = vmatpush1.bf16.xpose.msra.mxu0 0
  %1687 = vmatprep.subr.bf16.mxu0 0
  %1688 = vmatpush1.bf16.xpose.msra.mxu0 0
  %1689 = vmatprep.subr.bf16.mxu0 0
  %1690 = vmatpush1.bf16.xpose.msra.mxu0 0
  %1691 = vmatprep.subr.bf16.mxu0 0
  %1692 = vmatpush1.bf16.xpose.msra.mxu0 0
  %1693 = vmatprep.subr.bf16.mxu0 0
  %1694 = vmatpush1.bf16.xpose.msra.mxu0 0
  %1695 = vmatprep.subr.bf16.mxu0 0
  %1696 = vmatpush1.bf16.xpose.msra.mxu0 0
  %1697 = vmatprep.mubr.bf16.mxu0 0
  %1698 = vmatmul.mubr.bf16.gmra.mrb[0].mxu0 %v1660
  %v1699 = vpop.f32.mrb[0].mxu0
  %v1700 = vadd.f32 0.0, %v1699
  %v1701 = vpop.f32.mrb[0].mxu0
  %v1702 = vpop.f32.mrb[0].mxu0
  %v1703 = vpop.f32.mrb[0].mxu0
  %1704 = vdwg.mxu0
  %v1706 = vsel %vm636, %v1354, 0
  %v1709 = vsel %vm636, %v1504, 0
  %1711 = vmatprep.subr.bf16.mxu0 0
  %1712 = vmatpush1.bf16.xpose.msra.mxu0 %v1709
  %1713 = vmatprep.subr.bf16.mxu0 0
  %1714 = vmatpush1.bf16.xpose.msra.mxu0 0
  %1715 = vmatprep.subr.bf16.mxu0 0
  %1716 = vmatpush1.bf16.xpose.msra.mxu0 0
  %1717 = vmatprep.subr.bf16.mxu0 0
  %1718 = vmatpush1.bf16.xpose.msra.mxu0 0
  %1719 = vmatprep.subr.bf16.mxu0 0
  %1720 = vmatpush1.bf16.xpose.msra.mxu0 0
  %1721 = vmatprep.subr.bf16.mxu0 0
  %1722 = vmatpush1.bf16.xpose.msra.mxu0 0
  %1723 = vmatprep.subr.bf16.mxu0 0
  %1724 = vmatpush1.bf16.xpose.msra.mxu0 0
  %1725 = vmatprep.subr.bf16.mxu0 0
  %1726 = vmatpush1.bf16.xpose.msra.mxu0 0
  %1727 = vmatprep.subr.bf16.mxu0 0
  %1728 = vmatpush1.bf16.xpose.msra.mxu0 0
  %1729 = vmatprep.subr.bf16.mxu0 0
  %1730 = vmatpush1.bf16.xpose.msra.mxu0 0
  %1731 = vmatprep.subr.bf16.mxu0 0
  %1732 = vmatpush1.bf16.xpose.msra.mxu0 0
  %1733 = vmatprep.subr.bf16.mxu0 0
  %1734 = vmatpush1.bf16.xpose.msra.mxu0 0
  %1735 = vmatprep.subr.bf16.mxu0 0
  %1736 = vmatpush1.bf16.xpose.msra.mxu0 0
  %1737 = vmatprep.subr.bf16.mxu0 0
  %1738 = vmatpush1.bf16.xpose.msra.mxu0 0
  %1739 = vmatprep.subr.bf16.mxu0 0
  %1740 = vmatpush1.bf16.xpose.msra.mxu0 0
  %1741 = vmatprep.subr.bf16.mxu0 0
  %1742 = vmatpush1.bf16.xpose.msra.mxu0 0
  %1743 = vmatprep.mubr.bf16.mxu0 0
  %1744 = vmatmul.mubr.bf16.gmra.mrb[0].mxu0 %v1706
  %v1745 = vpop.f32.mrb[0].mxu0
  %v1746 = vadd.f32 0.0, %v1745
  %v1747 = vpop.f32.mrb[0].mxu0
  %v1748 = vpop.f32.mrb[0].mxu0
  %v1749 = vpop.f32.mrb[0].mxu0
  %1750 = vdwg.mxu0
  %v1752 = vsel %vm636, %v1355, 0
  %v1755 = vsel %vm636, %v1505, 0
  %1757 = vmatprep.subr.bf16.mxu0 0
  %1758 = vmatpush1.bf16.xpose.msra.mxu0 %v1755
  %1759 = vmatprep.subr.bf16.mxu0 0
  %1760 = vmatpush1.bf16.xpose.msra.mxu0 0
  %1761 = vmatprep.subr.bf16.mxu0 0
  %1762 = vmatpush1.bf16.xpose.msra.mxu0 0
  %1763 = vmatprep.subr.bf16.mxu0 0
  %1764 = vmatpush1.bf16.xpose.msra.mxu0 0
  %1765 = vmatprep.subr.bf16.mxu0 0
  %1766 = vmatpush1.bf16.xpose.msra.mxu0 0
  %1767 = vmatprep.subr.bf16.mxu0 0
  %1768 = vmatpush1.bf16.xpose.msra.mxu0 0
  %1769 = vmatprep.subr.bf16.mxu0 0
  %1770 = vmatpush1.bf16.xpose.msra.mxu0 0
  %1771 = vmatprep.subr.bf16.mxu0 0
  %1772 = vmatpush1.bf16.xpose.msra.mxu0 0
  %1773 = vmatprep.subr.bf16.mxu0 0
  %1774 = vmatpush1.bf16.xpose.msra.mxu0 0
  %1775 = vmatprep.subr.bf16.mxu0 0
  %1776 = vmatpush1.bf16.xpose.msra.mxu0 0
  %1777 = vmatprep.subr.bf16.mxu0 0
  %1778 = vmatpush1.bf16.xpose.msra.mxu0 0
  %1779 = vmatprep.subr.bf16.mxu0 0
  %1780 = vmatpush1.bf16.xpose.msra.mxu0 0
  %1781 = vmatprep.subr.bf16.mxu0 0
  %1782 = vmatpush1.bf16.xpose.msra.mxu0 0
  %1783 = vmatprep.subr.bf16.mxu0 0
  %1784 = vmatpush1.bf16.xpose.msra.mxu0 0
  %1785 = vmatprep.subr.bf16.mxu0 0
  %1786 = vmatpush1.bf16.xpose.msra.mxu0 0
  %1787 = vmatprep.subr.bf16.mxu0 0
  %1788 = vmatpush1.bf16.xpose.msra.mxu0 0
  %1789 = vmatprep.mubr.bf16.mxu0 0
  %1790 = vmatmul.mubr.bf16.gmra.mrb[0].mxu0 %v1752
  %v1791 = vpop.f32.mrb[0].mxu0
  %v1792 = vadd.f32 0.0, %v1791
  %v1793 = vpop.f32.mrb[0].mxu0
  %v1794 = vpop.f32.mrb[0].mxu0
  %v1795 = vpop.f32.mrb[0].mxu0
  %1796 = vdwg.mxu0
  %v1798 = vsel %vm636, %v1356, 0
  %v1801 = vsel %vm636, %v1506, 0
  %1803 = vmatprep.subr.bf16.mxu0 0
  %1804 = vmatpush1.bf16.xpose.msra.mxu0 %v1801
  %1805 = vmatprep.subr.bf16.mxu0 0
  %1806 = vmatpush1.bf16.xpose.msra.mxu0 0
  %1807 = vmatprep.subr.bf16.mxu0 0
  %1808 = vmatpush1.bf16.xpose.msra.mxu0 0
  %1809 = vmatprep.subr.bf16.mxu0 0
  %1810 = vmatpush1.bf16.xpose.msra.mxu0 0
  %1811 = vmatprep.subr.bf16.mxu0 0
  %1812 = vmatpush1.bf16.xpose.msra.mxu0 0
  %1813 = vmatprep.subr.bf16.mxu0 0
  %1814 = vmatpush1.bf16.xpose.msra.mxu0 0
  %1815 = vmatprep.subr.bf16.mxu0 0
  %1816 = vmatpush1.bf16.xpose.msra.mxu0 0
  %1817 = vmatprep.subr.bf16.mxu0 0
  %1818 = vmatpush1.bf16.xpose.msra.mxu0 0
  %1819 = vmatprep.subr.bf16.mxu0 0
  %1820 = vmatpush1.bf16.xpose.msra.mxu0 0
  %1821 = vmatprep.subr.bf16.mxu0 0
  %1822 = vmatpush1.bf16.xpose.msra.mxu0 0
  %1823 = vmatprep.subr.bf16.mxu0 0
  %1824 = vmatpush1.bf16.xpose.msra.mxu0 0
  %1825 = vmatprep.subr.bf16.mxu0 0
  %1826 = vmatpush1.bf16.xpose.msra.mxu0 0
  %1827 = vmatprep.subr.bf16.mxu0 0
  %1828 = vmatpush1.bf16.xpose.msra.mxu0 0
  %1829 = vmatprep.subr.bf16.mxu0 0
  %1830 = vmatpush1.bf16.xpose.msra.mxu0 0
  %1831 = vmatprep.subr.bf16.mxu0 0
  %1832 = vmatpush1.bf16.xpose.msra.mxu0 0
  %1833 = vmatprep.subr.bf16.mxu0 0
  %1834 = vmatpush1.bf16.xpose.msra.mxu0 0
  %1835 = vmatprep.mubr.bf16.mxu0 0
  %1836 = vmatmul.mubr.bf16.gmra.mrb[0].mxu0 %v1798
  %v1837 = vpop.f32.mrb[0].mxu0
  %v1838 = vadd.f32 0.0, %v1837
  %v1839 = vpop.f32.mrb[0].mxu0
  %v1840 = vpop.f32.mrb[0].mxu0
  %v1841 = vpop.f32.mrb[0].mxu0
  %1842 = vdwg.mxu0
  %v1843 = vsel %vm636, %v1700, -inf
  %1844 = vmax.xlane.f32.xlu0 %v1843
  %v1845 = vpop.xlane.xlu0 %1844
  %v1846 = vsel %vm636, %v1746, -inf
  %1847 = vmax.xlane.f32.xlu0 %v1846
  %v1848 = vpop.xlane.xlu0 %1847
  %v1849 = vsel %vm636, %v1792, -inf
  %1850 = vmax.xlane.f32.xlu0 %v1849
  %v1851 = vpop.xlane.xlu0 %1850
  %v1852 = vsel %vm636, %v1838, -inf
  %1853 = vmax.xlane.f32.xlu0 %v1852
  %v1854 = vpop.xlane.xlu0 %1853
  %v1855 = vsub.f32 %v1700, %v1845
  %v1856 = vsub.f32 %v1746, %v1848
  %v1857 = vsub.f32 %v1792, %v1851
  %v1858 = vsub.f32 %v1838, %v1854
  %v1859 = vmul.f32 %v1855, 1.442695
  %v1860 = vpow.pop %v1859
  %v1861 = vmul.f32 %v1856, 1.442695
  %v1862 = vpow.pop %v1861
  %v1863 = vmul.f32 %v1857, 1.442695
  %v1864 = vpow.pop %v1863
  %v1865 = vmul.f32 %v1858, 1.442695
  %v1866 = vpow.pop %v1865
  %v1867 = vsel %vm636, %v1860, 0.0
  %1868 = vadd.xlane.f32.xlu0 %v1867
  %v1869 = vpop.xlane.xlu0 %1868
  %v1870 = vsel %vm636, %v1862, 0.0
  %1871 = vadd.xlane.f32.xlu0 %v1870
  %v1872 = vpop.xlane.xlu0 %1871
  %v1873 = vsel %vm636, %v1864, 0.0
  %1874 = vadd.xlane.f32.xlu0 %v1873
  %v1875 = vpop.xlane.xlu0 %1874
  %v1876 = vsel %vm636, %v1866, 0.0
  %1877 = vadd.xlane.f32.xlu0 %v1876
  %v1878 = vpop.xlane.xlu0 %1877
  %v1879 = vrcp.pop %v1869
  %v1880 = vrcp.pop %v1872
  %v1881 = vrcp.pop %v1875
  %v1882 = vrcp.pop %v1878
  %v1883 = vmul.f32 %v1860, %v1879
  %v1884 = vmul.f32 %v1862, %v1880
  %v1885 = vmul.f32 %v1864, %v1881
  %v1886 = vmul.f32 %v1866, %v1882
  %v1887 = vpack.c.bf16 %v1883, %v1883
  %v1888 = vpack.c.bf16 %v1884, %v1884
  %v1889 = vpack.c.bf16 %v1885, %v1885
  %v1890 = vpack.c.bf16 %v1886, %v1886
  %v1892 = vsel %vm636, %v1887, 0
  %v1895 = vsel %vm872, %v1655, 0
  %1897 = vmatprep.subr.bf16.mxu0 0
  %1898 = vmatpush1.bf16.msra.mxu0 %v1895
  %1899 = vmatprep.subr.bf16.mxu0 0
  %1900 = vmatpush1.bf16.msra.mxu0 0
  %1901 = vmatprep.subr.bf16.mxu0 0
  %1902 = vmatpush1.bf16.msra.mxu0 0
  %1903 = vmatprep.subr.bf16.mxu0 0
  %1904 = vmatpush1.bf16.msra.mxu0 0
  %1905 = vmatprep.subr.bf16.mxu0 0
  %1906 = vmatpush1.bf16.msra.mxu0 0
  %1907 = vmatprep.subr.bf16.mxu0 0
  %1908 = vmatpush1.bf16.msra.mxu0 0
  %1909 = vmatprep.subr.bf16.mxu0 0
  %1910 = vmatpush1.bf16.msra.mxu0 0
  %1911 = vmatprep.subr.bf16.mxu0 0
  %1912 = vmatpush1.bf16.msra.mxu0 0
  %1913 = vmatprep.subr.bf16.mxu0 0
  %1914 = vmatpush1.bf16.msra.mxu0 0
  %1915 = vmatprep.subr.bf16.mxu0 0
  %1916 = vmatpush1.bf16.msra.mxu0 0
  %1917 = vmatprep.subr.bf16.mxu0 0
  %1918 = vmatpush1.bf16.msra.mxu0 0
  %1919 = vmatprep.subr.bf16.mxu0 0
  %1920 = vmatpush1.bf16.msra.mxu0 0
  %1921 = vmatprep.subr.bf16.mxu0 0
  %1922 = vmatpush1.bf16.msra.mxu0 0
  %1923 = vmatprep.subr.bf16.mxu0 0
  %1924 = vmatpush1.bf16.msra.mxu0 0
  %1925 = vmatprep.subr.bf16.mxu0 0
  %1926 = vmatpush1.bf16.msra.mxu0 0
  %1927 = vmatprep.subr.bf16.mxu0 0
  %1928 = vmatpush1.bf16.msra.mxu0 0
  %1929 = vmatprep.mubr.bf16.mxu0 0
  %1930 = vmatmul.mubr.bf16.gmra.mrb[0].mxu0 %v1892
  %v1931 = vpop.f32.mrb[0].mxu0
  %v1932 = vadd.f32 0.0, %v1931
  %v1933 = vpop.f32.mrb[0].mxu0
  %v1934 = vpop.f32.mrb[0].mxu0
  %v1935 = vpop.f32.mrb[0].mxu0
  %1936 = vdwg.mxu0
  %v1938 = vsel %vm636, %v1888, 0
  %v1941 = vsel %vm872, %v1656, 0
  %1943 = vmatprep.subr.bf16.mxu0 0
  %1944 = vmatpush1.bf16.msra.mxu0 %v1941
  %1945 = vmatprep.subr.bf16.mxu0 0
  %1946 = vmatpush1.bf16.msra.mxu0 0
  %1947 = vmatprep.subr.bf16.mxu0 0
  %1948 = vmatpush1.bf16.msra.mxu0 0
  %1949 = vmatprep.subr.bf16.mxu0 0
  %1950 = vmatpush1.bf16.msra.mxu0 0
  %1951 = vmatprep.subr.bf16.mxu0 0
  %1952 = vmatpush1.bf16.msra.mxu0 0
  %1953 = vmatprep.subr.bf16.mxu0 0
  %1954 = vmatpush1.bf16.msra.mxu0 0
  %1955 = vmatprep.subr.bf16.mxu0 0
  %1956 = vmatpush1.bf16.msra.mxu0 0
  %1957 = vmatprep.subr.bf16.mxu0 0
  %1958 = vmatpush1.bf16.msra.mxu0 0
  %1959 = vmatprep.subr.bf16.mxu0 0
  %1960 = vmatpush1.bf16.msra.mxu0 0
  %1961 = vmatprep.subr.bf16.mxu0 0
  %1962 = vmatpush1.bf16.msra.mxu0 0
  %1963 = vmatprep.subr.bf16.mxu0 0
  %1964 = vmatpush1.bf16.msra.mxu0 0
  %1965 = vmatprep.subr.bf16.mxu0 0
  %1966 = vmatpush1.bf16.msra.mxu0 0
  %1967 = vmatprep.subr.bf16.mxu0 0
  %1968 = vmatpush1.bf16.msra.mxu0 0
  %1969 = vmatprep.subr.bf16.mxu0 0
  %1970 = vmatpush1.bf16.msra.mxu0 0
  %1971 = vmatprep.subr.bf16.mxu0 0
  %1972 = vmatpush1.bf16.msra.mxu0 0
  %1973 = vmatprep.subr.bf16.mxu0 0
  %1974 = vmatpush1.bf16.msra.mxu0 0
  %1975 = vmatprep.mubr.bf16.mxu0 0
  %1976 = vmatmul.mubr.bf16.gmra.mrb[0].mxu0 %v1938
  %v1977 = vpop.f32.mrb[0].mxu0
  %v1978 = vadd.f32 0.0, %v1977
  %v1979 = vpop.f32.mrb[0].mxu0
  %v1980 = vpop.f32.mrb[0].mxu0
  %v1981 = vpop.f32.mrb[0].mxu0
  %1982 = vdwg.mxu0
  %v1984 = vsel %vm636, %v1889, 0
  %v1987 = vsel %vm872, %v1657, 0
  %1989 = vmatprep.subr.bf16.mxu0 0
  %1990 = vmatpush1.bf16.msra.mxu0 %v1987
  %1991 = vmatprep.subr.bf16.mxu0 0
  %1992 = vmatpush1.bf16.msra.mxu0 0
  %1993 = vmatprep.subr.bf16.mxu0 0
  %1994 = vmatpush1.bf16.msra.mxu0 0
  %1995 = vmatprep.subr.bf16.mxu0 0
  %1996 = vmatpush1.bf16.msra.mxu0 0
  %1997 = vmatprep.subr.bf16.mxu0 0
  %1998 = vmatpush1.bf16.msra.mxu0 0
  %1999 = vmatprep.subr.bf16.mxu0 0
  %2000 = vmatpush1.bf16.msra.mxu0 0
  %2001 = vmatprep.subr.bf16.mxu0 0
  %2002 = vmatpush1.bf16.msra.mxu0 0
  %2003 = vmatprep.subr.bf16.mxu0 0
  %2004 = vmatpush1.bf16.msra.mxu0 0
  %2005 = vmatprep.subr.bf16.mxu0 0
  %2006 = vmatpush1.bf16.msra.mxu0 0
  %2007 = vmatprep.subr.bf16.mxu0 0
  %2008 = vmatpush1.bf16.msra.mxu0 0
  %2009 = vmatprep.subr.bf16.mxu0 0
  %2010 = vmatpush1.bf16.msra.mxu0 0
  %2011 = vmatprep.subr.bf16.mxu0 0
  %2012 = vmatpush1.bf16.msra.mxu0 0
  %2013 = vmatprep.subr.bf16.mxu0 0
  %2014 = vmatpush1.bf16.msra.mxu0 0
  %2015 = vmatprep.subr.bf16.mxu0 0
  %2016 = vmatpush1.bf16.msra.mxu0 0
  %2017 = vmatprep.subr.bf16.mxu0 0
  %2018 = vmatpush1.bf16.msra.mxu0 0
  %2019 = vmatprep.subr.bf16.mxu0 0
  %2020 = vmatpush1.bf16.msra.mxu0 0
  %2021 = vmatprep.mubr.bf16.mxu0 0
  %2022 = vmatmul.mubr.bf16.gmra.mrb[0].mxu0 %v1984
  %v2023 = vpop.f32.mrb[0].mxu0
  %v2024 = vadd.f32 0.0, %v2023
  %v2025 = vpop.f32.mrb[0].mxu0
  %v2026 = vpop.f32.mrb[0].mxu0
  %v2027 = vpop.f32.mrb[0].mxu0
  %2028 = vdwg.mxu0
  %v2030 = vsel %vm636, %v1890, 0
  %v2033 = vsel %vm872, %v1658, 0
  %2035 = vmatprep.subr.bf16.mxu0 0
  %2036 = vmatpush1.bf16.msra.mxu0 %v2033
  %2037 = vmatprep.subr.bf16.mxu0 0
  %2038 = vmatpush1.bf16.msra.mxu0 0
  %2039 = vmatprep.subr.bf16.mxu0 0
  %2040 = vmatpush1.bf16.msra.mxu0 0
  %2041 = vmatprep.subr.bf16.mxu0 0
  %2042 = vmatpush1.bf16.msra.mxu0 0
  %2043 = vmatprep.subr.bf16.mxu0 0
  %2044 = vmatpush1.bf16.msra.mxu0 0
  %2045 = vmatprep.subr.bf16.mxu0 0
  %2046 = vmatpush1.bf16.msra.mxu0 0
  %2047 = vmatprep.subr.bf16.mxu0 0
  %2048 = vmatpush1.bf16.msra.mxu0 0
  %2049 = vmatprep.subr.bf16.mxu0 0
  %2050 = vmatpush1.bf16.msra.mxu0 0
  %2051 = vmatprep.subr.bf16.mxu0 0
  %2052 = vmatpush1.bf16.msra.mxu0 0
  %2053 = vmatprep.subr.bf16.mxu0 0
  %2054 = vmatpush1.bf16.msra.mxu0 0
  %2055 = vmatprep.subr.bf16.mxu0 0
  %2056 = vmatpush1.bf16.msra.mxu0 0
  %2057 = vmatprep.subr.bf16.mxu0 0
  %2058 = vmatpush1.bf16.msra.mxu0 0
  %2059 = vmatprep.subr.bf16.mxu0 0
  %2060 = vmatpush1.bf16.msra.mxu0 0
  %2061 = vmatprep.subr.bf16.mxu0 0
  %2062 = vmatpush1.bf16.msra.mxu0 0
  %2063 = vmatprep.subr.bf16.mxu0 0
  %2064 = vmatpush1.bf16.msra.mxu0 0
  %2065 = vmatprep.subr.bf16.mxu0 0
  %2066 = vmatpush1.bf16.msra.mxu0 0
  %2067 = vmatprep.mubr.bf16.mxu0 0
  %2068 = vmatmul.mubr.bf16.gmra.mrb[0].mxu0 %v2030
  %v2069 = vpop.f32.mrb[0].mxu0
  %v2070 = vadd.f32 0.0, %v2069
  %v2071 = vpop.f32.mrb[0].mxu0
  %v2072 = vpop.f32.mrb[0].mxu0
  %v2073 = vpop.f32.mrb[0].mxu0
  %2074 = vdwg.mxu0
  %v2075 = vcombine.low %v1932, %v2024
  %v2076 = vcombine.high %v1932, %v2024
  %v2078 = vunpack.c.l.s4 1983009808
  %v2079 = vunpack.c.0.s8 %v2078
  %v2080 = vlaneseq
  %v2081 = vshrl.u32 %v2080, 7
  %v2082 = vsub.s32 %v2079, %v2081
  %v2083 = vrot.slane %v2075, %v2082
  %v2085 = vunpack.c.l.s4 1983009808
  %v2086 = vunpack.c.0.s8 %v2085
  %v2087 = vlaneseq
  %v2088 = vshrl.u32 %v2087, 7
  %v2089 = vsub.s32 %v2086, %v2088
  %v2090 = vrot.slane %v2076, %v2089
  %v2091 = vcombine.low %v1978, %v2070
  %v2092 = vcombine.high %v1978, %v2070
  %v2094 = vunpack.c.l.s4 1983009808
  %v2095 = vunpack.c.0.s8 %v2094
  %v2096 = vlaneseq
  %v2097 = vshrl.u32 %v2096, 7
  %v2098 = vsub.s32 %v2095, %v2097
  %v2099 = vrot.slane %v2091, %v2098
  %v2101 = vunpack.c.l.s4 1983009808
  %v2102 = vunpack.c.0.s8 %v2101
  %v2103 = vlaneseq
  %v2104 = vshrl.u32 %v2103, 7
  %v2105 = vsub.s32 %v2102, %v2104
  %v2106 = vrot.slane %v2092, %v2105
  %v2107 = vcombine.low %v2083, %v2099
  %v2108 = vcombine.high %v2083, %v2099
  %v2110 = vunpack.c.l.s4 1934713408
  %v2111 = vunpack.c.0.s8 %v2110
  %v2112 = vlaneseq
  %v2113 = vshrl.u32 %v2112, 7
  %v2114 = vsub.s32 %v2111, %v2113
  %v2115 = vrot.slane %v2107, %v2114
  %v2117 = vunpack.c.l.s4 1934713408
  %v2118 = vunpack.c.0.s8 %v2117
  %v2119 = vlaneseq
  %v2120 = vshrl.u32 %v2119, 7
  %v2121 = vsub.s32 %v2118, %v2120
  %v2122 = vrot.slane %v2108, %v2121
  %v2123 = vcombine.low %v2090, %v2106
  %v2124 = vcombine.high %v2090, %v2106
  %v2126 = vunpack.c.l.s4 1934713408
  %v2127 = vunpack.c.0.s8 %v2126
  %v2128 = vlaneseq
  %v2129 = vshrl.u32 %v2128, 7
  %v2130 = vsub.s32 %v2127, %v2129
  %v2131 = vrot.slane %v2123, %v2130
  %v2133 = vunpack.c.l.s4 1934713408
  %v2134 = vunpack.c.0.s8 %v2133
  %v2135 = vlaneseq
  %v2136 = vshrl.u32 %v2135, 7
  %v2137 = vsub.s32 %v2134, %v2136
  %v2138 = vrot.slane %v2124, %v2137
  %v2139 = vcombine.high %v2115, 0.0
  %v2140 = vcombine.high %v2122, 0.0
  %v2141 = vcombine.high %v2131, 0.0
  %v2142 = vcombine.high %v2138, 0.0
  %v2143 = vcombine.low %v2115, %v2122
  %v2145 = vunpack.c.l.s4 1983009808
  %v2146 = vunpack.c.0.s8 %v2145
  %v2147 = vlaneseq
  %v2148 = vshrl.u32 %v2147, 7
  %v2149 = vsub.s32 %v2146, %v2148
  %v2150 = vrot.slane %v2143, %v2149
  %v2151 = vcombine.low %v2139, %v2140
  %v2153 = vunpack.c.l.s4 1983009808
  %v2154 = vunpack.c.0.s8 %v2153
  %v2155 = vlaneseq
  %v2156 = vshrl.u32 %v2155, 7
  %v2157 = vsub.s32 %v2154, %v2156
  %v2158 = vrot.slane %v2151, %v2157
  %v2159 = vcombine.low %v2131, %v2138
  %v2161 = vunpack.c.l.s4 1983009808
  %v2162 = vunpack.c.0.s8 %v2161
  %v2163 = vlaneseq
  %v2164 = vshrl.u32 %v2163, 7
  %v2165 = vsub.s32 %v2162, %v2164
  %v2166 = vrot.slane %v2159, %v2165
  %v2167 = vcombine.low %v2141, %v2142
  %v2169 = vunpack.c.l.s4 1983009808
  %v2170 = vunpack.c.0.s8 %v2169
  %v2171 = vlaneseq
  %v2172 = vshrl.u32 %v2171, 7
  %v2173 = vsub.s32 %v2170, %v2172
  %v2174 = vrot.slane %v2167, %v2173
  %v2175 = vcombine.low %v2150, %v2158
  %v2176 = vcombine.high %v2150, %v2158
  %v2178 = vunpack.c.l.s4 1934713408
  %v2179 = vunpack.c.0.s8 %v2178
  %v2180 = vlaneseq
  %v2181 = vshrl.u32 %v2180, 7
  %v2182 = vsub.s32 %v2179, %v2181
  %v2183 = vrot.slane %v2175, %v2182
  %v2185 = vunpack.c.l.s4 1934713408
  %v2186 = vunpack.c.0.s8 %v2185
  %v2187 = vlaneseq
  %v2188 = vshrl.u32 %v2187, 7
  %v2189 = vsub.s32 %v2186, %v2188
  %v2190 = vrot.slane %v2176, %v2189
  %v2191 = vcombine.low %v2166, %v2174
  %v2192 = vcombine.high %v2166, %v2174
  %v2194 = vunpack.c.l.s4 1934713408
  %v2195 = vunpack.c.0.s8 %v2194
  %v2196 = vlaneseq
  %v2197 = vshrl.u32 %v2196, 7
  %v2198 = vsub.s32 %v2195, %v2197
  %v2199 = vrot.slane %v2191, %v2198
  %v2201 = vunpack.c.l.s4 1934713408
  %v2202 = vunpack.c.0.s8 %v2201
  %v2203 = vlaneseq
  %v2204 = vshrl.u32 %v2203, 7
  %v2205 = vsub.s32 %v2202, %v2204
  %v2206 = vrot.slane %v2192, %v2205
  %v2207 = vcombine.low %v2183, %v2199
  %v2208 = vcombine.high %v2183, %v2199
  %v2209 = vcombine.low %v2190, %v2206
  %v2210 = vcombine.high %v2190, %v2206
  %2212 = vrot.lane.b32.xlu0 %v2208, 8
  %v2213 = vpop.permute.xlu0 %2212
  %2216 = vrot.lane.b32.xlu0 %v2209, 16
  %v2217 = vpop.permute.xlu0 %2216
  %2220 = vrot.lane.b32.xlu0 %v2210, 24
  %v2221 = vpop.permute.xlu0 %2220
  %v2223 = vsel %vm636, %v2207, %v2213
  %v2224 = vsel %vm1203, %v2223, %v2217
  %v2225 = vsel %vm1205, %v2224, %v2221
  %v2226 = vpack.c.bf16 %v2225, %v1206
  %v2228 = vlaneseq
  %v2229 = vshrl.u32 %v2228, 7
  %v2230 = vsub.s32 0, %v2229
  %v2231 = vrot.slane %v181, %v2230
  %v2237 = vunpack.c.l.b16 %v177
  %v2238 = vunpack.c.l.b16 %v178
  %v2239 = vunpack.c.l.b16 %v179
  %v2240 = vunpack.c.l.b16 %v180
  %v2241 = vpack.c.b16 %v2238, %v2237
  %v2242 = vpack.c.b16 %v2240, %v2239
  %v2246 = vsel %vm64, %v2226, 0
  %2248 = vmatprep.subr.bf16.mxu0 0
  %2249 = vmatpush1.bf16.msra.mxu0 %v2241
  %2250 = vmatprep.subr.bf16.mxu0 0
  %2251 = vmatpush1.bf16.msra.mxu0 %v2242
  %2252 = vmatprep.subr.bf16.mxu0 0
  %2253 = vmatpush1.bf16.msra.mxu0 0
  %2254 = vmatprep.subr.bf16.mxu0 0
  %2255 = vmatpush1.bf16.msra.mxu0 0
  %2256 = vmatprep.subr.bf16.mxu0 0
  %2257 = vmatpush1.bf16.msra.mxu0 0
  %2258 = vmatprep.subr.bf16.mxu0 0
  %2259 = vmatpush1.bf16.msra.mxu0 0
  %2260 = vmatprep.subr.bf16.mxu0 0
  %2261 = vmatpush1.bf16.msra.mxu0 0
  %2262 = vmatprep.subr.bf16.mxu0 0
  %2263 = vmatpush1.bf16.msra.mxu0 0
  %2264 = vmatprep.subr.bf16.mxu0 0
  %2265 = vmatpush1.bf16.msra.mxu0 0
  %2266 = vmatprep.subr.bf16.mxu0 0
  %2267 = vmatpush1.bf16.msra.mxu0 0
  %2268 = vmatprep.subr.bf16.mxu0 0
  %2269 = vmatpush1.bf16.msra.mxu0 0
  %2270 = vmatprep.subr.bf16.mxu0 0
  %2271 = vmatpush1.bf16.msra.mxu0 0
  %2272 = vmatprep.subr.bf16.mxu0 0
  %2273 = vmatpush1.bf16.msra.mxu0 0
  %2274 = vmatprep.subr.bf16.mxu0 0
  %2275 = vmatpush1.bf16.msra.mxu0 0
  %2276 = vmatprep.subr.bf16.mxu0 0
  %2277 = vmatpush1.bf16.msra.mxu0 0
  %2278 = vmatprep.subr.bf16.mxu0 0
  %2279 = vmatpush1.bf16.msra.mxu0 0
  %2280 = vmatprep.mubr.bf16.mxu0 0
  %2281 = vmatmul.mubr.bf16.gmra.mrb[0].mxu0 %v2246
  %v2282 = vpop.f32.mrb[0].mxu0
  %v2283 = vadd.f32 %v2231, %v2282
  %v2284 = vpop.f32.mrb[0].mxu0
  %v2285 = vpop.f32.mrb[0].mxu0
  %v2286 = vadd.f32 %v2231, %v2285
  %v2287 = vpop.f32.mrb[0].mxu0
  %2288 = vdwg.mxu0
  %v2289 = vadd.f32 %v36, %v2283
  %v2290 = vadd.f32 %v37, %v2286
  %v2291 = vsel %vm64, %v2289, 0.0
  %2292 = vadd.xlane.f32.xlu0 %v2291
  %v2293 = vpop.xlane.xlu0 %2292
  %v2294 = vsel %vm64, %v2290, 0.0
  %2295 = vadd.xlane.f32.xlu0 %v2294
  %v2296 = vpop.xlane.xlu0 %2295
  %v2297 = vrcp.pop 32.0
  %v2298 = vmul.f32 %v2293, %v2297
  %v2299 = vmul.f32 %v2296, %v2297
  %v2300 = vsub.f32 %v2289, %v2298
  %v2301 = vsub.f32 %v2290, %v2299
  %v2302 = vmul.f32 %v2300, %v2300
  %v2303 = vmul.f32 %v2301, %v2301
  %v2304 = vsel %vm64, %v2302, 0.0
  %2305 = vadd.xlane.f32.xlu0 %v2304
  %v2306 = vpop.xlane.xlu0 %2305
  %v2307 = vsel %vm64, %v2303, 0.0
  %2308 = vadd.xlane.f32.xlu0 %v2307
  %v2309 = vpop.xlane.xlu0 %2308
  %v2310 = vmul.f32 %v2306, %v2297
  %v2311 = vmul.f32 %v2309, %v2297
  %v2312 = vadd.f32 %v2310, 1e-05
  %v2313 = vadd.f32 %v2311, 1e-05
  %v2314 = vrsqrt.pop %v2312
  %v2315 = vrsqrt.pop %v2313
  %v2316 = vmul.f32 %v2300, %v2314
  %v2317 = vmul.f32 %v2301, %v2315
  %v2319 = vlaneseq
  %v2320 = vshrl.u32 %v2319, 7
  %v2321 = vsub.s32 0, %v2320
  %v2322 = vrot.slane %v182, %v2321
  %v2324 = vmul.f32 %v2316, %v2322
  %v2325 = vmul.f32 %v2317, %v2322
  %v2327 = vlaneseq
  %v2328 = vshrl.u32 %v2327, 7
  %v2329 = vsub.s32 0, %v2328
  %v2330 = vrot.slane %v183, %v2329
  %v2332 = vadd.f32 %v2324, %v2330
  %v2333 = vadd.f32 %v2325, %v2330
  %2334 = vst.msk [vmem:[%s10] sm:$0xff] %vm64, %v2332
  %2335 = vst.msk [vmem:[%s10 + $0x8] sm:$0xff] %vm64, %v2333
  // Predicated region
  $region42: #{transformer_forward.16} parent=0 // pred_check
    _
  $region43: #{transformer_forward.16} parent=0 // pred_check_branch
    %2337 = sbr.rel (0) target = $region45
  $region44: #{transformer_forward.16} parent=0 // pred_region
    _
  $region45: #{transformer_forward.16} parent=0 // pred_fallthru
    _
  // Predicated region
  $region46: #{transformer_forward.16} parent=0 // pred_check
    _
  $region47: #{transformer_forward.16} parent=0 // pred_check_branch
    %2339 = sbr.rel (0) target = $region49
  $region48: #{transformer_forward.16} parent=0 // pred_region
    _
  $region49: #{transformer_forward.16} parent=0 // pred_fallthru
    _

// kernel: transformer_forward.21
$region0: #{transformer_forward.21}
  #allocation0 [shape = 'u32[]', space=smem, size = 0x4, offset = 0x4, fixed_abs, tag = 'smem constant byte address 0x4 - core index']
  #allocation1 [shape = 'u32[144,128]{1,0:T(1,128)}', space=vmem, size = 0x12000, scoped, tag = 'internal scratch']
  %s0 = inlined_call_operand.vmem [shape: f32[16,32], index: 0, kind: input, shape index: {}]
  %s1 = inlined_call_operand.vmem [shape: bf16[32,128], index: 1, kind: input, shape index: {}]
  %s2 = inlined_call_operand.vmem [shape: f32[1,128], index: 2, kind: input, shape index: {}]
  %s3 = inlined_call_operand.vmem [shape: f32[16,128], index: 3, kind: output, shape index: {}]
  %s4 = sld [smem:[#allocation0]]
  $region22: #{transformer_forward.21} parent=0
    _
  %s6 = ssub.s32 1, %s4
  %s7 = scalar_select 0, %s6, %s4
  // Predicated region
  $region2: #{transformer_forward.21} parent=0 // pred_check
    _
  $region3: #{transformer_forward.21} parent=0 // pred_check_branch
    %9 = sbr.rel (0) target = $region5
  $region4: #{transformer_forward.21} parent=0 // pred_region
    _
  $region5: #{transformer_forward.21} parent=0 // pred_fallthru
    _
  // Predicated region
  $region6: #{transformer_forward.21} parent=0 // pred_check
    _
  $region7: #{transformer_forward.21} parent=0 // pred_check_branch
    %11 = sbr.rel (0) target = $region9
  $region8: #{transformer_forward.21} parent=0 // pred_region
    _
  $region9: #{transformer_forward.21} parent=0 // pred_fallthru
    _
  // Predicated region
  $region10: #{transformer_forward.21} parent=0 // pred_check
    _
  $region11: #{transformer_forward.21} parent=0 // pred_check_branch
    %13 = sbr.rel (0) target = $region13
  $region12: #{transformer_forward.21} parent=0 // pred_region
    _
  $region13: #{transformer_forward.21} parent=0 // pred_fallthru
    _
  %v15 = vld [vmem:[%s0] sm:$0xff]
  %v16 = vld [vmem:[%s0 + $0x8] sm:$0xff]
  %v17 = vld [vmem:[%s1] sm:$0xf]
  %v18 = vld [vmem:[%s1 + $0x4] sm:$0xf]
  %v19 = vld [vmem:[%s1 + $0x8] sm:$0xf]
  %v20 = vld [vmem:[%s1 + $0xc] sm:$0xf]
  %v21 = vpack.c.bf16 %v16, %v15
  %v22 = vld [vmem:[%s2] sm:$0x1]
  %v24 = vlaneseq
  %v25 = vshrl.u32 %v24, 7
  %v26 = vsub.s32 0, %v25
  %v27 = vrot.slane %v22, %v26
  %v33 = vunpack.c.l.b16 %v17
  %v34 = vunpack.c.l.b16 %v18
  %v35 = vunpack.c.l.b16 %v19
  %v36 = vunpack.c.l.b16 %v20
  %v37 = vpack.c.b16 %v34, %v33
  %v38 = vpack.c.b16 %v36, %v35
  %vm41 = vcmask 261120
  %v43 = vsel %vm41, %v21, 0
  %45 = vmatprep.subr.bf16.mxu0 0
  %46 = vmatpush1.bf16.msra.mxu0 %v37
  %47 = vmatprep.subr.bf16.mxu0 0
  %48 = vmatpush1.bf16.msra.mxu0 %v38
  %49 = vmatprep.subr.bf16.mxu0 0
  %50 = vmatpush1.bf16.msra.mxu0 0
  %51 = vmatprep.subr.bf16.mxu0 0
  %52 = vmatpush1.bf16.msra.mxu0 0
  %53 = vmatprep.subr.bf16.mxu0 0
  %54 = vmatpush1.bf16.msra.mxu0 0
  %55 = vmatprep.subr.bf16.mxu0 0
  %56 = vmatpush1.bf16.msra.mxu0 0
  %57 = vmatprep.subr.bf16.mxu0 0
  %58 = vmatpush1.bf16.msra.mxu0 0
  %59 = vmatprep.subr.bf16.mxu0 0
  %60 = vmatpush1.bf16.msra.mxu0 0
  %61 = vmatprep.subr.bf16.mxu0 0
  %62 = vmatpush1.bf16.msra.mxu0 0
  %63 = vmatprep.subr.bf16.mxu0 0
  %64 = vmatpush1.bf16.msra.mxu0 0
  %65 = vmatprep.subr.bf16.mxu0 0
  %66 = vmatpush1.bf16.msra.mxu0 0
  %67 = vmatprep.subr.bf16.mxu0 0
  %68 = vmatpush1.bf16.msra.mxu0 0
  %69 = vmatprep.subr.bf16.mxu0 0
  %70 = vmatpush1.bf16.msra.mxu0 0
  %71 = vmatprep.subr.bf16.mxu0 0
  %72 = vmatpush1.bf16.msra.mxu0 0
  %73 = vmatprep.subr.bf16.mxu0 0
  %74 = vmatpush1.bf16.msra.mxu0 0
  %75 = vmatprep.subr.bf16.mxu0 0
  %76 = vmatpush1.bf16.msra.mxu0 0
  %77 = vmatprep.mubr.bf16.mxu0 0
  %78 = vmatmul.mubr.bf16.gmra.mrb[0].mxu0 %v43
  %v79 = vpop.f32.mrb[0].mxu0
  %v80 = vadd.f32 %v27, %v79
  %v81 = vpop.f32.mrb[0].mxu0
  %v82 = vpop.f32.mrb[0].mxu0
  %v83 = vadd.f32 %v27, %v82
  %v84 = vpop.f32.mrb[0].mxu0
  %85 = vdwg.mxu0
  %86 = vst [vmem:[%s3] sm:$0xff] %v80
  %87 = vst [vmem:[%s3 + $0x8] sm:$0xff] %v83
  // Predicated region
  $region14: #{transformer_forward.21} parent=0 // pred_check
    _
  $region15: #{transformer_forward.21} parent=0 // pred_check_branch
    %89 = sbr.rel (0) target = $region17
  $region16: #{transformer_forward.21} parent=0 // pred_region
    _
  $region17: #{transformer_forward.21} parent=0 // pred_fallthru
    _
  // Predicated region
  $region18: #{transformer_forward.21} parent=0 // pred_check
    _
  $region19: #{transformer_forward.21} parent=0 // pred_check_branch
    %91 = sbr.rel (0) target = $region21
  $region20: #{transformer_forward.21} parent=0 // pred_region
    _
  $region21: #{transformer_forward.21} parent=0 // pred_fallthru
    _

</llo_original>
